<compile_context>
chip_gen: v7x
topology: tpu7x:2x2x1
jax: 0.10.0
libtpu: 0.0.40
codegen_flags: <defaults>
</compile_context>

<pallas_src>
import functools

import jax
import jax.numpy as jnp
from jax.experimental import pallas as pl
from jax.experimental.pallas import tpu as pltpu


# ---------------------------------------------------------------------------
# blocking helpers
# ---------------------------------------------------------------------------
def _round_up(x, m):
    return ((x + m - 1) // m) * m


def _pick_block(n):
    """Pick a row block (multiple of 8, <=128) and the padded row count.

    Prefers >=2 grid steps (megacore on v7x) for mid-sized N and 128-row
    blocks for large N so matmul M-tiles fill the MXU.
    """
    n8 = _round_up(n, 8)
    if n8 >= 256:
        nb = 128
    elif n8 >= 16:
        nb = _round_up(n8 // 2, 8)          # gives a 2-step grid
    else:
        nb = n8
    return nb, _round_up(n8, nb)


# ---------------------------------------------------------------------------
# Kernel 1: one hierarchy level = bidirectional GRU over time + attention
# pooling: pooled = sum_t softmax_t(w . relu(W a_t + b)) * a_t
# (identical structure for WordRNN / SentRNN / HunkRNN).
# ---------------------------------------------------------------------------
def _bigru_attn_kernel(x_ref, h0_ref, wih_ref, whh_ref, bih_ref, bhh_ref,
                       attwf_ref, attwb_ref, attb_ref, combw_ref, out_ref):
    T, Nb, D = x_ref.shape
    H = h0_ref.shape[2]
    f32 = jnp.float32
    bf16 = jnp.bfloat16

    # ---- hoisted input projection: one large matmul per direction ---------
    # (replaces T tiny (Nb,D)x(D,3H) matmuls inside the recurrence)
    x2 = x_ref[...].reshape(T * Nb, D).astype(bf16)
    gx_f = jnp.dot(x2, wih_ref[0], preferred_element_type=f32) + bih_ref[0]
    gx_b = jnp.dot(x2, wih_ref[1], preferred_element_type=f32) + bih_ref[1]

    whh_f = whh_ref[0]                       # (H, 3H) bf16
    whh_b = whh_ref[1]
    bhh_f = bhh_ref[0]                       # (1, 3H) f32
    bhh_b = bhh_ref[1]

    def gru_cell(gx, h, whh, bhh):
        gh = jnp.dot(h.astype(bf16), whh, preferred_element_type=f32) + bhh
        r = jax.nn.sigmoid(gx[:, 0:H] + gh[:, 0:H])
        z = jax.nn.sigmoid(gx[:, H:2 * H] + gh[:, H:2 * H])
        n = jnp.tanh(gx[:, 2 * H:3 * H] + r * gh[:, 2 * H:3 * H])
        return (1.0 - z) * n + z * h

    # ---- fused fwd/bwd recurrence, statically unrolled over (small) T -----
    h_f = h0_ref[0]
    h_b = h0_ref[1]
    fwd_states = [None] * T
    bwd_states = [None] * T
    for i in range(T):                       # T is a trace-time constant
        tb = T - 1 - i
        h_f = gru_cell(gx_f[i * Nb:(i + 1) * Nb], h_f, whh_f, bhh_f)
        h_b = gru_cell(gx_b[tb * Nb:(tb + 1) * Nb], h_b, whh_b, bhh_b)
        fwd_states[i] = h_f
        bwd_states[tb] = h_b

    # ---- attention over time, vectorized over all T timesteps -------------
    hf_all = jnp.concatenate(fwd_states, axis=0)          # (T*Nb, H)
    hb_all = jnp.concatenate(bwd_states, axis=0)          # (T*Nb, H)
    # ann = relu([h_f, h_b] @ W_att^T + b) computed as two half matmuls
    ann = jnp.maximum(
        jnp.dot(hf_all.astype(bf16), attwf_ref[...], preferred_element_type=f32)
        + jnp.dot(hb_all.astype(bf16), attwb_ref[...], preferred_element_type=f32)
        + attb_ref[...], 0.0)                              # (T*Nb, 2H)
    # attn_combine (2H -> 1) as VPU multiply + lane reduction (no (2H,1) matmul)
    logits = jnp.sum(ann * combw_ref[...], axis=1, keepdims=True)  # (T*Nb, 1)

    # softmax over T per sequence + weighted pooling on full (Nb, H) slabs.
    lg = [logits[t * Nb:(t + 1) * Nb] for t in range(T)]   # each (Nb, 1)
    m = lg[0]
    for t in range(1, T):
        m = jnp.maximum(m, lg[t])
    ex = [jnp.exp(l - m) for l in lg]
    den = ex[0]
    for t in range(1, T):
        den = den + ex[t]
    pooled_f = ex[0] * fwd_states[0]
    pooled_b = ex[0] * bwd_states[0]
    for t in range(1, T):
        pooled_f = pooled_f + ex[t] * fwd_states[t]
        pooled_b = pooled_b + ex[t] * bwd_states[t]
    inv = 1.0 / den
    out_ref[:, 0:H] = pooled_f * inv
    out_ref[:, H:2 * H] = pooled_b * inv


def bigru_attn_pool(x_tnd, h0, gru_p, attn_p):
    """x_tnd: (T, N, D) f32, h0: (2, N, H) f32 -> (N, 2H) f32."""
    T, N, D = x_tnd.shape
    H = h0.shape[2]
    Nb, Npad = _pick_block(N)
    if Npad != N:                            # pad sequences (sliced off below)
        x_tnd = jnp.pad(x_tnd, ((0, 0), (0, Npad - N), (0, 0)))
        h0 = jnp.pad(h0, ((0, 0), (0, Npad - N), (0, 0)))

    def rep(ndim):                           # replicated full-array block
        return lambda i: (0,) * ndim

    out = pl.pallas_call(
        _bigru_attn_kernel,
        out_shape=jax.ShapeDtypeStruct((Npad, 2 * H), jnp.float32),
        grid=(Npad // Nb,),
        in_specs=[
            pl.BlockSpec((T, Nb, D), lambda i: (0, i, 0)),    # x (time-major)
            pl.BlockSpec((2, Nb, H), lambda i: (0, i, 0)),    # h0
            pl.BlockSpec((2, D, 3 * H), rep(3)),              # W_ih^T (bf16)
            pl.BlockSpec((2, H, 3 * H), rep(3)),              # W_hh^T (bf16)
            pl.BlockSpec((2, 1, 3 * H), rep(3)),              # b_ih
            pl.BlockSpec((2, 1, 3 * H), rep(3)),              # b_hh
            pl.BlockSpec((H, 2 * H), rep(2)),                 # attn W^T (fwd rows)
            pl.BlockSpec((H, 2 * H), rep(2)),                 # attn W^T (bwd rows)
            pl.BlockSpec((1, 2 * H), rep(2)),                 # attn b
            pl.BlockSpec((1, 2 * H), rep(2)),                 # combine weight row
        ],
        out_specs=pl.BlockSpec((Nb, 2 * H), lambda i: (i, 0)),
        compiler_params=pltpu.CompilerParams(
            dimension_semantics=("parallel",),
            vmem_limit_bytes=48 * 1024 * 1024),   # headroom under v7x 64 MiB
    )(x_tnd, h0, gru_p["wih_t"], gru_p["whh_t"], gru_p["bih"], gru_p["bhh"],
      attn_p["w_fwd_t"], attn_p["w_bwd_t"], attn_p["b"], attn_p["comb_row"])
    return out[:N]


# ---------------------------------------------------------------------------
# Kernel 2: pairwise comparison features
# (subtract | multiply | cosine | euclidean | standard_nn | ntn) -> (BF, 5H+4)
# ---------------------------------------------------------------------------
def _diff_feature_kernel(xa_ref, xr_ref, wstd_r_ref, wstd_a_ref, bstd_ref,
                         w1_ref, b1_ref, w2_ref, b2_ref,
                         wv_r_ref, wv_a_ref, bv_ref, out_ref):
    f32 = jnp.float32
    xa = xa_ref[...]                          # (Rb, 2H) added
    xr = xr_ref[...]                          # (Rb, 2H) removed

    sub = xa - xr
    mul = xa * xr

    dot_ar = jnp.sum(xa * xr, axis=1, keepdims=True)
    na = jnp.sqrt(jnp.sum(xa * xa, axis=1, keepdims=True))
    nr = jnp.sqrt(jnp.sum(xr * xr, axis=1, keepdims=True))
    cos = dot_ar / jnp.maximum(na * nr, 1e-6)          # CosineSimilarity(eps=1e-6)
    # nn.PairwiseDistance(p=2, eps=1e-6) adds eps inside the difference:
    euc = jnp.sqrt(jnp.sum((xa - xr + 1e-6) ** 2, axis=1, keepdims=True))

    # standard_nn_layer on concat([xr, xa]) without materializing the concat
    nn_out = jnp.maximum(
        jnp.dot(xr, wstd_r_ref[...], preferred_element_type=f32)
        + jnp.dot(xa, wstd_a_ref[...], preferred_element_type=f32)
        + bstd_ref[...], 0.0)                           # (Rb, H)

    o1 = jnp.sum((jnp.dot(xr, w1_ref[...], preferred_element_type=f32)
                  + b1_ref[...]) * xa, axis=1, keepdims=True)
    o2 = jnp.sum((jnp.dot(xr, w2_ref[...], preferred_element_type=f32)
                  + b2_ref[...]) * xa, axis=1, keepdims=True)
    v = (jnp.dot(xr, wv_r_ref[...], preferred_element_type=f32)
         + jnp.dot(xa, wv_a_ref[...], preferred_element_type=f32)
         + bv_ref[...])                                 # (Rb, 2)
    ntn = jnp.maximum(jnp.concatenate([o1, o2], axis=1) + v, 0.0)

    out_ref[...] = jnp.concatenate([sub, mul, cos, euc, nn_out, ntn], axis=1)


def diff_features(xa, xr, p):
    BF, H2 = xa.shape
    H = H2 // 2
    K = 5 * H + 4
    Rb, Rpad = _pick_block(BF)
    if Rpad != BF:
        pad = ((0, Rpad - BF), (0, 0))
        xa = jnp.pad(xa, pad)
        xr = jnp.pad(xr, pad)

    def rep():
        return lambda i: (0, 0)

    out = pl.pallas_call(
        _diff_feature_kernel,
        out_shape=jax.ShapeDtypeStruct((Rpad, K), jnp.float32),
        grid=(Rpad // Rb,),
        in_specs=[
            pl.BlockSpec((Rb, 2 * H), lambda i: (i, 0)),
            pl.BlockSpec((Rb, 2 * H), lambda i: (i, 0)),
            pl.BlockSpec((2 * H, H), rep()),            # W_std^T rows for xr
            pl.BlockSpec((2 * H, H), rep()),            # W_std^T rows for xa
            pl.BlockSpec((1, H), rep()),
            pl.BlockSpec((2 * H, 2 * H), rep()),        # W_ntn1^T
            pl.BlockSpec((1, 2 * H), rep()),
            pl.BlockSpec((2 * H, 2 * H), rep()),        # W_ntn2^T
            pl.BlockSpec((1, 2 * H), rep()),
            pl.BlockSpec((2 * H, 2), rep()),            # V^T rows for xr
            pl.BlockSpec((2 * H, 2), rep()),            # V^T rows for xa
            pl.BlockSpec((1, 2), rep()),
        ],
        out_specs=pl.BlockSpec((Rb, K), lambda i: (i, 0)),
        compiler_params=pltpu.CompilerParams(dimension_semantics=("parallel",)),
    )(xa, xr, p["w_std_r"], p["w_std_a"], p["b_std"], p["w1_t"], p["b1"],
      p["w2_t"], p["b2"], p["wv_r"], p["wv_a"], p["bv"])
    return out[:BF]


# ---------------------------------------------------------------------------
# Kernel 3: classification head  sigmoid(fc2(relu(fc1(x))))
# ---------------------------------------------------------------------------
def _fc_head_kernel(x_ref, w1_ref, b1_ref, w2_ref, b2_ref, out_ref):
    h = jnp.maximum(
        jnp.dot(x_ref[...], w1_ref[...], preferred_element_type=jnp.float32)
        + b1_ref[...], 0.0)
    logits = jnp.dot(h, w2_ref[...], preferred_element_type=jnp.float32) + b2_ref[...]
    out_ref[...] = jax.nn.sigmoid(logits)


def fc_head(x_flat, p):
    B, Kin = x_flat.shape
    H2 = p["wfc1_t"].shape[1]
    cls = p["wfc2_t"].shape[1]
    Rb, Rpad = _pick_block(B)
    if Rpad != B:
        x_flat = jnp.pad(x_flat, ((0, Rpad - B), (0, 0)))

    def rep():
        return lambda i: (0, 0)

    out = pl.pallas_call(
        _fc_head_kernel,
        out_shape=jax.ShapeDtypeStruct((Rpad, cls), jnp.float32),
        grid=(Rpad // Rb,),
        in_specs=[
            pl.BlockSpec((Rb, Kin), lambda i: (i, 0)),
            pl.BlockSpec((Kin, H2), rep()),
            pl.BlockSpec((1, H2), rep()),
            pl.BlockSpec((H2, cls), rep()),
            pl.BlockSpec((1, cls), rep()),
        ],
        out_specs=pl.BlockSpec((Rb, cls), lambda i: (i, 0)),
        compiler_params=pltpu.CompilerParams(dimension_semantics=("parallel",)),
    )(x_flat, p["wfc1_t"], p["bfc1"], p["wfc2_t"], p["bfc2"])
    return out[:B]


# ---------------------------------------------------------------------------
# HierachicalRNN.forward
# ---------------------------------------------------------------------------
def hierachical_rnn_forward(params, removed_code, added_code,
                            hid_state_hunk, hid_state_sent, hid_state_word):
    B, F, Hk, L, W = added_code.shape
    H = hid_state_word.shape[2]

    def forward_code(x):
        tokens = x.reshape(B * F * Hk * L, W)
        # Embedding gather done directly in time-major order (W, Nw, E): this
        # avoids transposing the large embedded activation in HBM.
        emb_tm = jnp.take(params["embed"], tokens.T, axis=0)
        sent = bigru_attn_pool(emb_tm, hid_state_word,
                               params["word_gru"], params["word_attn"])
        sent = sent.reshape(B * F * Hk, L, 2 * H)
        hunk = bigru_attn_pool(jnp.transpose(sent, (1, 0, 2)), hid_state_sent,
                               params["sent_gru"], params["sent_attn"])
        hunk = hunk.reshape(B * F, Hk, 2 * H)
        hunks = bigru_attn_pool(jnp.transpose(hunk, (1, 0, 2)), hid_state_hunk,
                                params["hunk_gru"], params["hunk_attn"])
        return hunks                                               # (B*F, 2H)

    xa = forward_code(added_code)
    xr = forward_code(removed_code)

    feat = diff_features(xa, xr, params)                           # (B*F, 5H+4)
    # TODO(synk): nn.Dropout is treated as identity (inference semantics).
    x_flat = feat.reshape(B, F * (5 * H + 4))                      # glue reshape
    out = fc_head(x_flat, params)                                  # (B, cls)
    if out.shape[1] == 1:                                          # .squeeze(1)
        out = jnp.squeeze(out, axis=1)
    return out


# ---------------------------------------------------------------------------
# deterministic parameter construction (shapes mirror the nn.Module __init__)
# GRU / attention matmul weights stored in bf16 (f32 accumulation in-kernel).
# ---------------------------------------------------------------------------
def init_params(key, vocab, E, H, F, cls):
    keys = iter(jax.random.split(key, 64))

    def u(shape, scale):
        return jax.random.uniform(next(keys), shape, jnp.float32, -scale, scale)

    def gru_params(D):
        s = 1.0 / (H ** 0.5)
        return dict(wih_t=u((2, D, 3 * H), s).astype(jnp.bfloat16),
                    whh_t=u((2, H, 3 * H), s).astype(jnp.bfloat16),
                    bih=u((2, 1, 3 * H), s),
                    bhh=u((2, 1, 3 * H), s))

    def attn_params():
        s = 1.0 / ((2 * H) ** 0.5)
        w_t = u((2 * H, 2 * H), s)
        return dict(w_fwd_t=w_t[:H].astype(jnp.bfloat16),     # rows hitting h_fwd
                    w_bwd_t=w_t[H:].astype(jnp.bfloat16),     # rows hitting h_bwd
                    b=u((1, 2 * H), s),
                    comb_row=u((1, 2 * H), 1.0 / (2 * H) ** 0.5))

    Kin = F * (5 * H + 4)
    w_std_t = u((4 * H, H), 1.0 / (4 * H) ** 0.5)              # concat order: [xr, xa]
    wv_t = u((4 * H, 2), 1.0 / (4 * H) ** 0.5)
    return dict(
        embed=jax.random.normal(next(keys), (vocab, E), jnp.float32),
        word_gru=gru_params(E), word_attn=attn_params(),
        sent_gru=gru_params(2 * H), sent_attn=attn_params(),
        hunk_gru=gru_params(2 * H), hunk_attn=attn_params(),
        w_std_r=w_std_t[:2 * H], w_std_a=w_std_t[2 * H:],
        b_std=u((1, H), 1.0 / (4 * H) ** 0.5),
        w1_t=u((2 * H, 2 * H), 1.0 / (2 * H) ** 0.5),
        b1=u((1, 2 * H), 1.0 / (2 * H) ** 0.5),
        w2_t=u((2 * H, 2 * H), 1.0 / (2 * H) ** 0.5),
        b2=u((1, 2 * H), 1.0 / (2 * H) ** 0.5),
        wv_r=wv_t[:2 * H], wv_a=wv_t[2 * H:],
        bv=u((1, 2), 1.0 / (4 * H) ** 0.5),
        wfc1_t=u((Kin, 2 * H), 1.0 / Kin ** 0.5),
        bfc1=u((1, 2 * H), 1.0 / Kin ** 0.5),
        wfc2_t=u((2 * H, cls), 1.0 / (2 * H) ** 0.5),
        bfc2=u((1, cls), 1.0 / (2 * H) ** 0.5),
    )


if __name__ == "__main__":
    # small shapes: batch=2 commits, 2 files, 2 hunks, 2 lines, 4 words/line
    B, F, Hk, L, W = 2, 2, 2, 2, 4
    vocab, E, H, cls = 50, 16, 16, 1

    key = jax.random.PRNGKey(0)
    kp, kr, ka = jax.random.split(key, 3)
    params = init_params(kp, vocab, E, H, F, cls)

    removed_code = jax.random.randint(kr, (B, F, Hk, L, W), 0, vocab)
    added_code = jax.random.randint(ka, (B, F, Hk, L, W), 0, vocab)

    # init_hidden_* equivalents (zeros), batch dims match each RNN level
    hid_state_word = jnp.zeros((2, B * F * Hk * L, H), jnp.float32)
    hid_state_sent = jnp.zeros((2, B * F * Hk, H), jnp.float32)
    hid_state_hunk = jnp.zeros((2, B * F, H), jnp.float32)

    fwd = jax.jit(functools.partial(hierachical_rnn_forward, params))
    out = fwd(removed_code, added_code,
              hid_state_hunk, hid_state_sent, hid_state_word)
    jax.block_until_ready(out)
    assert out.shape == (B,)
    assert bool(jnp.all(jnp.isfinite(out)))
    print("KERNEL_OK")
</pallas_src>

<mosaic_0001>
module attributes {stable_mosaic.version = 11 : i64} {
  func.func @_fc_head_kernel(%arg0: i32, %arg1: memref<8x168xf32, #tpu.memory_space<vmem>>, %arg2: memref<168x32xf32, #tpu.memory_space<vmem>>, %arg3: memref<1x32xf32, #tpu.memory_space<vmem>>, %arg4: memref<32x1xf32, #tpu.memory_space<vmem>>, %arg5: memref<1x1xf32, #tpu.memory_space<vmem>>, %arg6: memref<8x1xf32, #tpu.memory_space<vmem>>) attributes {dimension_semantics = [#tpu.dimension_semantics<parallel>], iteration_bounds = array<i64: 1>, scalar_prefetch = 0 : i64, scratch_operands = 0 : i64, tpu.core_type = #tpu.core_type<tc>, window_params = [{transform_indices = @transform_0, window_bounds = array<i64: 8, 168>}, {pipeline_mode = #tpu.pipeline_mode<synchronous>, transform_indices = @transform_1, window_bounds = array<i64: 168, 32>}, {pipeline_mode = #tpu.pipeline_mode<synchronous>, transform_indices = @transform_2, window_bounds = array<i64: 1, 32>}, {pipeline_mode = #tpu.pipeline_mode<synchronous>, transform_indices = @transform_3, window_bounds = array<i64: 32, 1>}, {pipeline_mode = #tpu.pipeline_mode<synchronous>, transform_indices = @transform_4, window_bounds = array<i64: 1, 1>}, {transform_indices = @transform_5, window_bounds = array<i64: 8, 1>}]} {
    %c0 = arith.constant 0 : index
    %c0_0 = arith.constant 0 : index
    %0 = vector.load %arg1[%c0, %c0_0] : memref<8x168xf32, #tpu.memory_space<vmem>>, vector<8x168xf32>
    %c0_1 = arith.constant 0 : index
    %c0_2 = arith.constant 0 : index
    %1 = vector.load %arg2[%c0_1, %c0_2] : memref<168x32xf32, #tpu.memory_space<vmem>>, vector<168x32xf32>
    %cst = arith.constant dense<0.000000e+00> : vector<8x32xf32>
    %2 = tpu.matmul %0, %1, %cst {dimension_numbers = #tpu.dot_dimension_numbers<[1], [0], [0], [1], [0, 0, 1, 1], [], []>} : vector<8x168xf32>, vector<168x32xf32>, vector<8x32xf32> -> vector<8x32xf32>
    %c0_3 = arith.constant 0 : index
    %c0_4 = arith.constant 0 : index
    %3 = vector.load %arg3[%c0_3, %c0_4] : memref<1x32xf32, #tpu.memory_space<vmem>>, vector<1x32xf32>
    %4 = vector.broadcast %3 : vector<1x32xf32> to vector<8x32xf32>
    %5 = arith.addf %2, %4 : vector<8x32xf32>
    %cst_5 = arith.constant 0.000000e+00 : f32
    %6 = vector.broadcast %cst_5 : f32 to vector<8x32xf32>
    %7 = arith.maximumf %5, %6 : vector<8x32xf32>
    %c0_6 = arith.constant 0 : index
    %c0_7 = arith.constant 0 : index
    %8 = vector.load %arg4[%c0_6, %c0_7] : memref<32x1xf32, #tpu.memory_space<vmem>>, vector<32x1xf32>
    %cst_8 = arith.constant dense<0.000000e+00> : vector<8x1xf32>
    %9 = tpu.matmul %7, %8, %cst_8 {dimension_numbers = #tpu.dot_dimension_numbers<[1], [0], [0], [1], [0, 0, 1, 1], [], []>} : vector<8x32xf32>, vector<32x1xf32>, vector<8x1xf32> -> vector<8x1xf32>
    %c0_9 = arith.constant 0 : index
    %c0_10 = arith.constant 0 : index
    %10 = vector.load %arg5[%c0_9, %c0_10] : memref<1x1xf32, #tpu.memory_space<vmem>>, vector<1x1xf32>
    %11 = vector.broadcast %10 : vector<1x1xf32> to vector<8x1xf32>
    %12 = arith.addf %9, %11 : vector<8x1xf32>
    %13 = arith.negf %12 : vector<8x1xf32>
    %14 = math.exp %13 : vector<8x1xf32>
    %cst_11 = arith.constant 1.000000e+00 : f32
    %15 = vector.broadcast %cst_11 : f32 to vector<8x1xf32>
    %16 = arith.addf %15, %14 : vector<8x1xf32>
    %17 = arith.divf %15, %16 : vector<8x1xf32>
    %c0_12 = arith.constant 0 : index
    %c0_13 = arith.constant 0 : index
    %18 = vector.load %arg6[%c0_12, %c0_13] : memref<8x1xf32, #tpu.memory_space<vmem>>, vector<8x1xf32>
    tpu.vector_store %arg6[%c0_12, %c0_13], %17 {strides = array<i32>} : memref<8x1xf32, #tpu.memory_space<vmem>>, vector<8x1xf32>,
    return
  }
  func.func @transform_0(%arg0: i32) -> (i32, i32) {
    %c0_i32 = arith.constant 0 : i32
    %c0_i32_0 = arith.constant 0 : i32
    return %arg0, %c0_i32 : i32, i32
  }
  func.func @transform_1(%arg0: i32) -> (i32, i32) {
    %c0_i32 = arith.constant 0 : i32
    %c0_i32_0 = arith.constant 0 : i32
    %c0_i32_1 = arith.constant 0 : i32
    return %c0_i32, %c0_i32_0 : i32, i32
  }
  func.func @transform_2(%arg0: i32) -> (i32, i32) {
    %c0_i32 = arith.constant 0 : i32
    %c0_i32_0 = arith.constant 0 : i32
    %c0_i32_1 = arith.constant 0 : i32
    return %c0_i32, %c0_i32_0 : i32, i32
  }
  func.func @transform_3(%arg0: i32) -> (i32, i32) {
    %c0_i32 = arith.constant 0 : i32
    %c0_i32_0 = arith.constant 0 : i32
    %c0_i32_1 = arith.constant 0 : i32
    return %c0_i32, %c0_i32_0 : i32, i32
  }
  func.func @transform_4(%arg0: i32) -> (i32, i32) {
    %c0_i32 = arith.constant 0 : i32
    %c0_i32_0 = arith.constant 0 : i32
    %c0_i32_1 = arith.constant 0 : i32
    return %c0_i32, %c0_i32_0 : i32, i32
  }
  func.func @transform_5(%arg0: i32) -> (i32, i32) {
    %c0_i32 = arith.constant 0 : i32
    %c0_i32_0 = arith.constant 0 : i32
    return %arg0, %c0_i32 : i32, i32
  }
}

module attributes {stable_mosaic.version = 11 : i64} {
  func.func @_bigru_attn_kernel(%arg0: i32, %arg1: memref<4x8x16xf32, #tpu.memory_space<vmem>>, %arg2: memref<2x8x16xf32, #tpu.memory_space<vmem>>, %arg3: memref<2x16x48xbf16, #tpu.memory_space<vmem>>, %arg4: memref<2x16x48xbf16, #tpu.memory_space<vmem>>, %arg5: memref<2x1x48xf32, #tpu.memory_space<vmem>>, %arg6: memref<2x1x48xf32, #tpu.memory_space<vmem>>, %arg7: memref<16x32xbf16, #tpu.memory_space<vmem>>, %arg8: memref<16x32xbf16, #tpu.memory_space<vmem>>, %arg9: memref<1x32xf32, #tpu.memory_space<vmem>>, %arg10: memref<1x32xf32, #tpu.memory_space<vmem>>, %arg11: memref<8x32xf32, #tpu.memory_space<vmem>>) attributes {dimension_semantics = [#tpu.dimension_semantics<parallel>], iteration_bounds = array<i64: 2>, scalar_prefetch = 0 : i64, scratch_operands = 0 : i64, tpu.core_type = #tpu.core_type<tc>, window_params = [{transform_indices = @transform_0, window_bounds = array<i64: 4, 8, 16>}, {transform_indices = @transform_1, window_bounds = array<i64: 2, 8, 16>}, {pipeline_mode = #tpu.pipeline_mode<synchronous>, transform_indices = @transform_2, window_bounds = array<i64: 2, 16, 48>}, {pipeline_mode = #tpu.pipeline_mode<synchronous>, transform_indices = @transform_3, window_bounds = array<i64: 2, 16, 48>}, {pipeline_mode = #tpu.pipeline_mode<synchronous>, transform_indices = @transform_4, window_bounds = array<i64: 2, 1, 48>}, {pipeline_mode = #tpu.pipeline_mode<synchronous>, transform_indices = @transform_5, window_bounds = array<i64: 2, 1, 48>}, {pipeline_mode = #tpu.pipeline_mode<synchronous>, transform_indices = @transform_6, window_bounds = array<i64: 16, 32>}, {pipeline_mode = #tpu.pipeline_mode<synchronous>, transform_indices = @transform_7, window_bounds = array<i64: 16, 32>}, {pipeline_mode = #tpu.pipeline_mode<synchronous>, transform_indices = @transform_8, window_bounds = array<i64: 1, 32>}, {pipeline_mode = #tpu.pipeline_mode<synchronous>, transform_indices = @transform_9, window_bounds = array<i64: 1, 32>}, {transform_indices = @transform_10, window_bounds = array<i64: 8, 32>}]} {
    %c0 = arith.constant 0 : index
    %c0_0 = arith.constant 0 : index
    %c0_1 = arith.constant 0 : index
    %0 = vector.load %arg1[%c0, %c0_0, %c0_1] : memref<4x8x16xf32, #tpu.memory_space<vmem>>, vector<4x8x16xf32>
    %1 = vector.shape_cast %0 : vector<4x8x16xf32> to vector<32x16xf32>
    %2 = arith.truncf %1 : vector<32x16xf32> to vector<32x16xbf16>
    %c0_2 = arith.constant 0 : index
    %c0_3 = arith.constant 0 : index
    %c0_4 = arith.constant 0 : index
    %3 = vector.load %arg3[%c0_2, %c0_3, %c0_4] : memref<2x16x48xbf16, #tpu.memory_space<vmem>>, vector<1x16x48xbf16>
    %4 = vector.shape_cast %3 : vector<1x16x48xbf16> to vector<16x48xbf16>
    %cst = arith.constant dense<0.000000e+00> : vector<32x48xf32>
    %5 = tpu.matmul %2, %4, %cst {dimension_numbers = #tpu.dot_dimension_numbers<[1], [0], [0], [1], [0, 0, 1, 1], [], []>} : vector<32x16xbf16>, vector<16x48xbf16>, vector<32x48xf32> -> vector<32x48xf32>
    %c0_5 = arith.constant 0 : index
    %c0_6 = arith.constant 0 : index
    %c0_7 = arith.constant 0 : index
    %6 = vector.load %arg5[%c0_5, %c0_6, %c0_7] : memref<2x1x48xf32, #tpu.memory_space<vmem>>, vector<1x1x48xf32>
    %7 = vector.shape_cast %6 : vector<1x1x48xf32> to vector<1x48xf32>
    %8 = vector.broadcast %7 : vector<1x48xf32> to vector<32x48xf32>
    %9 = arith.addf %5, %8 : vector<32x48xf32>
    %c1 = arith.constant 1 : index
    %c0_8 = arith.constant 0 : index
    %c0_9 = arith.constant 0 : index
    %10 = vector.load %arg3[%c1, %c0_8, %c0_9] : memref<2x16x48xbf16, #tpu.memory_space<vmem>>, vector<1x16x48xbf16>
    %11 = vector.shape_cast %10 : vector<1x16x48xbf16> to vector<16x48xbf16>
    %cst_10 = arith.constant dense<0.000000e+00> : vector<32x48xf32>
    %12 = tpu.matmul %2, %11, %cst_10 {dimension_numbers = #tpu.dot_dimension_numbers<[1], [0], [0], [1], [0, 0, 1, 1], [], []>} : vector<32x16xbf16>, vector<16x48xbf16>, vector<32x48xf32> -> vector<32x48xf32>
    %c1_11 = arith.constant 1 : index
    %c0_12 = arith.constant 0 : index
    %c0_13 = arith.constant 0 : index
    %13 = vector.load %arg5[%c1_11, %c0_12, %c0_13] : memref<2x1x48xf32, #tpu.memory_space<vmem>>, vector<1x1x48xf32>
    %14 = vector.shape_cast %13 : vector<1x1x48xf32> to vector<1x48xf32>
    %15 = vector.broadcast %14 : vector<1x48xf32> to vector<32x48xf32>
    %16 = arith.addf %12, %15 : vector<32x48xf32>
    %c0_14 = arith.constant 0 : index
    %c0_15 = arith.constant 0 : index
    %c0_16 = arith.constant 0 : index
    %17 = vector.load %arg4[%c0_14, %c0_15, %c0_16] : memref<2x16x48xbf16, #tpu.memory_space<vmem>>, vector<1x16x48xbf16>
    %18 = vector.shape_cast %17 : vector<1x16x48xbf16> to vector<16x48xbf16>
    %c1_17 = arith.constant 1 : index
    %c0_18 = arith.constant 0 : index
    %c0_19 = arith.constant 0 : index
    %19 = vector.load %arg4[%c1_17, %c0_18, %c0_19] : memref<2x16x48xbf16, #tpu.memory_space<vmem>>, vector<1x16x48xbf16>
    %20 = vector.shape_cast %19 : vector<1x16x48xbf16> to vector<16x48xbf16>
    %c0_20 = arith.constant 0 : index
    %c0_21 = arith.constant 0 : index
    %c0_22 = arith.constant 0 : index
    %21 = vector.load %arg6[%c0_20, %c0_21, %c0_22] : memref<2x1x48xf32, #tpu.memory_space<vmem>>, vector<1x1x48xf32>
    %22 = vector.shape_cast %21 : vector<1x1x48xf32> to vector<1x48xf32>
    %c1_23 = arith.constant 1 : index
    %c0_24 = arith.constant 0 : index
    %c0_25 = arith.constant 0 : index
    %23 = vector.load %arg6[%c1_23, %c0_24, %c0_25] : memref<2x1x48xf32, #tpu.memory_space<vmem>>, vector<1x1x48xf32>
    %24 = vector.shape_cast %23 : vector<1x1x48xf32> to vector<1x48xf32>
    %c0_26 = arith.constant 0 : index
    %c0_27 = arith.constant 0 : index
    %c0_28 = arith.constant 0 : index
    %25 = vector.load %arg2[%c0_26, %c0_27, %c0_28] : memref<2x8x16xf32, #tpu.memory_space<vmem>>, vector<1x8x16xf32>
    %26 = vector.shape_cast %25 : vector<1x8x16xf32> to vector<8x16xf32>
    %c1_29 = arith.constant 1 : index
    %c0_30 = arith.constant 0 : index
    %c0_31 = arith.constant 0 : index
    %27 = vector.load %arg2[%c1_29, %c0_30, %c0_31] : memref<2x8x16xf32, #tpu.memory_space<vmem>>, vector<1x8x16xf32>
    %28 = vector.shape_cast %27 : vector<1x8x16xf32> to vector<8x16xf32>
    %29 = vector.extract_strided_slice %9 {offsets = [0, 0], sizes = [8, 48], strides = [1, 1]} : vector<32x48xf32> to vector<8x48xf32>
    %30 = arith.truncf %26 : vector<8x16xf32> to vector<8x16xbf16>
    %cst_32 = arith.constant dense<0.000000e+00> : vector<8x48xf32>
    %31 = tpu.matmul %30, %18, %cst_32 {dimension_numbers = #tpu.dot_dimension_numbers<[1], [0], [0], [1], [0, 0, 1, 1], [], []>} : vector<8x16xbf16>, vector<16x48xbf16>, vector<8x48xf32> -> vector<8x48xf32>
    %32 = vector.broadcast %22 : vector<1x48xf32> to vector<8x48xf32>
    %33 = arith.addf %31, %32 : vector<8x48xf32>
    %34 = vector.extract_strided_slice %29 {offsets = [0, 0], sizes = [8, 16], strides = [1, 1]} : vector<8x48xf32> to vector<8x16xf32>
    %35 = vector.extract_strided_slice %33 {offsets = [0, 0], sizes = [8, 16], strides = [1, 1]} : vector<8x48xf32> to vector<8x16xf32>
    %36 = arith.addf %34, %35 : vector<8x16xf32>
    %37 = arith.negf %36 : vector<8x16xf32>
    %38 = math.exp %37 : vector<8x16xf32>
    %cst_33 = arith.constant 1.000000e+00 : f32
    %39 = vector.broadcast %cst_33 : f32 to vector<8x16xf32>
    %40 = arith.addf %39, %38 : vector<8x16xf32>
    %41 = arith.divf %39, %40 : vector<8x16xf32>
    %42 = vector.extract_strided_slice %29 {offsets = [0, 16], sizes = [8, 16], strides = [1, 1]} : vector<8x48xf32> to vector<8x16xf32>
    %43 = vector.extract_strided_slice %33 {offsets = [0, 16], sizes = [8, 16], strides = [1, 1]} : vector<8x48xf32> to vector<8x16xf32>
    %44 = arith.addf %42, %43 : vector<8x16xf32>
    %45 = arith.negf %44 : vector<8x16xf32>
    %46 = math.exp %45 : vector<8x16xf32>
    %cst_34 = arith.constant 1.000000e+00 : f32
    %47 = vector.broadcast %cst_34 : f32 to vector<8x16xf32>
    %48 = arith.addf %47, %46 : vector<8x16xf32>
    %49 = arith.divf %47, %48 : vector<8x16xf32>
    %50 = vector.extract_strided_slice %29 {offsets = [0, 32], sizes = [8, 16], strides = [1, 1]} : vector<8x48xf32> to vector<8x16xf32>
    %51 = vector.extract_strided_slice %33 {offsets = [0, 32], sizes = [8, 16], strides = [1, 1]} : vector<8x48xf32> to vector<8x16xf32>
    %52 = arith.mulf %41, %51 : vector<8x16xf32>
    %53 = arith.addf %50, %52 : vector<8x16xf32>
    %54 = math.tanh %53 : vector<8x16xf32>
    %cst_35 = arith.constant 1.000000e+00 : f32
    %55 = vector.broadcast %cst_35 : f32 to vector<8x16xf32>
    %56 = arith.subf %55, %49 : vector<8x16xf32>
    %57 = arith.mulf %56, %54 : vector<8x16xf32>
    %58 = arith.mulf %49, %26 : vector<8x16xf32>
    %59 = arith.addf %57, %58 : vector<8x16xf32>
    %60 = vector.extract_strided_slice %16 {offsets = [24, 0], sizes = [8, 48], strides = [1, 1]} : vector<32x48xf32> to vector<8x48xf32>
    %61 = arith.truncf %28 : vector<8x16xf32> to vector<8x16xbf16>
    %cst_36 = arith.constant dense<0.000000e+00> : vector<8x48xf32>
    %62 = tpu.matmul %61, %20, %cst_36 {dimension_numbers = #tpu.dot_dimension_numbers<[1], [0], [0], [1], [0, 0, 1, 1], [], []>} : vector<8x16xbf16>, vector<16x48xbf16>, vector<8x48xf32> -> vector<8x48xf32>
    %63 = vector.broadcast %24 : vector<1x48xf32> to vector<8x48xf32>
    %64 = arith.addf %62, %63 : vector<8x48xf32>
    %65 = vector.extract_strided_slice %60 {offsets = [0, 0], sizes = [8, 16], strides = [1, 1]} : vector<8x48xf32> to vector<8x16xf32>
    %66 = vector.extract_strided_slice %64 {offsets = [0, 0], sizes = [8, 16], strides = [1, 1]} : vector<8x48xf32> to vector<8x16xf32>
    %67 = arith.addf %65, %66 : vector<8x16xf32>
    %68 = arith.negf %67 : vector<8x16xf32>
    %69 = math.exp %68 : vector<8x16xf32>
    %cst_37 = arith.constant 1.000000e+00 : f32
    %70 = vector.broadcast %cst_37 : f32 to vector<8x16xf32>
    %71 = arith.addf %70, %69 : vector<8x16xf32>
    %72 = arith.divf %70, %71 : vector<8x16xf32>
    %73 = vector.extract_strided_slice %60 {offsets = [0, 16], sizes = [8, 16], strides = [1, 1]} : vector<8x48xf32> to vector<8x16xf32>
    %74 = vector.extract_strided_slice %64 {offsets = [0, 16], sizes = [8, 16], strides = [1, 1]} : vector<8x48xf32> to vector<8x16xf32>
    %75 = arith.addf %73, %74 : vector<8x16xf32>
    %76 = arith.negf %75 : vector<8x16xf32>
    %77 = math.exp %76 : vector<8x16xf32>
    %cst_38 = arith.constant 1.000000e+00 : f32
    %78 = vector.broadcast %cst_38 : f32 to vector<8x16xf32>
    %79 = arith.addf %78, %77 : vector<8x16xf32>
    %80 = arith.divf %78, %79 : vector<8x16xf32>
    %81 = vector.extract_strided_slice %60 {offsets = [0, 32], sizes = [8, 16], strides = [1, 1]} : vector<8x48xf32> to vector<8x16xf32>
    %82 = vector.extract_strided_slice %64 {offsets = [0, 32], sizes = [8, 16], strides = [1, 1]} : vector<8x48xf32> to vector<8x16xf32>
    %83 = arith.mulf %72, %82 : vector<8x16xf32>
    %84 = arith.addf %81, %83 : vector<8x16xf32>
    %85 = math.tanh %84 : vector<8x16xf32>
    %cst_39 = arith.constant 1.000000e+00 : f32
    %86 = vector.broadcast %cst_39 : f32 to vector<8x16xf32>
    %87 = arith.subf %86, %80 : vector<8x16xf32>
    %88 = arith.mulf %87, %85 : vector<8x16xf32>
    %89 = arith.mulf %80, %28 : vector<8x16xf32>
    %90 = arith.addf %88, %89 : vector<8x16xf32>
    %91 = vector.extract_strided_slice %9 {offsets = [8, 0], sizes = [8, 48], strides = [1, 1]} : vector<32x48xf32> to vector<8x48xf32>
    %92 = arith.truncf %59 : vector<8x16xf32> to vector<8x16xbf16>
    %cst_40 = arith.constant dense<0.000000e+00> : vector<8x48xf32>
    %93 = tpu.matmul %92, %18, %cst_40 {dimension_numbers = #tpu.dot_dimension_numbers<[1], [0], [0], [1], [0, 0, 1, 1], [], []>} : vector<8x16xbf16>, vector<16x48xbf16>, vector<8x48xf32> -> vector<8x48xf32>
    %94 = vector.broadcast %22 : vector<1x48xf32> to vector<8x48xf32>
    %95 = arith.addf %93, %94 : vector<8x48xf32>
    %96 = vector.extract_strided_slice %91 {offsets = [0, 0], sizes = [8, 16], strides = [1, 1]} : vector<8x48xf32> to vector<8x16xf32>
    %97 = vector.extract_strided_slice %95 {offsets = [0, 0], sizes = [8, 16], strides = [1, 1]} : vector<8x48xf32> to vector<8x16xf32>
    %98 = arith.addf %96, %97 : vector<8x16xf32>
    %99 = arith.negf %98 : vector<8x16xf32>
    %100 = math.exp %99 : vector<8x16xf32>
    %cst_41 = arith.constant 1.000000e+00 : f32
    %101 = vector.broadcast %cst_41 : f32 to vector<8x16xf32>
    %102 = arith.addf %101, %100 : vector<8x16xf32>
    %103 = arith.divf %101, %102 : vector<8x16xf32>
    %104 = vector.extract_strided_slice %91 {offsets = [0, 16], sizes = [8, 16], strides = [1, 1]} : vector<8x48xf32> to vector<8x16xf32>
    %105 = vector.extract_strided_slice %95 {offsets = [0, 16], sizes = [8, 16], strides = [1, 1]} : vector<8x48xf32> to vector<8x16xf32>
    %106 = arith.addf %104, %105 : vector<8x16xf32>
    %107 = arith.negf %106 : vector<8x16xf32>
    %108 = math.exp %107 : vector<8x16xf32>
    %cst_42 = arith.constant 1.000000e+00 : f32
    %109 = vector.broadcast %cst_42 : f32 to vector<8x16xf32>
    %110 = arith.addf %109, %108 : vector<8x16xf32>
    %111 = arith.divf %109, %110 : vector<8x16xf32>
    %112 = vector.extract_strided_slice %91 {offsets = [0, 32], sizes = [8, 16], strides = [1, 1]} : vector<8x48xf32> to vector<8x16xf32>
    %113 = vector.extract_strided_slice %95 {offsets = [0, 32], sizes = [8, 16], strides = [1, 1]} : vector<8x48xf32> to vector<8x16xf32>
    %114 = arith.mulf %103, %113 : vector<8x16xf32>
    %115 = arith.addf %112, %114 : vector<8x16xf32>
    %116 = math.tanh %115 : vector<8x16xf32>
    %cst_43 = arith.constant 1.000000e+00 : f32
    %117 = vector.broadcast %cst_43 : f32 to vector<8x16xf32>
    %118 = arith.subf %117, %111 : vector<8x16xf32>
    %119 = arith.mulf %118, %116 : vector<8x16xf32>
    %120 = arith.mulf %111, %59 : vector<8x16xf32>
    %121 = arith.addf %119, %120 : vector<8x16xf32>
    %122 = vector.extract_strided_slice %16 {offsets = [16, 0], sizes = [8, 48], strides = [1, 1]} : vector<32x48xf32> to vector<8x48xf32>
    %123 = arith.truncf %90 : vector<8x16xf32> to vector<8x16xbf16>
    %cst_44 = arith.constant dense<0.000000e+00> : vector<8x48xf32>
    %124 = tpu.matmul %123, %20, %cst_44 {dimension_numbers = #tpu.dot_dimension_numbers<[1], [0], [0], [1], [0, 0, 1, 1], [], []>} : vector<8x16xbf16>, vector<16x48xbf16>, vector<8x48xf32> -> vector<8x48xf32>
    %125 = vector.broadcast %24 : vector<1x48xf32> to vector<8x48xf32>
    %126 = arith.addf %124, %125 : vector<8x48xf32>
    %127 = vector.extract_strided_slice %122 {offsets = [0, 0], sizes = [8, 16], strides = [1, 1]} : vector<8x48xf32> to vector<8x16xf32>
    %128 = vector.extract_strided_slice %126 {offsets = [0, 0], sizes = [8, 16], strides = [1, 1]} : vector<8x48xf32> to vector<8x16xf32>
    %129 = arith.addf %127, %128 : vector<8x16xf32>
    %130 = arith.negf %129 : vector<8x16xf32>
    %131 = math.exp %130 : vector<8x16xf32>
    %cst_45 = arith.constant 1.000000e+00 : f32
    %132 = vector.broadcast %cst_45 : f32 to vector<8x16xf32>
    %133 = arith.addf %132, %131 : vector<8x16xf32>
    %134 = arith.divf %132, %133 : vector<8x16xf32>
    %135 = vector.extract_strided_slice %122 {offsets = [0, 16], sizes = [8, 16], strides = [1, 1]} : vector<8x48xf32> to vector<8x16xf32>
    %136 = vector.extract_strided_slice %126 {offsets = [0, 16], sizes = [8, 16], strides = [1, 1]} : vector<8x48xf32> to vector<8x16xf32>
    %137 = arith.addf %135, %136 : vector<8x16xf32>
    %138 = arith.negf %137 : vector<8x16xf32>
    %139 = math.exp %138 : vector<8x16xf32>
    %cst_46 = arith.constant 1.000000e+00 : f32
    %140 = vector.broadcast %cst_46 : f32 to vector<8x16xf32>
    %141 = arith.addf %140, %139 : vector<8x16xf32>
    %142 = arith.divf %140, %141 : vector<8x16xf32>
    %143 = vector.extract_strided_slice %122 {offsets = [0, 32], sizes = [8, 16], strides = [1, 1]} : vector<8x48xf32> to vector<8x16xf32>
    %144 = vector.extract_strided_slice %126 {offsets = [0, 32], sizes = [8, 16], strides = [1, 1]} : vector<8x48xf32> to vector<8x16xf32>
    %145 = arith.mulf %134, %144 : vector<8x16xf32>
    %146 = arith.addf %143, %145 : vector<8x16xf32>
    %147 = math.tanh %146 : vector<8x16xf32>
    %cst_47 = arith.constant 1.000000e+00 : f32
    %148 = vector.broadcast %cst_47 : f32 to vector<8x16xf32>
    %149 = arith.subf %148, %142 : vector<8x16xf32>
    %150 = arith.mulf %149, %147 : vector<8x16xf32>
    %151 = arith.mulf %142, %90 : vector<8x16xf32>
    %152 = arith.addf %150, %151 : vector<8x16xf32>
    %153 = vector.extract_strided_slice %9 {offsets = [16, 0], sizes = [8, 48], strides = [1, 1]} : vector<32x48xf32> to vector<8x48xf32>
    %154 = arith.truncf %121 : vector<8x16xf32> to vector<8x16xbf16>
    %cst_48 = arith.constant dense<0.000000e+00> : vector<8x48xf32>
    %155 = tpu.matmul %154, %18, %cst_48 {dimension_numbers = #tpu.dot_dimension_numbers<[1], [0], [0], [1], [0, 0, 1, 1], [], []>} : vector<8x16xbf16>, vector<16x48xbf16>, vector<8x48xf32> -> vector<8x48xf32>
    %156 = vector.broadcast %22 : vector<1x48xf32> to vector<8x48xf32>
    %157 = arith.addf %155, %156 : vector<8x48xf32>
    %158 = vector.extract_strided_slice %153 {offsets = [0, 0], sizes = [8, 16], strides = [1, 1]} : vector<8x48xf32> to vector<8x16xf32>
    %159 = vector.extract_strided_slice %157 {offsets = [0, 0], sizes = [8, 16], strides = [1, 1]} : vector<8x48xf32> to vector<8x16xf32>
    %160 = arith.addf %158, %159 : vector<8x16xf32>
    %161 = arith.negf %160 : vector<8x16xf32>
    %162 = math.exp %161 : vector<8x16xf32>
    %cst_49 = arith.constant 1.000000e+00 : f32
    %163 = vector.broadcast %cst_49 : f32 to vector<8x16xf32>
    %164 = arith.addf %163, %162 : vector<8x16xf32>
    %165 = arith.divf %163, %164 : vector<8x16xf32>
    %166 = vector.extract_strided_slice %153 {offsets = [0, 16], sizes = [8, 16], strides = [1, 1]} : vector<8x48xf32> to vector<8x16xf32>
    %167 = vector.extract_strided_slice %157 {offsets = [0, 16], sizes = [8, 16], strides = [1, 1]} : vector<8x48xf32> to vector<8x16xf32>
    %168 = arith.addf %166, %167 : vector<8x16xf32>
    %169 = arith.negf %168 : vector<8x16xf32>
    %170 = math.exp %169 : vector<8x16xf32>
    %cst_50 = arith.constant 1.000000e+00 : f32
    %171 = vector.broadcast %cst_50 : f32 to vector<8x16xf32>
    %172 = arith.addf %171, %170 : vector<8x16xf32>
    %173 = arith.divf %171, %172 : vector<8x16xf32>
    %174 = vector.extract_strided_slice %153 {offsets = [0, 32], sizes = [8, 16], strides = [1, 1]} : vector<8x48xf32> to vector<8x16xf32>
    %175 = vector.extract_strided_slice %157 {offsets = [0, 32], sizes = [8, 16], strides = [1, 1]} : vector<8x48xf32> to vector<8x16xf32>
    %176 = arith.mulf %165, %175 : vector<8x16xf32>
    %177 = arith.addf %174, %176 : vector<8x16xf32>
    %178 = math.tanh %177 : vector<8x16xf32>
    %cst_51 = arith.constant 1.000000e+00 : f32
    %179 = vector.broadcast %cst_51 : f32 to vector<8x16xf32>
    %180 = arith.subf %179, %173 : vector<8x16xf32>
    %181 = arith.mulf %180, %178 : vector<8x16xf32>
    %182 = arith.mulf %173, %121 : vector<8x16xf32>
    %183 = arith.addf %181, %182 : vector<8x16xf32>
    %184 = vector.extract_strided_slice %16 {offsets = [8, 0], sizes = [8, 48], strides = [1, 1]} : vector<32x48xf32> to vector<8x48xf32>
    %185 = arith.truncf %152 : vector<8x16xf32> to vector<8x16xbf16>
    %cst_52 = arith.constant dense<0.000000e+00> : vector<8x48xf32>
    %186 = tpu.matmul %185, %20, %cst_52 {dimension_numbers = #tpu.dot_dimension_numbers<[1], [0], [0], [1], [0, 0, 1, 1], [], []>} : vector<8x16xbf16>, vector<16x48xbf16>, vector<8x48xf32> -> vector<8x48xf32>
    %187 = vector.broadcast %24 : vector<1x48xf32> to vector<8x48xf32>
    %188 = arith.addf %186, %187 : vector<8x48xf32>
    %189 = vector.extract_strided_slice %184 {offsets = [0, 0], sizes = [8, 16], strides = [1, 1]} : vector<8x48xf32> to vector<8x16xf32>
    %190 = vector.extract_strided_slice %188 {offsets = [0, 0], sizes = [8, 16], strides = [1, 1]} : vector<8x48xf32> to vector<8x16xf32>
    %191 = arith.addf %189, %190 : vector<8x16xf32>
    %192 = arith.negf %191 : vector<8x16xf32>
    %193 = math.exp %192 : vector<8x16xf32>
    %cst_53 = arith.constant 1.000000e+00 : f32
    %194 = vector.broadcast %cst_53 : f32 to vector<8x16xf32>
    %195 = arith.addf %194, %193 : vector<8x16xf32>
    %196 = arith.divf %194, %195 : vector<8x16xf32>
    %197 = vector.extract_strided_slice %184 {offsets = [0, 16], sizes = [8, 16], strides = [1, 1]} : vector<8x48xf32> to vector<8x16xf32>
    %198 = vector.extract_strided_slice %188 {offsets = [0, 16], sizes = [8, 16], strides = [1, 1]} : vector<8x48xf32> to vector<8x16xf32>
    %199 = arith.addf %197, %198 : vector<8x16xf32>
    %200 = arith.negf %199 : vector<8x16xf32>
    %201 = math.exp %200 : vector<8x16xf32>
    %cst_54 = arith.constant 1.000000e+00 : f32
    %202 = vector.broadcast %cst_54 : f32 to vector<8x16xf32>
    %203 = arith.addf %202, %201 : vector<8x16xf32>
    %204 = arith.divf %202, %203 : vector<8x16xf32>
    %205 = vector.extract_strided_slice %184 {offsets = [0, 32], sizes = [8, 16], strides = [1, 1]} : vector<8x48xf32> to vector<8x16xf32>
    %206 = vector.extract_strided_slice %188 {offsets = [0, 32], sizes = [8, 16], strides = [1, 1]} : vector<8x48xf32> to vector<8x16xf32>
    %207 = arith.mulf %196, %206 : vector<8x16xf32>
    %208 = arith.addf %205, %207 : vector<8x16xf32>
    %209 = math.tanh %208 : vector<8x16xf32>
    %cst_55 = arith.constant 1.000000e+00 : f32
    %210 = vector.broadcast %cst_55 : f32 to vector<8x16xf32>
    %211 = arith.subf %210, %204 : vector<8x16xf32>
    %212 = arith.mulf %211, %209 : vector<8x16xf32>
    %213 = arith.mulf %204, %152 : vector<8x16xf32>
    %214 = arith.addf %212, %213 : vector<8x16xf32>
    %215 = vector.extract_strided_slice %9 {offsets = [24, 0], sizes = [8, 48], strides = [1, 1]} : vector<32x48xf32> to vector<8x48xf32>
    %216 = arith.truncf %183 : vector<8x16xf32> to vector<8x16xbf16>
    %cst_56 = arith.constant dense<0.000000e+00> : vector<8x48xf32>
    %217 = tpu.matmul %216, %18, %cst_56 {dimension_numbers = #tpu.dot_dimension_numbers<[1], [0], [0], [1], [0, 0, 1, 1], [], []>} : vector<8x16xbf16>, vector<16x48xbf16>, vector<8x48xf32> -> vector<8x48xf32>
    %218 = vector.broadcast %22 : vector<1x48xf32> to vector<8x48xf32>
    %219 = arith.addf %217, %218 : vector<8x48xf32>
    %220 = vector.extract_strided_slice %215 {offsets = [0, 0], sizes = [8, 16], strides = [1, 1]} : vector<8x48xf32> to vector<8x16xf32>
    %221 = vector.extract_strided_slice %219 {offsets = [0, 0], sizes = [8, 16], strides = [1, 1]} : vector<8x48xf32> to vector<8x16xf32>
    %222 = arith.addf %220, %221 : vector<8x16xf32>
    %223 = arith.negf %222 : vector<8x16xf32>
    %224 = math.exp %223 : vector<8x16xf32>
    %cst_57 = arith.constant 1.000000e+00 : f32
    %225 = vector.broadcast %cst_57 : f32 to vector<8x16xf32>
    %226 = arith.addf %225, %224 : vector<8x16xf32>
    %227 = arith.divf %225, %226 : vector<8x16xf32>
    %228 = vector.extract_strided_slice %215 {offsets = [0, 16], sizes = [8, 16], strides = [1, 1]} : vector<8x48xf32> to vector<8x16xf32>
    %229 = vector.extract_strided_slice %219 {offsets = [0, 16], sizes = [8, 16], strides = [1, 1]} : vector<8x48xf32> to vector<8x16xf32>
    %230 = arith.addf %228, %229 : vector<8x16xf32>
    %231 = arith.negf %230 : vector<8x16xf32>
    %232 = math.exp %231 : vector<8x16xf32>
    %cst_58 = arith.constant 1.000000e+00 : f32
    %233 = vector.broadcast %cst_58 : f32 to vector<8x16xf32>
    %234 = arith.addf %233, %232 : vector<8x16xf32>
    %235 = arith.divf %233, %234 : vector<8x16xf32>
    %236 = vector.extract_strided_slice %215 {offsets = [0, 32], sizes = [8, 16], strides = [1, 1]} : vector<8x48xf32> to vector<8x16xf32>
    %237 = vector.extract_strided_slice %219 {offsets = [0, 32], sizes = [8, 16], strides = [1, 1]} : vector<8x48xf32> to vector<8x16xf32>
    %238 = arith.mulf %227, %237 : vector<8x16xf32>
    %239 = arith.addf %236, %238 : vector<8x16xf32>
    %240 = math.tanh %239 : vector<8x16xf32>
    %cst_59 = arith.constant 1.000000e+00 : f32
    %241 = vector.broadcast %cst_59 : f32 to vector<8x16xf32>
    %242 = arith.subf %241, %235 : vector<8x16xf32>
    %243 = arith.mulf %242, %240 : vector<8x16xf32>
    %244 = arith.mulf %235, %183 : vector<8x16xf32>
    %245 = arith.addf %243, %244 : vector<8x16xf32>
    %246 = vector.extract_strided_slice %16 {offsets = [0, 0], sizes = [8, 48], strides = [1, 1]} : vector<32x48xf32> to vector<8x48xf32>
    %247 = arith.truncf %214 : vector<8x16xf32> to vector<8x16xbf16>
    %cst_60 = arith.constant dense<0.000000e+00> : vector<8x48xf32>
    %248 = tpu.matmul %247, %20, %cst_60 {dimension_numbers = #tpu.dot_dimension_numbers<[1], [0], [0], [1], [0, 0, 1, 1], [], []>} : vector<8x16xbf16>, vector<16x48xbf16>, vector<8x48xf32> -> vector<8x48xf32>
    %249 = vector.broadcast %24 : vector<1x48xf32> to vector<8x48xf32>
    %250 = arith.addf %248, %249 : vector<8x48xf32>
    %251 = vector.extract_strided_slice %246 {offsets = [0, 0], sizes = [8, 16], strides = [1, 1]} : vector<8x48xf32> to vector<8x16xf32>
    %252 = vector.extract_strided_slice %250 {offsets = [0, 0], sizes = [8, 16], strides = [1, 1]} : vector<8x48xf32> to vector<8x16xf32>
    %253 = arith.addf %251, %252 : vector<8x16xf32>
    %254 = arith.negf %253 : vector<8x16xf32>
    %255 = math.exp %254 : vector<8x16xf32>
    %cst_61 = arith.constant 1.000000e+00 : f32
    %256 = vector.broadcast %cst_61 : f32 to vector<8x16xf32>
    %257 = arith.addf %256, %255 : vector<8x16xf32>
    %258 = arith.divf %256, %257 : vector<8x16xf32>
    %259 = vector.extract_strided_slice %246 {offsets = [0, 16], sizes = [8, 16], strides = [1, 1]} : vector<8x48xf32> to vector<8x16xf32>
    %260 = vector.extract_strided_slice %250 {offsets = [0, 16], sizes = [8, 16], strides = [1, 1]} : vector<8x48xf32> to vector<8x16xf32>
    %261 = arith.addf %259, %260 : vector<8x16xf32>
    %262 = arith.negf %261 : vector<8x16xf32>
    %263 = math.exp %262 : vector<8x16xf32>
    %cst_62 = arith.constant 1.000000e+00 : f32
    %264 = vector.broadcast %cst_62 : f32 to vector<8x16xf32>
    %265 = arith.addf %264, %263 : vector<8x16xf32>
    %266 = arith.divf %264, %265 : vector<8x16xf32>
    %267 = vector.extract_strided_slice %246 {offsets = [0, 32], sizes = [8, 16], strides = [1, 1]} : vector<8x48xf32> to vector<8x16xf32>
    %268 = vector.extract_strided_slice %250 {offsets = [0, 32], sizes = [8, 16], strides = [1, 1]} : vector<8x48xf32> to vector<8x16xf32>
    %269 = arith.mulf %258, %268 : vector<8x16xf32>
    %270 = arith.addf %267, %269 : vector<8x16xf32>
    %271 = math.tanh %270 : vector<8x16xf32>
    %cst_63 = arith.constant 1.000000e+00 : f32
    %272 = vector.broadcast %cst_63 : f32 to vector<8x16xf32>
    %273 = arith.subf %272, %266 : vector<8x16xf32>
    %274 = arith.mulf %273, %271 : vector<8x16xf32>
    %275 = arith.mulf %266, %214 : vector<8x16xf32>
    %276 = arith.addf %274, %275 : vector<8x16xf32>
    %277 = tpu.concatenate %59, %121, %183, %245 in 0 : vector<8x16xf32>, vector<8x16xf32>, vector<8x16xf32>, vector<8x16xf32> -> vector<32x16xf32>
    %278 = tpu.concatenate %276, %214, %152, %90 in 0 : vector<8x16xf32>, vector<8x16xf32>, vector<8x16xf32>, vector<8x16xf32> -> vector<32x16xf32>
    %279 = arith.truncf %277 : vector<32x16xf32> to vector<32x16xbf16>
    %c0_64 = arith.constant 0 : index
    %c0_65 = arith.constant 0 : index
    %280 = vector.load %arg7[%c0_64, %c0_65] : memref<16x32xbf16, #tpu.memory_space<vmem>>, vector<16x32xbf16>
    %cst_66 = arith.constant dense<0.000000e+00> : vector<32x32xf32>
    %281 = tpu.matmul %279, %280, %cst_66 {dimension_numbers = #tpu.dot_dimension_numbers<[1], [0], [0], [1], [0, 0, 1, 1], [], []>} : vector<32x16xbf16>, vector<16x32xbf16>, vector<32x32xf32> -> vector<32x32xf32>
    %282 = arith.truncf %278 : vector<32x16xf32> to vector<32x16xbf16>
    %c0_67 = arith.constant 0 : index
    %c0_68 = arith.constant 0 : index
    %283 = vector.load %arg8[%c0_67, %c0_68] : memref<16x32xbf16, #tpu.memory_space<vmem>>, vector<16x32xbf16>
    %cst_69 = arith.constant dense<0.000000e+00> : vector<32x32xf32>
    %284 = tpu.matmul %282, %283, %cst_69 {dimension_numbers = #tpu.dot_dimension_numbers<[1], [0], [0], [1], [0, 0, 1, 1], [], []>} : vector<32x16xbf16>, vector<16x32xbf16>, vector<32x32xf32> -> vector<32x32xf32>
    %285 = arith.addf %281, %284 : vector<32x32xf32>
    %c0_70 = arith.constant 0 : index
    %c0_71 = arith.constant 0 : index
    %286 = vector.load %arg9[%c0_70, %c0_71] : memref<1x32xf32, #tpu.memory_space<vmem>>, vector<1x32xf32>
    %287 = vector.broadcast %286 : vector<1x32xf32> to vector<32x32xf32>
    %288 = arith.addf %285, %287 : vector<32x32xf32>
    %cst_72 = arith.constant 0.000000e+00 : f32
    %289 = vector.broadcast %cst_72 : f32 to vector<32x32xf32>
    %290 = arith.maximumf %288, %289 : vector<32x32xf32>
    %c0_73 = arith.constant 0 : index
    %c0_74 = arith.constant 0 : index
    %291 = vector.load %arg10[%c0_73, %c0_74] : memref<1x32xf32, #tpu.memory_space<vmem>>, vector<1x32xf32>
    %292 = vector.broadcast %291 : vector<1x32xf32> to vector<32x32xf32>
    %293 = arith.mulf %290, %292 : vector<32x32xf32>
    %cst_75 = arith.constant dense<0.000000e+00> : vector<32xf32>
    %294 = vector.multi_reduction <add>, %293, %cst_75 [1] : vector<32x32xf32> to vector<32xf32>
    %295 = vector.shape_cast %294 : vector<32xf32> to vector<32x1xf32>
    %296 = vector.extract_strided_slice %295 {offsets = [0, 0], sizes = [8, 1], strides = [1, 1]} : vector<32x1xf32> to vector<8x1xf32>
    %297 = vector.extract_strided_slice %295 {offsets = [8, 0], sizes = [8, 1], strides = [1, 1]} : vector<32x1xf32> to vector<8x1xf32>
    %298 = vector.extract_strided_slice %295 {offsets = [16, 0], sizes = [8, 1], strides = [1, 1]} : vector<32x1xf32> to vector<8x1xf32>
    %299 = vector.extract_strided_slice %295 {offsets = [24, 0], sizes = [8, 1], strides = [1, 1]} : vector<32x1xf32> to vector<8x1xf32>
    %300 = arith.maximumf %296, %297 : vector<8x1xf32>
    %301 = arith.maximumf %300, %298 : vector<8x1xf32>
    %302 = arith.maximumf %301, %299 : vector<8x1xf32>
    %303 = arith.subf %296, %302 : vector<8x1xf32>
    %304 = math.exp %303 : vector<8x1xf32>
    %305 = arith.subf %297, %302 : vector<8x1xf32>
    %306 = math.exp %305 : vector<8x1xf32>
    %307 = arith.subf %298, %302 : vector<8x1xf32>
    %308 = math.exp %307 : vector<8x1xf32>
    %309 = arith.subf %299, %302 : vector<8x1xf32>
    %310 = math.exp %309 : vector<8x1xf32>
    %311 = arith.addf %304, %306 : vector<8x1xf32>
    %312 = arith.addf %311, %308 : vector<8x1xf32>
    %313 = arith.addf %312, %310 : vector<8x1xf32>
    %314 = vector.broadcast %304 : vector<8x1xf32> to vector<8x16xf32>
    %315 = arith.mulf %314, %59 : vector<8x16xf32>
    %316 = vector.broadcast %304 : vector<8x1xf32> to vector<8x16xf32>
    %317 = arith.mulf %316, %276 : vector<8x16xf32>
    %318 = vector.broadcast %306 : vector<8x1xf32> to vector<8x16xf32>
    %319 = arith.mulf %318, %121 : vector<8x16xf32>
    %320 = arith.addf %315, %319 : vector<8x16xf32>
    %321 = vector.broadcast %306 : vector<8x1xf32> to vector<8x16xf32>
    %322 = arith.mulf %321, %214 : vector<8x16xf32>
    %323 = arith.addf %317, %322 : vector<8x16xf32>
    %324 = vector.broadcast %308 : vector<8x1xf32> to vector<8x16xf32>
    %325 = arith.mulf %324, %183 : vector<8x16xf32>
    %326 = arith.addf %320, %325 : vector<8x16xf32>
    %327 = vector.broadcast %308 : vector<8x1xf32> to vector<8x16xf32>
    %328 = arith.mulf %327, %152 : vector<8x16xf32>
    %329 = arith.addf %323, %328 : vector<8x16xf32>
    %330 = vector.broadcast %310 : vector<8x1xf32> to vector<8x16xf32>
    %331 = arith.mulf %330, %245 : vector<8x16xf32>
    %332 = arith.addf %326, %331 : vector<8x16xf32>
    %333 = vector.broadcast %310 : vector<8x1xf32> to vector<8x16xf32>
    %334 = arith.mulf %333, %90 : vector<8x16xf32>
    %335 = arith.addf %329, %334 : vector<8x16xf32>
    %cst_76 = arith.constant 1.000000e+00 : f32
    %336 = vector.broadcast %cst_76 : f32 to vector<8x1xf32>
    %337 = arith.divf %336, %313 : vector<8x1xf32>
    %338 = vector.broadcast %337 : vector<8x1xf32> to vector<8x16xf32>
    %339 = arith.mulf %332, %338 : vector<8x16xf32>
    %c0_77 = arith.constant 0 : index
    %c0_78 = arith.constant 0 : index
    %340 = vector.load %arg11[%c0_77, %c0_78] : memref<8x32xf32, #tpu.memory_space<vmem>>, vector<8x16xf32>
    tpu.vector_store %arg11[%c0_77, %c0_78], %339 {strides = array<i32>} : memref<8x32xf32, #tpu.memory_space<vmem>>, vector<8x16xf32>,
    %341 = vector.broadcast %337 : vector<8x1xf32> to vector<8x16xf32>
    %342 = arith.mulf %335, %341 : vector<8x16xf32>
    %c0_79 = arith.constant 0 : index
    %c16 = arith.constant 16 : index
    %343 = vector.load %arg11[%c0_79, %c16] : memref<8x32xf32, #tpu.memory_space<vmem>>, vector<8x16xf32>
    tpu.vector_store %arg11[%c0_79, %c16], %342 {strides = array<i32>} : memref<8x32xf32, #tpu.memory_space<vmem>>, vector<8x16xf32>,
    return
  }
  func.func @transform_0(%arg0: i32) -> (i32, i32, i32) {
    %c0_i32 = arith.constant 0 : i32
    %c0_i32_0 = arith.constant 0 : i32
    %c0_i32_1 = arith.constant 0 : i32
    return %c0_i32, %arg0, %c0_i32_0 : i32, i32, i32
  }
  func.func @transform_1(%arg0: i32) -> (i32, i32, i32) {
    %c0_i32 = arith.constant 0 : i32
    %c0_i32_0 = arith.constant 0 : i32
    %c0_i32_1 = arith.constant 0 : i32
    return %c0_i32, %arg0, %c0_i32_0 : i32, i32, i32
  }
  func.func @transform_2(%arg0: i32) -> (i32, i32, i32) {
    %c0_i32 = arith.constant 0 : i32
    %c0_i32_0 = arith.constant 0 : i32
    %c0_i32_1 = arith.constant 0 : i32
    %c0_i32_2 = arith.constant 0 : i32
    return %c0_i32, %c0_i32_0, %c0_i32_1 : i32, i32, i32
  }
  func.func @transform_3(%arg0: i32) -> (i32, i32, i32) {
    %c0_i32 = arith.constant 0 : i32
    %c0_i32_0 = arith.constant 0 : i32
    %c0_i32_1 = arith.constant 0 : i32
    %c0_i32_2 = arith.constant 0 : i32
    return %c0_i32, %c0_i32_0, %c0_i32_1 : i32, i32, i32
  }
  func.func @transform_4(%arg0: i32) -> (i32, i32, i32) {
    %c0_i32 = arith.constant 0 : i32
    %c0_i32_0 = arith.constant 0 : i32
    %c0_i32_1 = arith.constant 0 : i32
    %c0_i32_2 = arith.constant 0 : i32
    return %c0_i32, %c0_i32_0, %c0_i32_1 : i32, i32, i32
  }
  func.func @transform_5(%arg0: i32) -> (i32, i32, i32) {
    %c0_i32 = arith.constant 0 : i32
    %c0_i32_0 = arith.constant 0 : i32
    %c0_i32_1 = arith.constant 0 : i32
    %c0_i32_2 = arith.constant 0 : i32
    return %c0_i32, %c0_i32_0, %c0_i32_1 : i32, i32, i32
  }
  func.func @transform_6(%arg0: i32) -> (i32, i32) {
    %c0_i32 = arith.constant 0 : i32
    %c0_i32_0 = arith.constant 0 : i32
    %c0_i32_1 = arith.constant 0 : i32
    return %c0_i32, %c0_i32_0 : i32, i32
  }
  func.func @transform_7(%arg0: i32) -> (i32, i32) {
    %c0_i32 = arith.constant 0 : i32
    %c0_i32_0 = arith.constant 0 : i32
    %c0_i32_1 = arith.constant 0 : i32
    return %c0_i32, %c0_i32_0 : i32, i32
  }
  func.func @transform_8(%arg0: i32) -> (i32, i32) {
    %c0_i32 = arith.constant 0 : i32
    %c0_i32_0 = arith.constant 0 : i32
    %c0_i32_1 = arith.constant 0 : i32
    return %c0_i32, %c0_i32_0 : i32, i32
  }
  func.func @transform_9(%arg0: i32) -> (i32, i32) {
    %c0_i32 = arith.constant 0 : i32
    %c0_i32_0 = arith.constant 0 : i32
    %c0_i32_1 = arith.constant 0 : i32
    return %c0_i32, %c0_i32_0 : i32, i32
  }
  func.func @transform_10(%arg0: i32) -> (i32, i32) {
    %c0_i32 = arith.constant 0 : i32
    %c0_i32_0 = arith.constant 0 : i32
    return %arg0, %c0_i32 : i32, i32
  }
}

module attributes {stable_mosaic.version = 11 : i64} {
  func.func @_bigru_attn_kernel(%arg0: i32, %arg1: memref<2x8x32xf32, #tpu.memory_space<vmem>>, %arg2: memref<2x8x16xf32, #tpu.memory_space<vmem>>, %arg3: memref<2x32x48xbf16, #tpu.memory_space<vmem>>, %arg4: memref<2x16x48xbf16, #tpu.memory_space<vmem>>, %arg5: memref<2x1x48xf32, #tpu.memory_space<vmem>>, %arg6: memref<2x1x48xf32, #tpu.memory_space<vmem>>, %arg7: memref<16x32xbf16, #tpu.memory_space<vmem>>, %arg8: memref<16x32xbf16, #tpu.memory_space<vmem>>, %arg9: memref<1x32xf32, #tpu.memory_space<vmem>>, %arg10: memref<1x32xf32, #tpu.memory_space<vmem>>, %arg11: memref<8x32xf32, #tpu.memory_space<vmem>>) attributes {dimension_semantics = [#tpu.dimension_semantics<parallel>], iteration_bounds = array<i64: 1>, scalar_prefetch = 0 : i64, scratch_operands = 0 : i64, tpu.core_type = #tpu.core_type<tc>, window_params = [{transform_indices = @transform_0, window_bounds = array<i64: 2, 8, 32>}, {transform_indices = @transform_1, window_bounds = array<i64: 2, 8, 16>}, {pipeline_mode = #tpu.pipeline_mode<synchronous>, transform_indices = @transform_2, window_bounds = array<i64: 2, 32, 48>}, {pipeline_mode = #tpu.pipeline_mode<synchronous>, transform_indices = @transform_3, window_bounds = array<i64: 2, 16, 48>}, {pipeline_mode = #tpu.pipeline_mode<synchronous>, transform_indices = @transform_4, window_bounds = array<i64: 2, 1, 48>}, {pipeline_mode = #tpu.pipeline_mode<synchronous>, transform_indices = @transform_5, window_bounds = array<i64: 2, 1, 48>}, {pipeline_mode = #tpu.pipeline_mode<synchronous>, transform_indices = @transform_6, window_bounds = array<i64: 16, 32>}, {pipeline_mode = #tpu.pipeline_mode<synchronous>, transform_indices = @transform_7, window_bounds = array<i64: 16, 32>}, {pipeline_mode = #tpu.pipeline_mode<synchronous>, transform_indices = @transform_8, window_bounds = array<i64: 1, 32>}, {pipeline_mode = #tpu.pipeline_mode<synchronous>, transform_indices = @transform_9, window_bounds = array<i64: 1, 32>}, {transform_indices = @transform_10, window_bounds = array<i64: 8, 32>}]} {
    %c0 = arith.constant 0 : index
    %c0_0 = arith.constant 0 : index
    %c0_1 = arith.constant 0 : index
    %0 = vector.load %arg1[%c0, %c0_0, %c0_1] : memref<2x8x32xf32, #tpu.memory_space<vmem>>, vector<2x8x32xf32>
    %1 = vector.shape_cast %0 : vector<2x8x32xf32> to vector<16x32xf32>
    %2 = arith.truncf %1 : vector<16x32xf32> to vector<16x32xbf16>
    %c0_2 = arith.constant 0 : index
    %c0_3 = arith.constant 0 : index
    %c0_4 = arith.constant 0 : index
    %3 = vector.load %arg3[%c0_2, %c0_3, %c0_4] : memref<2x32x48xbf16, #tpu.memory_space<vmem>>, vector<1x32x48xbf16>
    %4 = vector.shape_cast %3 : vector<1x32x48xbf16> to vector<32x48xbf16>
    %cst = arith.constant dense<0.000000e+00> : vector<16x48xf32>
    %5 = tpu.matmul %2, %4, %cst {dimension_numbers = #tpu.dot_dimension_numbers<[1], [0], [0], [1], [0, 0, 1, 1], [], []>} : vector<16x32xbf16>, vector<32x48xbf16>, vector<16x48xf32> -> vector<16x48xf32>
    %c0_5 = arith.constant 0 : index
    %c0_6 = arith.constant 0 : index
    %c0_7 = arith.constant 0 : index
    %6 = vector.load %arg5[%c0_5, %c0_6, %c0_7] : memref<2x1x48xf32, #tpu.memory_space<vmem>>, vector<1x1x48xf32>
    %7 = vector.shape_cast %6 : vector<1x1x48xf32> to vector<1x48xf32>
    %8 = vector.broadcast %7 : vector<1x48xf32> to vector<16x48xf32>
    %9 = arith.addf %5, %8 : vector<16x48xf32>
    %c1 = arith.constant 1 : index
    %c0_8 = arith.constant 0 : index
    %c0_9 = arith.constant 0 : index
    %10 = vector.load %arg3[%c1, %c0_8, %c0_9] : memref<2x32x48xbf16, #tpu.memory_space<vmem>>, vector<1x32x48xbf16>
    %11 = vector.shape_cast %10 : vector<1x32x48xbf16> to vector<32x48xbf16>
    %cst_10 = arith.constant dense<0.000000e+00> : vector<16x48xf32>
    %12 = tpu.matmul %2, %11, %cst_10 {dimension_numbers = #tpu.dot_dimension_numbers<[1], [0], [0], [1], [0, 0, 1, 1], [], []>} : vector<16x32xbf16>, vector<32x48xbf16>, vector<16x48xf32> -> vector<16x48xf32>
    %c1_11 = arith.constant 1 : index
    %c0_12 = arith.constant 0 : index
    %c0_13 = arith.constant 0 : index
    %13 = vector.load %arg5[%c1_11, %c0_12, %c0_13] : memref<2x1x48xf32, #tpu.memory_space<vmem>>, vector<1x1x48xf32>
    %14 = vector.shape_cast %13 : vector<1x1x48xf32> to vector<1x48xf32>
    %15 = vector.broadcast %14 : vector<1x48xf32> to vector<16x48xf32>
    %16 = arith.addf %12, %15 : vector<16x48xf32>
    %c0_14 = arith.constant 0 : index
    %c0_15 = arith.constant 0 : index
    %c0_16 = arith.constant 0 : index
    %17 = vector.load %arg4[%c0_14, %c0_15, %c0_16] : memref<2x16x48xbf16, #tpu.memory_space<vmem>>, vector<1x16x48xbf16>
    %18 = vector.shape_cast %17 : vector<1x16x48xbf16> to vector<16x48xbf16>
    %c1_17 = arith.constant 1 : index
    %c0_18 = arith.constant 0 : index
    %c0_19 = arith.constant 0 : index
    %19 = vector.load %arg4[%c1_17, %c0_18, %c0_19] : memref<2x16x48xbf16, #tpu.memory_space<vmem>>, vector<1x16x48xbf16>
    %20 = vector.shape_cast %19 : vector<1x16x48xbf16> to vector<16x48xbf16>
    %c0_20 = arith.constant 0 : index
    %c0_21 = arith.constant 0 : index
    %c0_22 = arith.constant 0 : index
    %21 = vector.load %arg6[%c0_20, %c0_21, %c0_22] : memref<2x1x48xf32, #tpu.memory_space<vmem>>, vector<1x1x48xf32>
    %22 = vector.shape_cast %21 : vector<1x1x48xf32> to vector<1x48xf32>
    %c1_23 = arith.constant 1 : index
    %c0_24 = arith.constant 0 : index
    %c0_25 = arith.constant 0 : index
    %23 = vector.load %arg6[%c1_23, %c0_24, %c0_25] : memref<2x1x48xf32, #tpu.memory_space<vmem>>, vector<1x1x48xf32>
    %24 = vector.shape_cast %23 : vector<1x1x48xf32> to vector<1x48xf32>
    %c0_26 = arith.constant 0 : index
    %c0_27 = arith.constant 0 : index
    %c0_28 = arith.constant 0 : index
    %25 = vector.load %arg2[%c0_26, %c0_27, %c0_28] : memref<2x8x16xf32, #tpu.memory_space<vmem>>, vector<1x8x16xf32>
    %26 = vector.shape_cast %25 : vector<1x8x16xf32> to vector<8x16xf32>
    %c1_29 = arith.constant 1 : index
    %c0_30 = arith.constant 0 : index
    %c0_31 = arith.constant 0 : index
    %27 = vector.load %arg2[%c1_29, %c0_30, %c0_31] : memref<2x8x16xf32, #tpu.memory_space<vmem>>, vector<1x8x16xf32>
    %28 = vector.shape_cast %27 : vector<1x8x16xf32> to vector<8x16xf32>
    %29 = vector.extract_strided_slice %9 {offsets = [0, 0], sizes = [8, 48], strides = [1, 1]} : vector<16x48xf32> to vector<8x48xf32>
    %30 = arith.truncf %26 : vector<8x16xf32> to vector<8x16xbf16>
    %cst_32 = arith.constant dense<0.000000e+00> : vector<8x48xf32>
    %31 = tpu.matmul %30, %18, %cst_32 {dimension_numbers = #tpu.dot_dimension_numbers<[1], [0], [0], [1], [0, 0, 1, 1], [], []>} : vector<8x16xbf16>, vector<16x48xbf16>, vector<8x48xf32> -> vector<8x48xf32>
    %32 = vector.broadcast %22 : vector<1x48xf32> to vector<8x48xf32>
    %33 = arith.addf %31, %32 : vector<8x48xf32>
    %34 = vector.extract_strided_slice %29 {offsets = [0, 0], sizes = [8, 16], strides = [1, 1]} : vector<8x48xf32> to vector<8x16xf32>
    %35 = vector.extract_strided_slice %33 {offsets = [0, 0], sizes = [8, 16], strides = [1, 1]} : vector<8x48xf32> to vector<8x16xf32>
    %36 = arith.addf %34, %35 : vector<8x16xf32>
    %37 = arith.negf %36 : vector<8x16xf32>
    %38 = math.exp %37 : vector<8x16xf32>
    %cst_33 = arith.constant 1.000000e+00 : f32
    %39 = vector.broadcast %cst_33 : f32 to vector<8x16xf32>
    %40 = arith.addf %39, %38 : vector<8x16xf32>
    %41 = arith.divf %39, %40 : vector<8x16xf32>
    %42 = vector.extract_strided_slice %29 {offsets = [0, 16], sizes = [8, 16], strides = [1, 1]} : vector<8x48xf32> to vector<8x16xf32>
    %43 = vector.extract_strided_slice %33 {offsets = [0, 16], sizes = [8, 16], strides = [1, 1]} : vector<8x48xf32> to vector<8x16xf32>
    %44 = arith.addf %42, %43 : vector<8x16xf32>
    %45 = arith.negf %44 : vector<8x16xf32>
    %46 = math.exp %45 : vector<8x16xf32>
    %cst_34 = arith.constant 1.000000e+00 : f32
    %47 = vector.broadcast %cst_34 : f32 to vector<8x16xf32>
    %48 = arith.addf %47, %46 : vector<8x16xf32>
    %49 = arith.divf %47, %48 : vector<8x16xf32>
    %50 = vector.extract_strided_slice %29 {offsets = [0, 32], sizes = [8, 16], strides = [1, 1]} : vector<8x48xf32> to vector<8x16xf32>
    %51 = vector.extract_strided_slice %33 {offsets = [0, 32], sizes = [8, 16], strides = [1, 1]} : vector<8x48xf32> to vector<8x16xf32>
    %52 = arith.mulf %41, %51 : vector<8x16xf32>
    %53 = arith.addf %50, %52 : vector<8x16xf32>
    %54 = math.tanh %53 : vector<8x16xf32>
    %cst_35 = arith.constant 1.000000e+00 : f32
    %55 = vector.broadcast %cst_35 : f32 to vector<8x16xf32>
    %56 = arith.subf %55, %49 : vector<8x16xf32>
    %57 = arith.mulf %56, %54 : vector<8x16xf32>
    %58 = arith.mulf %49, %26 : vector<8x16xf32>
    %59 = arith.addf %57, %58 : vector<8x16xf32>
    %60 = vector.extract_strided_slice %16 {offsets = [8, 0], sizes = [8, 48], strides = [1, 1]} : vector<16x48xf32> to vector<8x48xf32>
    %61 = arith.truncf %28 : vector<8x16xf32> to vector<8x16xbf16>
    %cst_36 = arith.constant dense<0.000000e+00> : vector<8x48xf32>
    %62 = tpu.matmul %61, %20, %cst_36 {dimension_numbers = #tpu.dot_dimension_numbers<[1], [0], [0], [1], [0, 0, 1, 1], [], []>} : vector<8x16xbf16>, vector<16x48xbf16>, vector<8x48xf32> -> vector<8x48xf32>
    %63 = vector.broadcast %24 : vector<1x48xf32> to vector<8x48xf32>
    %64 = arith.addf %62, %63 : vector<8x48xf32>
    %65 = vector.extract_strided_slice %60 {offsets = [0, 0], sizes = [8, 16], strides = [1, 1]} : vector<8x48xf32> to vector<8x16xf32>
    %66 = vector.extract_strided_slice %64 {offsets = [0, 0], sizes = [8, 16], strides = [1, 1]} : vector<8x48xf32> to vector<8x16xf32>
    %67 = arith.addf %65, %66 : vector<8x16xf32>
    %68 = arith.negf %67 : vector<8x16xf32>
    %69 = math.exp %68 : vector<8x16xf32>
    %cst_37 = arith.constant 1.000000e+00 : f32
    %70 = vector.broadcast %cst_37 : f32 to vector<8x16xf32>
    %71 = arith.addf %70, %69 : vector<8x16xf32>
    %72 = arith.divf %70, %71 : vector<8x16xf32>
    %73 = vector.extract_strided_slice %60 {offsets = [0, 16], sizes = [8, 16], strides = [1, 1]} : vector<8x48xf32> to vector<8x16xf32>
    %74 = vector.extract_strided_slice %64 {offsets = [0, 16], sizes = [8, 16], strides = [1, 1]} : vector<8x48xf32> to vector<8x16xf32>
    %75 = arith.addf %73, %74 : vector<8x16xf32>
    %76 = arith.negf %75 : vector<8x16xf32>
    %77 = math.exp %76 : vector<8x16xf32>
    %cst_38 = arith.constant 1.000000e+00 : f32
    %78 = vector.broadcast %cst_38 : f32 to vector<8x16xf32>
    %79 = arith.addf %78, %77 : vector<8x16xf32>
    %80 = arith.divf %78, %79 : vector<8x16xf32>
    %81 = vector.extract_strided_slice %60 {offsets = [0, 32], sizes = [8, 16], strides = [1, 1]} : vector<8x48xf32> to vector<8x16xf32>
    %82 = vector.extract_strided_slice %64 {offsets = [0, 32], sizes = [8, 16], strides = [1, 1]} : vector<8x48xf32> to vector<8x16xf32>
    %83 = arith.mulf %72, %82 : vector<8x16xf32>
    %84 = arith.addf %81, %83 : vector<8x16xf32>
    %85 = math.tanh %84 : vector<8x16xf32>
    %cst_39 = arith.constant 1.000000e+00 : f32
    %86 = vector.broadcast %cst_39 : f32 to vector<8x16xf32>
    %87 = arith.subf %86, %80 : vector<8x16xf32>
    %88 = arith.mulf %87, %85 : vector<8x16xf32>
    %89 = arith.mulf %80, %28 : vector<8x16xf32>
    %90 = arith.addf %88, %89 : vector<8x16xf32>
    %91 = vector.extract_strided_slice %9 {offsets = [8, 0], sizes = [8, 48], strides = [1, 1]} : vector<16x48xf32> to vector<8x48xf32>
    %92 = arith.truncf %59 : vector<8x16xf32> to vector<8x16xbf16>
    %cst_40 = arith.constant dense<0.000000e+00> : vector<8x48xf32>
    %93 = tpu.matmul %92, %18, %cst_40 {dimension_numbers = #tpu.dot_dimension_numbers<[1], [0], [0], [1], [0, 0, 1, 1], [], []>} : vector<8x16xbf16>, vector<16x48xbf16>, vector<8x48xf32> -> vector<8x48xf32>
    %94 = vector.broadcast %22 : vector<1x48xf32> to vector<8x48xf32>
    %95 = arith.addf %93, %94 : vector<8x48xf32>
    %96 = vector.extract_strided_slice %91 {offsets = [0, 0], sizes = [8, 16], strides = [1, 1]} : vector<8x48xf32> to vector<8x16xf32>
    %97 = vector.extract_strided_slice %95 {offsets = [0, 0], sizes = [8, 16], strides = [1, 1]} : vector<8x48xf32> to vector<8x16xf32>
    %98 = arith.addf %96, %97 : vector<8x16xf32>
    %99 = arith.negf %98 : vector<8x16xf32>
    %100 = math.exp %99 : vector<8x16xf32>
    %cst_41 = arith.constant 1.000000e+00 : f32
    %101 = vector.broadcast %cst_41 : f32 to vector<8x16xf32>
    %102 = arith.addf %101, %100 : vector<8x16xf32>
    %103 = arith.divf %101, %102 : vector<8x16xf32>
    %104 = vector.extract_strided_slice %91 {offsets = [0, 16], sizes = [8, 16], strides = [1, 1]} : vector<8x48xf32> to vector<8x16xf32>
    %105 = vector.extract_strided_slice %95 {offsets = [0, 16], sizes = [8, 16], strides = [1, 1]} : vector<8x48xf32> to vector<8x16xf32>
    %106 = arith.addf %104, %105 : vector<8x16xf32>
    %107 = arith.negf %106 : vector<8x16xf32>
    %108 = math.exp %107 : vector<8x16xf32>
    %cst_42 = arith.constant 1.000000e+00 : f32
    %109 = vector.broadcast %cst_42 : f32 to vector<8x16xf32>
    %110 = arith.addf %109, %108 : vector<8x16xf32>
    %111 = arith.divf %109, %110 : vector<8x16xf32>
    %112 = vector.extract_strided_slice %91 {offsets = [0, 32], sizes = [8, 16], strides = [1, 1]} : vector<8x48xf32> to vector<8x16xf32>
    %113 = vector.extract_strided_slice %95 {offsets = [0, 32], sizes = [8, 16], strides = [1, 1]} : vector<8x48xf32> to vector<8x16xf32>
    %114 = arith.mulf %103, %113 : vector<8x16xf32>
    %115 = arith.addf %112, %114 : vector<8x16xf32>
    %116 = math.tanh %115 : vector<8x16xf32>
    %cst_43 = arith.constant 1.000000e+00 : f32
    %117 = vector.broadcast %cst_43 : f32 to vector<8x16xf32>
    %118 = arith.subf %117, %111 : vector<8x16xf32>
    %119 = arith.mulf %118, %116 : vector<8x16xf32>
    %120 = arith.mulf %111, %59 : vector<8x16xf32>
    %121 = arith.addf %119, %120 : vector<8x16xf32>
    %122 = vector.extract_strided_slice %16 {offsets = [0, 0], sizes = [8, 48], strides = [1, 1]} : vector<16x48xf32> to vector<8x48xf32>
    %123 = arith.truncf %90 : vector<8x16xf32> to vector<8x16xbf16>
    %cst_44 = arith.constant dense<0.000000e+00> : vector<8x48xf32>
    %124 = tpu.matmul %123, %20, %cst_44 {dimension_numbers = #tpu.dot_dimension_numbers<[1], [0], [0], [1], [0, 0, 1, 1], [], []>} : vector<8x16xbf16>, vector<16x48xbf16>, vector<8x48xf32> -> vector<8x48xf32>
    %125 = vector.broadcast %24 : vector<1x48xf32> to vector<8x48xf32>
    %126 = arith.addf %124, %125 : vector<8x48xf32>
    %127 = vector.extract_strided_slice %122 {offsets = [0, 0], sizes = [8, 16], strides = [1, 1]} : vector<8x48xf32> to vector<8x16xf32>
    %128 = vector.extract_strided_slice %126 {offsets = [0, 0], sizes = [8, 16], strides = [1, 1]} : vector<8x48xf32> to vector<8x16xf32>
    %129 = arith.addf %127, %128 : vector<8x16xf32>
    %130 = arith.negf %129 : vector<8x16xf32>
    %131 = math.exp %130 : vector<8x16xf32>
    %cst_45 = arith.constant 1.000000e+00 : f32
    %132 = vector.broadcast %cst_45 : f32 to vector<8x16xf32>
    %133 = arith.addf %132, %131 : vector<8x16xf32>
    %134 = arith.divf %132, %133 : vector<8x16xf32>
    %135 = vector.extract_strided_slice %122 {offsets = [0, 16], sizes = [8, 16], strides = [1, 1]} : vector<8x48xf32> to vector<8x16xf32>
    %136 = vector.extract_strided_slice %126 {offsets = [0, 16], sizes = [8, 16], strides = [1, 1]} : vector<8x48xf32> to vector<8x16xf32>
    %137 = arith.addf %135, %136 : vector<8x16xf32>
    %138 = arith.negf %137 : vector<8x16xf32>
    %139 = math.exp %138 : vector<8x16xf32>
    %cst_46 = arith.constant 1.000000e+00 : f32
    %140 = vector.broadcast %cst_46 : f32 to vector<8x16xf32>
    %141 = arith.addf %140, %139 : vector<8x16xf32>
    %142 = arith.divf %140, %141 : vector<8x16xf32>
    %143 = vector.extract_strided_slice %122 {offsets = [0, 32], sizes = [8, 16], strides = [1, 1]} : vector<8x48xf32> to vector<8x16xf32>
    %144 = vector.extract_strided_slice %126 {offsets = [0, 32], sizes = [8, 16], strides = [1, 1]} : vector<8x48xf32> to vector<8x16xf32>
    %145 = arith.mulf %134, %144 : vector<8x16xf32>
    %146 = arith.addf %143, %145 : vector<8x16xf32>
    %147 = math.tanh %146 : vector<8x16xf32>
    %cst_47 = arith.constant 1.000000e+00 : f32
    %148 = vector.broadcast %cst_47 : f32 to vector<8x16xf32>
    %149 = arith.subf %148, %142 : vector<8x16xf32>
    %150 = arith.mulf %149, %147 : vector<8x16xf32>
    %151 = arith.mulf %142, %90 : vector<8x16xf32>
    %152 = arith.addf %150, %151 : vector<8x16xf32>
    %153 = tpu.concatenate %59, %121 in 0 : vector<8x16xf32>, vector<8x16xf32> -> vector<16x16xf32>
    %154 = tpu.concatenate %152, %90 in 0 : vector<8x16xf32>, vector<8x16xf32> -> vector<16x16xf32>
    %155 = arith.truncf %153 : vector<16x16xf32> to vector<16x16xbf16>
    %c0_48 = arith.constant 0 : index
    %c0_49 = arith.constant 0 : index
    %156 = vector.load %arg7[%c0_48, %c0_49] : memref<16x32xbf16, #tpu.memory_space<vmem>>, vector<16x32xbf16>
    %cst_50 = arith.constant dense<0.000000e+00> : vector<16x32xf32>
    %157 = tpu.matmul %155, %156, %cst_50 {dimension_numbers = #tpu.dot_dimension_numbers<[1], [0], [0], [1], [0, 0, 1, 1], [], []>} : vector<16x16xbf16>, vector<16x32xbf16>, vector<16x32xf32> -> vector<16x32xf32>
    %158 = arith.truncf %154 : vector<16x16xf32> to vector<16x16xbf16>
    %c0_51 = arith.constant 0 : index
    %c0_52 = arith.constant 0 : index
    %159 = vector.load %arg8[%c0_51, %c0_52] : memref<16x32xbf16, #tpu.memory_space<vmem>>, vector<16x32xbf16>
    %cst_53 = arith.constant dense<0.000000e+00> : vector<16x32xf32>
    %160 = tpu.matmul %158, %159, %cst_53 {dimension_numbers = #tpu.dot_dimension_numbers<[1], [0], [0], [1], [0, 0, 1, 1], [], []>} : vector<16x16xbf16>, vector<16x32xbf16>, vector<16x32xf32> -> vector<16x32xf32>
    %161 = arith.addf %157, %160 : vector<16x32xf32>
    %c0_54 = arith.constant 0 : index
    %c0_55 = arith.constant 0 : index
    %162 = vector.load %arg9[%c0_54, %c0_55] : memref<1x32xf32, #tpu.memory_space<vmem>>, vector<1x32xf32>
    %163 = vector.broadcast %162 : vector<1x32xf32> to vector<16x32xf32>
    %164 = arith.addf %161, %163 : vector<16x32xf32>
    %cst_56 = arith.constant 0.000000e+00 : f32
    %165 = vector.broadcast %cst_56 : f32 to vector<16x32xf32>
    %166 = arith.maximumf %164, %165 : vector<16x32xf32>
    %c0_57 = arith.constant 0 : index
    %c0_58 = arith.constant 0 : index
    %167 = vector.load %arg10[%c0_57, %c0_58] : memref<1x32xf32, #tpu.memory_space<vmem>>, vector<1x32xf32>
    %168 = vector.broadcast %167 : vector<1x32xf32> to vector<16x32xf32>
    %169 = arith.mulf %166, %168 : vector<16x32xf32>
    %cst_59 = arith.constant dense<0.000000e+00> : vector<16xf32>
    %170 = vector.multi_reduction <add>, %169, %cst_59 [1] : vector<16x32xf32> to vector<16xf32>
    %171 = vector.shape_cast %170 : vector<16xf32> to vector<16x1xf32>
    %172 = vector.extract_strided_slice %171 {offsets = [0, 0], sizes = [8, 1], strides = [1, 1]} : vector<16x1xf32> to vector<8x1xf32>
    %173 = vector.extract_strided_slice %171 {offsets = [8, 0], sizes = [8, 1], strides = [1, 1]} : vector<16x1xf32> to vector<8x1xf32>
    %174 = arith.maximumf %172, %173 : vector<8x1xf32>
    %175 = arith.subf %172, %174 : vector<8x1xf32>
    %176 = math.exp %175 : vector<8x1xf32>
    %177 = arith.subf %173, %174 : vector<8x1xf32>
    %178 = math.exp %177 : vector<8x1xf32>
    %179 = arith.addf %176, %178 : vector<8x1xf32>
    %180 = vector.broadcast %176 : vector<8x1xf32> to vector<8x16xf32>
    %181 = arith.mulf %180, %59 : vector<8x16xf32>
    %182 = vector.broadcast %176 : vector<8x1xf32> to vector<8x16xf32>
    %183 = arith.mulf %182, %152 : vector<8x16xf32>
    %184 = vector.broadcast %178 : vector<8x1xf32> to vector<8x16xf32>
    %185 = arith.mulf %184, %121 : vector<8x16xf32>
    %186 = arith.addf %181, %185 : vector<8x16xf32>
    %187 = vector.broadcast %178 : vector<8x1xf32> to vector<8x16xf32>
    %188 = arith.mulf %187, %90 : vector<8x16xf32>
    %189 = arith.addf %183, %188 : vector<8x16xf32>
    %cst_60 = arith.constant 1.000000e+00 : f32
    %190 = vector.broadcast %cst_60 : f32 to vector<8x1xf32>
    %191 = arith.divf %190, %179 : vector<8x1xf32>
    %192 = vector.broadcast %191 : vector<8x1xf32> to vector<8x16xf32>
    %193 = arith.mulf %186, %192 : vector<8x16xf32>
    %c0_61 = arith.constant 0 : index
    %c0_62 = arith.constant 0 : index
    %194 = vector.load %arg11[%c0_61, %c0_62] : memref<8x32xf32, #tpu.memory_space<vmem>>, vector<8x16xf32>
    tpu.vector_store %arg11[%c0_61, %c0_62], %193 {strides = array<i32>} : memref<8x32xf32, #tpu.memory_space<vmem>>, vector<8x16xf32>,
    %195 = vector.broadcast %191 : vector<8x1xf32> to vector<8x16xf32>
    %196 = arith.mulf %189, %195 : vector<8x16xf32>
    %c0_63 = arith.constant 0 : index
    %c16 = arith.constant 16 : index
    %197 = vector.load %arg11[%c0_63, %c16] : memref<8x32xf32, #tpu.memory_space<vmem>>, vector<8x16xf32>
    tpu.vector_store %arg11[%c0_63, %c16], %196 {strides = array<i32>} : memref<8x32xf32, #tpu.memory_space<vmem>>, vector<8x16xf32>,
    return
  }
  func.func @transform_0(%arg0: i32) -> (i32, i32, i32) {
    %c0_i32 = arith.constant 0 : i32
    %c0_i32_0 = arith.constant 0 : i32
    %c0_i32_1 = arith.constant 0 : i32
    return %c0_i32, %arg0, %c0_i32_0 : i32, i32, i32
  }
  func.func @transform_1(%arg0: i32) -> (i32, i32, i32) {
    %c0_i32 = arith.constant 0 : i32
    %c0_i32_0 = arith.constant 0 : i32
    %c0_i32_1 = arith.constant 0 : i32
    return %c0_i32, %arg0, %c0_i32_0 : i32, i32, i32
  }
  func.func @transform_2(%arg0: i32) -> (i32, i32, i32) {
    %c0_i32 = arith.constant 0 : i32
    %c0_i32_0 = arith.constant 0 : i32
    %c0_i32_1 = arith.constant 0 : i32
    %c0_i32_2 = arith.constant 0 : i32
    return %c0_i32, %c0_i32_0, %c0_i32_1 : i32, i32, i32
  }
  func.func @transform_3(%arg0: i32) -> (i32, i32, i32) {
    %c0_i32 = arith.constant 0 : i32
    %c0_i32_0 = arith.constant 0 : i32
    %c0_i32_1 = arith.constant 0 : i32
    %c0_i32_2 = arith.constant 0 : i32
    return %c0_i32, %c0_i32_0, %c0_i32_1 : i32, i32, i32
  }
  func.func @transform_4(%arg0: i32) -> (i32, i32, i32) {
    %c0_i32 = arith.constant 0 : i32
    %c0_i32_0 = arith.constant 0 : i32
    %c0_i32_1 = arith.constant 0 : i32
    %c0_i32_2 = arith.constant 0 : i32
    return %c0_i32, %c0_i32_0, %c0_i32_1 : i32, i32, i32
  }
  func.func @transform_5(%arg0: i32) -> (i32, i32, i32) {
    %c0_i32 = arith.constant 0 : i32
    %c0_i32_0 = arith.constant 0 : i32
    %c0_i32_1 = arith.constant 0 : i32
    %c0_i32_2 = arith.constant 0 : i32
    return %c0_i32, %c0_i32_0, %c0_i32_1 : i32, i32, i32
  }
  func.func @transform_6(%arg0: i32) -> (i32, i32) {
    %c0_i32 = arith.constant 0 : i32
    %c0_i32_0 = arith.constant 0 : i32
    %c0_i32_1 = arith.constant 0 : i32
    return %c0_i32, %c0_i32_0 : i32, i32
  }
  func.func @transform_7(%arg0: i32) -> (i32, i32) {
    %c0_i32 = arith.constant 0 : i32
    %c0_i32_0 = arith.constant 0 : i32
    %c0_i32_1 = arith.constant 0 : i32
    return %c0_i32, %c0_i32_0 : i32, i32
  }
  func.func @transform_8(%arg0: i32) -> (i32, i32) {
    %c0_i32 = arith.constant 0 : i32
    %c0_i32_0 = arith.constant 0 : i32
    %c0_i32_1 = arith.constant 0 : i32
    return %c0_i32, %c0_i32_0 : i32, i32
  }
  func.func @transform_9(%arg0: i32) -> (i32, i32) {
    %c0_i32 = arith.constant 0 : i32
    %c0_i32_0 = arith.constant 0 : i32
    %c0_i32_1 = arith.constant 0 : i32
    return %c0_i32, %c0_i32_0 : i32, i32
  }
  func.func @transform_10(%arg0: i32) -> (i32, i32) {
    %c0_i32 = arith.constant 0 : i32
    %c0_i32_0 = arith.constant 0 : i32
    return %arg0, %c0_i32 : i32, i32
  }
}

module attributes {stable_mosaic.version = 11 : i64} {
  func.func @_diff_feature_kernel(%arg0: i32, %arg1: memref<8x32xf32, #tpu.memory_space<vmem>>, %arg2: memref<8x32xf32, #tpu.memory_space<vmem>>, %arg3: memref<32x16xf32, #tpu.memory_space<vmem>>, %arg4: memref<32x16xf32, #tpu.memory_space<vmem>>, %arg5: memref<1x16xf32, #tpu.memory_space<vmem>>, %arg6: memref<32x32xf32, #tpu.memory_space<vmem>>, %arg7: memref<1x32xf32, #tpu.memory_space<vmem>>, %arg8: memref<32x32xf32, #tpu.memory_space<vmem>>, %arg9: memref<1x32xf32, #tpu.memory_space<vmem>>, %arg10: memref<32x2xf32, #tpu.memory_space<vmem>>, %arg11: memref<32x2xf32, #tpu.memory_space<vmem>>, %arg12: memref<1x2xf32, #tpu.memory_space<vmem>>, %arg13: memref<8x84xf32, #tpu.memory_space<vmem>>) attributes {dimension_semantics = [#tpu.dimension_semantics<parallel>], iteration_bounds = array<i64: 1>, scalar_prefetch = 0 : i64, scratch_operands = 0 : i64, tpu.core_type = #tpu.core_type<tc>, window_params = [{transform_indices = @transform_0, window_bounds = array<i64: 8, 32>}, {transform_indices = @transform_1, window_bounds = array<i64: 8, 32>}, {pipeline_mode = #tpu.pipeline_mode<synchronous>, transform_indices = @transform_2, window_bounds = array<i64: 32, 16>}, {pipeline_mode = #tpu.pipeline_mode<synchronous>, transform_indices = @transform_3, window_bounds = array<i64: 32, 16>}, {pipeline_mode = #tpu.pipeline_mode<synchronous>, transform_indices = @transform_4, window_bounds = array<i64: 1, 16>}, {pipeline_mode = #tpu.pipeline_mode<synchronous>, transform_indices = @transform_5, window_bounds = array<i64: 32, 32>}, {pipeline_mode = #tpu.pipeline_mode<synchronous>, transform_indices = @transform_6, window_bounds = array<i64: 1, 32>}, {pipeline_mode = #tpu.pipeline_mode<synchronous>, transform_indices = @transform_7, window_bounds = array<i64: 32, 32>}, {pipeline_mode = #tpu.pipeline_mode<synchronous>, transform_indices = @transform_8, window_bounds = array<i64: 1, 32>}, {pipeline_mode = #tpu.pipeline_mode<synchronous>, transform_indices = @transform_9, window_bounds = array<i64: 32, 2>}, {pipeline_mode = #tpu.pipeline_mode<synchronous>, transform_indices = @transform_10, window_bounds = array<i64: 32, 2>}, {pipeline_mode = #tpu.pipeline_mode<synchronous>, transform_indices = @transform_11, window_bounds = array<i64: 1, 2>}, {transform_indices = @transform_12, window_bounds = array<i64: 8, 84>}]} {
    %c0 = arith.constant 0 : index
    %c0_0 = arith.constant 0 : index
    %0 = vector.load %arg1[%c0, %c0_0] : memref<8x32xf32, #tpu.memory_space<vmem>>, vector<8x32xf32>
    %c0_1 = arith.constant 0 : index
    %c0_2 = arith.constant 0 : index
    %1 = vector.load %arg2[%c0_1, %c0_2] : memref<8x32xf32, #tpu.memory_space<vmem>>, vector<8x32xf32>
    %2 = arith.subf %0, %1 : vector<8x32xf32>
    %3 = arith.mulf %0, %1 : vector<8x32xf32>
    %4 = arith.mulf %0, %1 : vector<8x32xf32>
    %cst = arith.constant dense<0.000000e+00> : vector<8xf32>
    %5 = vector.multi_reduction <add>, %4, %cst [1] : vector<8x32xf32> to vector<8xf32>
    %6 = vector.shape_cast %5 : vector<8xf32> to vector<8x1xf32>
    %7 = arith.mulf %0, %0 : vector<8x32xf32>
    %cst_3 = arith.constant dense<0.000000e+00> : vector<8xf32>
    %8 = vector.multi_reduction <add>, %7, %cst_3 [1] : vector<8x32xf32> to vector<8xf32>
    %9 = vector.shape_cast %8 : vector<8xf32> to vector<8x1xf32>
    %10 = math.sqrt %9 : vector<8x1xf32>
    %11 = arith.mulf %1, %1 : vector<8x32xf32>
    %cst_4 = arith.constant dense<0.000000e+00> : vector<8xf32>
    %12 = vector.multi_reduction <add>, %11, %cst_4 [1] : vector<8x32xf32> to vector<8xf32>
    %13 = vector.shape_cast %12 : vector<8xf32> to vector<8x1xf32>
    %14 = math.sqrt %13 : vector<8x1xf32>
    %15 = arith.mulf %10, %14 : vector<8x1xf32>
    %cst_5 = arith.constant 9.99999997E-7 : f32
    %16 = vector.broadcast %cst_5 : f32 to vector<8x1xf32>
    %17 = arith.maximumf %15, %16 : vector<8x1xf32>
    %18 = arith.divf %6, %17 : vector<8x1xf32>
    %19 = arith.subf %0, %1 : vector<8x32xf32>
    %cst_6 = arith.constant 9.99999997E-7 : f32
    %20 = vector.broadcast %cst_6 : f32 to vector<8x32xf32>
    %21 = arith.addf %19, %20 : vector<8x32xf32>
    %22 = arith.mulf %21, %21 : vector<8x32xf32>
    %cst_7 = arith.constant dense<0.000000e+00> : vector<8xf32>
    %23 = vector.multi_reduction <add>, %22, %cst_7 [1] : vector<8x32xf32> to vector<8xf32>
    %24 = vector.shape_cast %23 : vector<8xf32> to vector<8x1xf32>
    %25 = math.sqrt %24 : vector<8x1xf32>
    %c0_8 = arith.constant 0 : index
    %c0_9 = arith.constant 0 : index
    %26 = vector.load %arg3[%c0_8, %c0_9] : memref<32x16xf32, #tpu.memory_space<vmem>>, vector<32x16xf32>
    %cst_10 = arith.constant dense<0.000000e+00> : vector<8x16xf32>
    %27 = tpu.matmul %1, %26, %cst_10 {dimension_numbers = #tpu.dot_dimension_numbers<[1], [0], [0], [1], [0, 0, 1, 1], [], []>} : vector<8x32xf32>, vector<32x16xf32>, vector<8x16xf32> -> vector<8x16xf32>
    %c0_11 = arith.constant 0 : index
    %c0_12 = arith.constant 0 : index
    %28 = vector.load %arg4[%c0_11, %c0_12] : memref<32x16xf32, #tpu.memory_space<vmem>>, vector<32x16xf32>
    %cst_13 = arith.constant dense<0.000000e+00> : vector<8x16xf32>
    %29 = tpu.matmul %0, %28, %cst_13 {dimension_numbers = #tpu.dot_dimension_numbers<[1], [0], [0], [1], [0, 0, 1, 1], [], []>} : vector<8x32xf32>, vector<32x16xf32>, vector<8x16xf32> -> vector<8x16xf32>
    %30 = arith.addf %27, %29 : vector<8x16xf32>
    %c0_14 = arith.constant 0 : index
    %c0_15 = arith.constant 0 : index
    %31 = vector.load %arg5[%c0_14, %c0_15] : memref<1x16xf32, #tpu.memory_space<vmem>>, vector<1x16xf32>
    %32 = vector.broadcast %31 : vector<1x16xf32> to vector<8x16xf32>
    %33 = arith.addf %30, %32 : vector<8x16xf32>
    %cst_16 = arith.constant 0.000000e+00 : f32
    %34 = vector.broadcast %cst_16 : f32 to vector<8x16xf32>
    %35 = arith.maximumf %33, %34 : vector<8x16xf32>
    %c0_17 = arith.constant 0 : index
    %c0_18 = arith.constant 0 : index
    %36 = vector.load %arg6[%c0_17, %c0_18] : memref<32x32xf32, #tpu.memory_space<vmem>>, vector<32x32xf32>
    %cst_19 = arith.constant dense<0.000000e+00> : vector<8x32xf32>
    %37 = tpu.matmul %1, %36, %cst_19 {dimension_numbers = #tpu.dot_dimension_numbers<[1], [0], [0], [1], [0, 0, 1, 1], [], []>} : vector<8x32xf32>, vector<32x32xf32>, vector<8x32xf32> -> vector<8x32xf32>
    %c0_20 = arith.constant 0 : index
    %c0_21 = arith.constant 0 : index
    %38 = vector.load %arg7[%c0_20, %c0_21] : memref<1x32xf32, #tpu.memory_space<vmem>>, vector<1x32xf32>
    %39 = vector.broadcast %38 : vector<1x32xf32> to vector<8x32xf32>
    %40 = arith.addf %37, %39 : vector<8x32xf32>
    %41 = arith.mulf %40, %0 : vector<8x32xf32>
    %cst_22 = arith.constant dense<0.000000e+00> : vector<8xf32>
    %42 = vector.multi_reduction <add>, %41, %cst_22 [1] : vector<8x32xf32> to vector<8xf32>
    %43 = vector.shape_cast %42 : vector<8xf32> to vector<8x1xf32>
    %c0_23 = arith.constant 0 : index
    %c0_24 = arith.constant 0 : index
    %44 = vector.load %arg8[%c0_23, %c0_24] : memref<32x32xf32, #tpu.memory_space<vmem>>, vector<32x32xf32>
    %cst_25 = arith.constant dense<0.000000e+00> : vector<8x32xf32>
    %45 = tpu.matmul %1, %44, %cst_25 {dimension_numbers = #tpu.dot_dimension_numbers<[1], [0], [0], [1], [0, 0, 1, 1], [], []>} : vector<8x32xf32>, vector<32x32xf32>, vector<8x32xf32> -> vector<8x32xf32>
    %c0_26 = arith.constant 0 : index
    %c0_27 = arith.constant 0 : index
    %46 = vector.load %arg9[%c0_26, %c0_27] : memref<1x32xf32, #tpu.memory_space<vmem>>, vector<1x32xf32>
    %47 = vector.broadcast %46 : vector<1x32xf32> to vector<8x32xf32>
    %48 = arith.addf %45, %47 : vector<8x32xf32>
    %49 = arith.mulf %48, %0 : vector<8x32xf32>
    %cst_28 = arith.constant dense<0.000000e+00> : vector<8xf32>
    %50 = vector.multi_reduction <add>, %49, %cst_28 [1] : vector<8x32xf32> to vector<8xf32>
    %51 = vector.shape_cast %50 : vector<8xf32> to vector<8x1xf32>
    %c0_29 = arith.constant 0 : index
    %c0_30 = arith.constant 0 : index
    %52 = vector.load %arg10[%c0_29, %c0_30] : memref<32x2xf32, #tpu.memory_space<vmem>>, vector<32x2xf32>
    %cst_31 = arith.constant dense<0.000000e+00> : vector<8x2xf32>
    %53 = tpu.matmul %1, %52, %cst_31 {dimension_numbers = #tpu.dot_dimension_numbers<[1], [0], [0], [1], [0, 0, 1, 1], [], []>} : vector<8x32xf32>, vector<32x2xf32>, vector<8x2xf32> -> vector<8x2xf32>
    %c0_32 = arith.constant 0 : index
    %c0_33 = arith.constant 0 : index
    %54 = vector.load %arg11[%c0_32, %c0_33] : memref<32x2xf32, #tpu.memory_space<vmem>>, vector<32x2xf32>
    %cst_34 = arith.constant dense<0.000000e+00> : vector<8x2xf32>
    %55 = tpu.matmul %0, %54, %cst_34 {dimension_numbers = #tpu.dot_dimension_numbers<[1], [0], [0], [1], [0, 0, 1, 1], [], []>} : vector<8x32xf32>, vector<32x2xf32>, vector<8x2xf32> -> vector<8x2xf32>
    %56 = arith.addf %53, %55 : vector<8x2xf32>
    %c0_35 = arith.constant 0 : index
    %c0_36 = arith.constant 0 : index
    %57 = vector.load %arg12[%c0_35, %c0_36] : memref<1x2xf32, #tpu.memory_space<vmem>>, vector<1x2xf32>
    %58 = vector.broadcast %57 : vector<1x2xf32> to vector<8x2xf32>
    %59 = arith.addf %56, %58 : vector<8x2xf32>
    %60 = tpu.concatenate %43, %51 in 1 : vector<8x1xf32>, vector<8x1xf32> -> vector<8x2xf32>
    %61 = arith.addf %60, %59 : vector<8x2xf32>
    %cst_37 = arith.constant 0.000000e+00 : f32
    %62 = vector.broadcast %cst_37 : f32 to vector<8x2xf32>
    %63 = arith.maximumf %61, %62 : vector<8x2xf32>
    %64 = tpu.concatenate %2, %3, %18, %25, %35, %63 in 1 : vector<8x32xf32>, vector<8x32xf32>, vector<8x1xf32>, vector<8x1xf32>, vector<8x16xf32>, vector<8x2xf32> -> vector<8x84xf32>
    %c0_38 = arith.constant 0 : index
    %c0_39 = arith.constant 0 : index
    %65 = vector.load %arg13[%c0_38, %c0_39] : memref<8x84xf32, #tpu.memory_space<vmem>>, vector<8x84xf32>
    tpu.vector_store %arg13[%c0_38, %c0_39], %64 {strides = array<i32>} : memref<8x84xf32, #tpu.memory_space<vmem>>, vector<8x84xf32>,
    return
  }
  func.func @transform_0(%arg0: i32) -> (i32, i32) {
    %c0_i32 = arith.constant 0 : i32
    %c0_i32_0 = arith.constant 0 : i32
    return %arg0, %c0_i32 : i32, i32
  }
  func.func @transform_1(%arg0: i32) -> (i32, i32) {
    %c0_i32 = arith.constant 0 : i32
    %c0_i32_0 = arith.constant 0 : i32
    return %arg0, %c0_i32 : i32, i32
  }
  func.func @transform_2(%arg0: i32) -> (i32, i32) {
    %c0_i32 = arith.constant 0 : i32
    %c0_i32_0 = arith.constant 0 : i32
    %c0_i32_1 = arith.constant 0 : i32
    return %c0_i32, %c0_i32_0 : i32, i32
  }
  func.func @transform_3(%arg0: i32) -> (i32, i32) {
    %c0_i32 = arith.constant 0 : i32
    %c0_i32_0 = arith.constant 0 : i32
    %c0_i32_1 = arith.constant 0 : i32
    return %c0_i32, %c0_i32_0 : i32, i32
  }
  func.func @transform_4(%arg0: i32) -> (i32, i32) {
    %c0_i32 = arith.constant 0 : i32
    %c0_i32_0 = arith.constant 0 : i32
    %c0_i32_1 = arith.constant 0 : i32
    return %c0_i32, %c0_i32_0 : i32, i32
  }
  func.func @transform_5(%arg0: i32) -> (i32, i32) {
    %c0_i32 = arith.constant 0 : i32
    %c0_i32_0 = arith.constant 0 : i32
    %c0_i32_1 = arith.constant 0 : i32
    return %c0_i32, %c0_i32_0 : i32, i32
  }
  func.func @transform_6(%arg0: i32) -> (i32, i32) {
    %c0_i32 = arith.constant 0 : i32
    %c0_i32_0 = arith.constant 0 : i32
    %c0_i32_1 = arith.constant 0 : i32
    return %c0_i32, %c0_i32_0 : i32, i32
  }
  func.func @transform_7(%arg0: i32) -> (i32, i32) {
    %c0_i32 = arith.constant 0 : i32
    %c0_i32_0 = arith.constant 0 : i32
    %c0_i32_1 = arith.constant 0 : i32
    return %c0_i32, %c0_i32_0 : i32, i32
  }
  func.func @transform_8(%arg0: i32) -> (i32, i32) {
    %c0_i32 = arith.constant 0 : i32
    %c0_i32_0 = arith.constant 0 : i32
    %c0_i32_1 = arith.constant 0 : i32
    return %c0_i32, %c0_i32_0 : i32, i32
  }
  func.func @transform_9(%arg0: i32) -> (i32, i32) {
    %c0_i32 = arith.constant 0 : i32
    %c0_i32_0 = arith.constant 0 : i32
    %c0_i32_1 = arith.constant 0 : i32
    return %c0_i32, %c0_i32_0 : i32, i32
  }
  func.func @transform_10(%arg0: i32) -> (i32, i32) {
    %c0_i32 = arith.constant 0 : i32
    %c0_i32_0 = arith.constant 0 : i32
    %c0_i32_1 = arith.constant 0 : i32
    return %c0_i32, %c0_i32_0 : i32, i32
  }
  func.func @transform_11(%arg0: i32) -> (i32, i32) {
    %c0_i32 = arith.constant 0 : i32
    %c0_i32_0 = arith.constant 0 : i32
    %c0_i32_1 = arith.constant 0 : i32
    return %c0_i32, %c0_i32_0 : i32, i32
  }
  func.func @transform_12(%arg0: i32) -> (i32, i32) {
    %c0_i32 = arith.constant 0 : i32
    %c0_i32_0 = arith.constant 0 : i32
    return %arg0, %c0_i32 : i32, i32
  }
}

</mosaic_0001>

<llo_original>
// kernel: hierachical_rnn_forward.15
$region0: #{hierachical_rnn_forward.15}
  #allocation0 [shape = 'u32[]', space=smem, size = 0x4, offset = 0x4, fixed_abs, tag = 'smem constant byte address 0x4 - core index']
  #allocation1 [shape = 'u32[144,128]{1,0:T(1,128)}', space=vmem, size = 0x12000, scoped, tag = 'internal scratch']
  #allocation2 [shape = 'f32[1,1]{1,0:T(1,128)S(1)}', space=vmem, size = 0x200, scoped, tag = 'scoped memory for hierachical_rnn_forward.15']
  %s0 = inlined_call_operand.vmem [shape: f32[8,168], index: 0, kind: input, shape index: {}]
  %s1 = inlined_call_operand.vmem [shape: f32[168,32], index: 1, kind: input, shape index: {}]
  %s2 = inlined_call_operand.vmem [shape: f32[1,32], index: 2, kind: input, shape index: {}]
  %s3 = inlined_call_operand.vmem [shape: f32[32,1], index: 3, kind: input, shape index: {}]
  %s4 = inlined_call_operand.<no memory space> [shape: f32[1,1], index: 4, kind: input, shape index: {}]
  %s5 = inlined_call_operand.vmem [shape: f32[8,1], index: 5, kind: output, shape index: {}]
  %s6 = sld [smem:[#allocation0]]
  $region30: #{hierachical_rnn_forward.15} parent=0
    _
  %s8 = ssub.s32 1, %s6
  %s9 = scalar_select 0, %s8, %s6
  %v10 = vstv %s4
  %11 = vst [vmem:[#allocation2] sm:$0x1] %v10
  // Predicated region
  $region2: #{hierachical_rnn_forward.15} parent=0 // pred_check
    _
  $region3: #{hierachical_rnn_forward.15} parent=0 // pred_check_branch
    %13 = sbr.rel (0) target = $region5
  $region4: #{hierachical_rnn_forward.15} parent=0 // pred_region
    _
  $region5: #{hierachical_rnn_forward.15} parent=0 // pred_fallthru
    _
  // Predicated region
  $region6: #{hierachical_rnn_forward.15} parent=0 // pred_check
    _
  $region7: #{hierachical_rnn_forward.15} parent=0 // pred_check_branch
    %15 = sbr.rel (0) target = $region9
  $region8: #{hierachical_rnn_forward.15} parent=0 // pred_region
    _
  $region9: #{hierachical_rnn_forward.15} parent=0 // pred_fallthru
    _
  // Predicated region
  $region10: #{hierachical_rnn_forward.15} parent=0 // pred_check
    _
  $region11: #{hierachical_rnn_forward.15} parent=0 // pred_check_branch
    %17 = sbr.rel (0) target = $region13
  $region12: #{hierachical_rnn_forward.15} parent=0 // pred_region
    _
  $region13: #{hierachical_rnn_forward.15} parent=0 // pred_fallthru
    _
  // Predicated region
  $region14: #{hierachical_rnn_forward.15} parent=0 // pred_check
    _
  $region15: #{hierachical_rnn_forward.15} parent=0 // pred_check_branch
    %19 = sbr.rel (0) target = $region17
  $region16: #{hierachical_rnn_forward.15} parent=0 // pred_region
    _
  $region17: #{hierachical_rnn_forward.15} parent=0 // pred_fallthru
    _
  // Predicated region
  $region18: #{hierachical_rnn_forward.15} parent=0 // pred_check
    _
  $region19: #{hierachical_rnn_forward.15} parent=0 // pred_check_branch
    %21 = sbr.rel (0) target = $region21
  $region20: #{hierachical_rnn_forward.15} parent=0 // pred_region
    _
  $region21: #{hierachical_rnn_forward.15} parent=0 // pred_fallthru
    _
  %v22 = vld [vmem:[%s0] sm:$0xff]
  %v23 = vld [vmem:[%s0 + $0x8] sm:$0xff]
  %v24 = vld [vmem:[%s1] sm:$0xff]
  %v25 = vld [vmem:[%s1 + $0x8] sm:$0xff]
  %v26 = vld [vmem:[%s1 + $0x10] sm:$0xff]
  %v27 = vld [vmem:[%s1 + $0x18] sm:$0xff]
  %v28 = vld [vmem:[%s1 + $0x20] sm:$0xff]
  %v29 = vld [vmem:[%s1 + $0x28] sm:$0xff]
  %v30 = vld [vmem:[%s1 + $0x30] sm:$0xff]
  %v31 = vld [vmem:[%s1 + $0x38] sm:$0xff]
  %v32 = vld [vmem:[%s1 + $0x40] sm:$0xff]
  %v33 = vld [vmem:[%s1 + $0x48] sm:$0xff]
  %v34 = vld [vmem:[%s1 + $0x50] sm:$0xff]
  %v35 = vld [vmem:[%s1 + $0x58] sm:$0xff]
  %v36 = vld [vmem:[%s1 + $0x60] sm:$0xff]
  %v37 = vld [vmem:[%s1 + $0x68] sm:$0xff]
  %v38 = vld [vmem:[%s1 + $0x70] sm:$0xff]
  %v39 = vld [vmem:[%s1 + $0x78] sm:$0xff]
  %v40 = vld [vmem:[%s1 + $0x80] sm:$0xff]
  %v41 = vld [vmem:[%s1 + $0x88] sm:$0xff]
  %v42 = vld [vmem:[%s1 + $0x90] sm:$0xff]
  %v43 = vld [vmem:[%s1 + $0x98] sm:$0xff]
  %v44 = vld [vmem:[%s1 + $0xa0] sm:$0xff]
  %v45 = vld [vmem:[%s2] sm:$0x1]
  %v47 = vlaneseq
  %v48 = vshrl.u32 %v47, 7
  %v49 = vsub.s32 0, %v48
  %v50 = vrot.slane %v45, %v49
  %vm52 = vcmask 326656
  %v54 = vsel %vm52, %v23, 0
  %56 = vmatprep.subr.mxu0 0.0
  %57 = vmatpush1.msra.mxu0 %v24
  %58 = vmatprep.subr.mxu0 0.0
  %59 = vmatpush1.msra.mxu0 %v25
  %60 = vmatprep.subr.mxu0 0.0
  %61 = vmatpush1.msra.mxu0 %v26
  %62 = vmatprep.subr.mxu0 0.0
  %63 = vmatpush1.msra.mxu0 %v27
  %64 = vmatprep.subr.mxu0 0.0
  %65 = vmatpush1.msra.mxu0 %v28
  %66 = vmatprep.subr.mxu0 0.0
  %67 = vmatpush1.msra.mxu0 %v29
  %68 = vmatprep.subr.mxu0 0.0
  %69 = vmatpush1.msra.mxu0 %v30
  %70 = vmatprep.subr.mxu0 0.0
  %71 = vmatpush1.msra.mxu0 %v31
  %72 = vmatprep.subr.mxu0 0.0
  %73 = vmatpush1.msra.mxu0 %v32
  %74 = vmatprep.subr.mxu0 0.0
  %75 = vmatpush1.msra.mxu0 %v33
  %76 = vmatprep.subr.mxu0 0.0
  %77 = vmatpush1.msra.mxu0 %v34
  %78 = vmatprep.subr.mxu0 0.0
  %79 = vmatpush1.msra.mxu0 %v35
  %80 = vmatprep.subr.mxu0 0.0
  %81 = vmatpush1.msra.mxu0 %v36
  %82 = vmatprep.subr.mxu0 0.0
  %83 = vmatpush1.msra.mxu0 %v37
  %84 = vmatprep.subr.mxu0 0.0
  %85 = vmatpush1.msra.mxu0 %v38
  %86 = vmatprep.subr.mxu0 0.0
  %87 = vmatpush1.msra.mxu0 %v39
  %88 = vmatprep.subr.mxu0 0.0
  %89 = vmatpush1.msra.mxu0 %v40
  %90 = vmatprep.subr.mxu0 0.0
  %91 = vmatpush1.msra.mxu0 %v41
  %92 = vmatprep.subr.mxu0 0.0
  %93 = vmatpush1.msra.mxu0 %v42
  %94 = vmatprep.subr.mxu0 0.0
  %95 = vmatpush1.msra.mxu0 %v43
  %96 = vmatprep.subr.mxu0 0.0
  %97 = vmatpush1.msra.mxu0 %v44
  %98 = vmatprep.subr.mxu0 0.0
  %99 = vmatpush1.msra.mxu0 0.0
  %100 = vmatprep.subr.mxu0 0.0
  %101 = vmatpush1.msra.mxu0 0.0
  %102 = vmatprep.subr.mxu0 0.0
  %103 = vmatpush1.msra.mxu0 0.0
  %104 = vmatprep.subr.mxu0 0.0
  %105 = vmatpush1.msra.mxu0 0.0
  %106 = vmatprep.subr.mxu0 0.0
  %107 = vmatpush1.msra.mxu0 0.0
  %108 = vmatprep.subr.mxu0 0.0
  %109 = vmatpush1.msra.mxu0 0.0
  %110 = vmatprep.subr.mxu0 0.0
  %111 = vmatpush1.msra.mxu0 0.0
  %112 = vmatprep.subr.mxu0 0.0
  %113 = vmatpush1.msra.mxu0 0.0
  %114 = vmatprep.subr.mxu0 0.0
  %115 = vmatpush1.msra.mxu0 0.0
  %116 = vmatprep.subr.mxu0 0.0
  %117 = vmatpush1.msra.mxu0 0.0
  %118 = vmatprep.subr.mxu0 0.0
  %119 = vmatpush1.msra.mxu0 0.0
  %120 = vmatprep.mubr.f32.mxu0 %v54
  %121 = vmatmul.mubr.f32.gmra.mrb[0].mxu0 %v22
  %v122 = vpop.f32.mrb[0].mxu0
  %v123 = vadd.f32 %v50, %v122
  %v124 = vpop.f32.mrb[0].mxu0
  %125 = vdwg.mxu0
  %v126 = vmax.f32 %v123, 0.0
  %v127 = vld [vmem:[%s3] sm:$0xff]
  %v128 = vld [vmem:[%s3 + $0x8] sm:$0xff]
  %v129 = vld [vmem:[%s3 + $0x10] sm:$0xff]
  %v130 = vld [vmem:[%s3 + $0x18] sm:$0xff]
  %v131 = vld [vmem:[#allocation2] sm:$0x1]
  %v133 = vlaneseq
  %v134 = vshrl.u32 %v133, 7
  %v135 = vsub.s32 0, %v134
  %v136 = vrot.slane %v131, %v135
  %vm138 = vcmask 261120
  %v140 = vsel %vm138, %v126, 0
  %142 = vmatprep.subr.mxu0 0.0
  %143 = vmatpush1.msra.mxu0 %v127
  %144 = vmatprep.subr.mxu0 0.0
  %145 = vmatpush1.msra.mxu0 %v128
  %146 = vmatprep.subr.mxu0 0.0
  %147 = vmatpush1.msra.mxu0 %v129
  %148 = vmatprep.subr.mxu0 0.0
  %149 = vmatpush1.msra.mxu0 %v130
  %150 = vmatprep.subr.mxu0 0.0
  %151 = vmatpush1.msra.mxu0 0.0
  %152 = vmatprep.subr.mxu0 0.0
  %153 = vmatpush1.msra.mxu0 0.0
  %154 = vmatprep.subr.mxu0 0.0
  %155 = vmatpush1.msra.mxu0 0.0
  %156 = vmatprep.subr.mxu0 0.0
  %157 = vmatpush1.msra.mxu0 0.0
  %158 = vmatprep.subr.mxu0 0.0
  %159 = vmatpush1.msra.mxu0 0.0
  %160 = vmatprep.subr.mxu0 0.0
  %161 = vmatpush1.msra.mxu0 0.0
  %162 = vmatprep.subr.mxu0 0.0
  %163 = vmatpush1.msra.mxu0 0.0
  %164 = vmatprep.subr.mxu0 0.0
  %165 = vmatpush1.msra.mxu0 0.0
  %166 = vmatprep.subr.mxu0 0.0
  %167 = vmatpush1.msra.mxu0 0.0
  %168 = vmatprep.subr.mxu0 0.0
  %169 = vmatpush1.msra.mxu0 0.0
  %170 = vmatprep.subr.mxu0 0.0
  %171 = vmatpush1.msra.mxu0 0.0
  %172 = vmatprep.subr.mxu0 0.0
  %173 = vmatpush1.msra.mxu0 0.0
  %174 = vmatprep.subr.mxu0 0.0
  %175 = vmatpush1.msra.mxu0 0.0
  %176 = vmatprep.subr.mxu0 0.0
  %177 = vmatpush1.msra.mxu0 0.0
  %178 = vmatprep.subr.mxu0 0.0
  %179 = vmatpush1.msra.mxu0 0.0
  %180 = vmatprep.subr.mxu0 0.0
  %181 = vmatpush1.msra.mxu0 0.0
  %182 = vmatprep.subr.mxu0 0.0
  %183 = vmatpush1.msra.mxu0 0.0
  %184 = vmatprep.subr.mxu0 0.0
  %185 = vmatpush1.msra.mxu0 0.0
  %186 = vmatprep.subr.mxu0 0.0
  %187 = vmatpush1.msra.mxu0 0.0
  %188 = vmatprep.subr.mxu0 0.0
  %189 = vmatpush1.msra.mxu0 0.0
  %190 = vmatprep.subr.mxu0 0.0
  %191 = vmatpush1.msra.mxu0 0.0
  %192 = vmatprep.subr.mxu0 0.0
  %193 = vmatpush1.msra.mxu0 0.0
  %194 = vmatprep.subr.mxu0 0.0
  %195 = vmatpush1.msra.mxu0 0.0
  %196 = vmatprep.subr.mxu0 0.0
  %197 = vmatpush1.msra.mxu0 0.0
  %198 = vmatprep.subr.mxu0 0.0
  %199 = vmatpush1.msra.mxu0 0.0
  %200 = vmatprep.subr.mxu0 0.0
  %201 = vmatpush1.msra.mxu0 0.0
  %202 = vmatprep.subr.mxu0 0.0
  %203 = vmatpush1.msra.mxu0 0.0
  %204 = vmatprep.subr.mxu0 0.0
  %205 = vmatpush1.msra.mxu0 0.0
  %206 = vmatprep.mubr.f32.mxu0 0.0
  %207 = vmatmul.mubr.f32.gmra.mrb[0].mxu0 %v140
  %v208 = vpop.f32.mrb[0].mxu0
  %v209 = vadd.f32 %v136, %v208
  %v210 = vpop.f32.mrb[0].mxu0
  %211 = vdwg.mxu0
  %v212 = vxor.u32 %v209, 2147483648
  %v213 = vmul.f32 %v212, 1.442695
  %v214 = vpow.pop %v213
  %v215 = vadd.f32 %v214, 1.0
  %v216 = vrcp.pop %v215
  %v217 = vmul.f32 1.0, %v216
  %vm218 = vcmask 7168
  %219 = vst.msk [vmem:[%s5] sm:$0xff] %vm218, %v217
  // Predicated region
  $region22: #{hierachical_rnn_forward.15} parent=0 // pred_check
    _
  $region23: #{hierachical_rnn_forward.15} parent=0 // pred_check_branch
    %221 = sbr.rel (0) target = $region25
  $region24: #{hierachical_rnn_forward.15} parent=0 // pred_region
    _
  $region25: #{hierachical_rnn_forward.15} parent=0 // pred_fallthru
    _
  // Predicated region
  $region26: #{hierachical_rnn_forward.15} parent=0 // pred_check
    _
  $region27: #{hierachical_rnn_forward.15} parent=0 // pred_check_branch
    %223 = sbr.rel (0) target = $region29
  $region28: #{hierachical_rnn_forward.15} parent=0 // pred_region
    _
  $region29: #{hierachical_rnn_forward.15} parent=0 // pred_fallthru
    _

// kernel: hierachical_rnn_forward.14
$region0: #{hierachical_rnn_forward.14}
  #allocation0 [shape = 'u32[]', space=smem, size = 0x4, offset = 0x4, fixed_abs, tag = 'smem constant byte address 0x4 - core index']
  #allocation1 [shape = 'u32[144,128]{1,0:T(1,128)}', space=vmem, size = 0x12000, scoped, tag = 'internal scratch']
  %s0 = inlined_call_operand.vmem [shape: f32[8,32], index: 0, kind: input, shape index: {}]
  %s1 = inlined_call_operand.vmem [shape: f32[8,32], index: 1, kind: input, shape index: {}]
  %s2 = inlined_call_operand.vmem [shape: f32[32,16], index: 2, kind: input, shape index: {}]
  %s3 = inlined_call_operand.vmem [shape: f32[32,16], index: 3, kind: input, shape index: {}]
  %s4 = inlined_call_operand.vmem [shape: f32[1,16], index: 4, kind: input, shape index: {}]
  %s5 = inlined_call_operand.vmem [shape: f32[32,32], index: 5, kind: input, shape index: {}]
  %s6 = inlined_call_operand.vmem [shape: f32[1,32], index: 6, kind: input, shape index: {}]
  %s7 = inlined_call_operand.vmem [shape: f32[32,32], index: 7, kind: input, shape index: {}]
  %s8 = inlined_call_operand.vmem [shape: f32[1,32], index: 8, kind: input, shape index: {}]
  %s9 = inlined_call_operand.vmem [shape: f32[32,2], index: 9, kind: input, shape index: {}]
  %s10 = inlined_call_operand.vmem [shape: f32[32,2], index: 10, kind: input, shape index: {}]
  %s11 = inlined_call_operand.vmem [shape: f32[1,2], index: 11, kind: input, shape index: {}]
  %s12 = inlined_call_operand.vmem [shape: f32[8,84], index: 12, kind: output, shape index: {}]
  %s13 = sld [smem:[#allocation0]]
  $region58: #{hierachical_rnn_forward.14} parent=0
    _
  %s15 = ssub.s32 1, %s13
  %s16 = scalar_select 0, %s15, %s13
  // Predicated region
  $region2: #{hierachical_rnn_forward.14} parent=0 // pred_check
    _
  $region3: #{hierachical_rnn_forward.14} parent=0 // pred_check_branch
    %18 = sbr.rel (0) target = $region5
  $region4: #{hierachical_rnn_forward.14} parent=0 // pred_region
    _
  $region5: #{hierachical_rnn_forward.14} parent=0 // pred_fallthru
    _
  // Predicated region
  $region6: #{hierachical_rnn_forward.14} parent=0 // pred_check
    _
  $region7: #{hierachical_rnn_forward.14} parent=0 // pred_check_branch
    %20 = sbr.rel (0) target = $region9
  $region8: #{hierachical_rnn_forward.14} parent=0 // pred_region
    _
  $region9: #{hierachical_rnn_forward.14} parent=0 // pred_fallthru
    _
  // Predicated region
  $region10: #{hierachical_rnn_forward.14} parent=0 // pred_check
    _
  $region11: #{hierachical_rnn_forward.14} parent=0 // pred_check_branch
    %22 = sbr.rel (0) target = $region13
  $region12: #{hierachical_rnn_forward.14} parent=0 // pred_region
    _
  $region13: #{hierachical_rnn_forward.14} parent=0 // pred_fallthru
    _
  // Predicated region
  $region14: #{hierachical_rnn_forward.14} parent=0 // pred_check
    _
  $region15: #{hierachical_rnn_forward.14} parent=0 // pred_check_branch
    %24 = sbr.rel (0) target = $region17
  $region16: #{hierachical_rnn_forward.14} parent=0 // pred_region
    _
  $region17: #{hierachical_rnn_forward.14} parent=0 // pred_fallthru
    _
  // Predicated region
  $region18: #{hierachical_rnn_forward.14} parent=0 // pred_check
    _
  $region19: #{hierachical_rnn_forward.14} parent=0 // pred_check_branch
    %26 = sbr.rel (0) target = $region21
  $region20: #{hierachical_rnn_forward.14} parent=0 // pred_region
    _
  $region21: #{hierachical_rnn_forward.14} parent=0 // pred_fallthru
    _
  // Predicated region
  $region22: #{hierachical_rnn_forward.14} parent=0 // pred_check
    _
  $region23: #{hierachical_rnn_forward.14} parent=0 // pred_check_branch
    %28 = sbr.rel (0) target = $region25
  $region24: #{hierachical_rnn_forward.14} parent=0 // pred_region
    _
  $region25: #{hierachical_rnn_forward.14} parent=0 // pred_fallthru
    _
  // Predicated region
  $region26: #{hierachical_rnn_forward.14} parent=0 // pred_check
    _
  $region27: #{hierachical_rnn_forward.14} parent=0 // pred_check_branch
    %30 = sbr.rel (0) target = $region29
  $region28: #{hierachical_rnn_forward.14} parent=0 // pred_region
    _
  $region29: #{hierachical_rnn_forward.14} parent=0 // pred_fallthru
    _
  // Predicated region
  $region30: #{hierachical_rnn_forward.14} parent=0 // pred_check
    _
  $region31: #{hierachical_rnn_forward.14} parent=0 // pred_check_branch
    %32 = sbr.rel (0) target = $region33
  $region32: #{hierachical_rnn_forward.14} parent=0 // pred_region
    _
  $region33: #{hierachical_rnn_forward.14} parent=0 // pred_fallthru
    _
  // Predicated region
  $region34: #{hierachical_rnn_forward.14} parent=0 // pred_check
    _
  $region35: #{hierachical_rnn_forward.14} parent=0 // pred_check_branch
    %34 = sbr.rel (0) target = $region37
  $region36: #{hierachical_rnn_forward.14} parent=0 // pred_region
    _
  $region37: #{hierachical_rnn_forward.14} parent=0 // pred_fallthru
    _
  // Predicated region
  $region38: #{hierachical_rnn_forward.14} parent=0 // pred_check
    _
  $region39: #{hierachical_rnn_forward.14} parent=0 // pred_check_branch
    %36 = sbr.rel (0) target = $region41
  $region40: #{hierachical_rnn_forward.14} parent=0 // pred_region
    _
  $region41: #{hierachical_rnn_forward.14} parent=0 // pred_fallthru
    _
  // Predicated region
  $region42: #{hierachical_rnn_forward.14} parent=0 // pred_check
    _
  $region43: #{hierachical_rnn_forward.14} parent=0 // pred_check_branch
    %38 = sbr.rel (0) target = $region45
  $region44: #{hierachical_rnn_forward.14} parent=0 // pred_region
    _
  $region45: #{hierachical_rnn_forward.14} parent=0 // pred_fallthru
    _
  // Predicated region
  $region46: #{hierachical_rnn_forward.14} parent=0 // pred_check
    _
  $region47: #{hierachical_rnn_forward.14} parent=0 // pred_check_branch
    %40 = sbr.rel (0) target = $region49
  $region48: #{hierachical_rnn_forward.14} parent=0 // pred_region
    _
  $region49: #{hierachical_rnn_forward.14} parent=0 // pred_fallthru
    _
  %v41 = vld [vmem:[%s0] sm:$0xff]
  %v42 = vld [vmem:[%s1] sm:$0xff]
  %v43 = vsub.f32 %v41, %v42
  %v44 = vmul.f32 %v41, %v42
  %vm45 = vcmask 261120
  %v46 = vsel %vm45, %v44, 0.0
  %47 = vadd.xlane.f32.xlu0 %v46
  %v48 = vpop.xlane.xlu0 %47
  %v49 = vmul.f32 %v41, %v41
  %v50 = vsel %vm45, %v49, 0.0
  %51 = vadd.xlane.f32.xlu0 %v50
  %v52 = vpop.xlane.xlu0 %51
  %v53 = vrsqrt.pop %v52
  %v54 = vmul.f32 %v52, %v53
  %vm55 = vcmp.eq.f32.partialorder %v52, inf
  %v56 = vsel %vm55, %v52, %v54
  %vm57 = vcmp.eq.f32.partialorder %v52, 0.0
  %v58 = vand.u32 %v52, 2147483648
  %v59 = vsel %vm57, %v58, %v56
  %v60 = vmul.f32 %v42, %v42
  %v61 = vsel %vm45, %v60, 0.0
  %62 = vadd.xlane.f32.xlu0 %v61
  %v63 = vpop.xlane.xlu0 %62
  %v64 = vrsqrt.pop %v63
  %v65 = vmul.f32 %v63, %v64
  %vm66 = vcmp.eq.f32.partialorder %v63, inf
  %v67 = vsel %vm66, %v63, %v65
  %vm68 = vcmp.eq.f32.partialorder %v63, 0.0
  %v69 = vand.u32 %v63, 2147483648
  %v70 = vsel %vm68, %v69, %v67
  %v71 = vmul.f32 %v59, %v70
  %v72 = vmax.f32 %v71, 1e-06
  %v73 = vrcp.pop %v72
  %v74 = vmul.f32 %v48, %v73
  %v75 = vadd.f32 %v43, 1e-06
  %v76 = vmul.f32 %v75, %v75
  %v77 = vsel %vm45, %v76, 0.0
  %78 = vadd.xlane.f32.xlu0 %v77
  %v79 = vpop.xlane.xlu0 %78
  %v80 = vrsqrt.pop %v79
  %v81 = vmul.f32 %v79, %v80
  %vm82 = vcmp.eq.f32.partialorder %v79, inf
  %v83 = vsel %vm82, %v79, %v81
  %vm84 = vcmp.eq.f32.partialorder %v79, 0.0
  %v85 = vand.u32 %v79, 2147483648
  %v86 = vsel %vm84, %v85, %v83
  %v87 = vld [vmem:[%s2] sm:$0xff]
  %v88 = vld [vmem:[%s2 + $0x8] sm:$0xff]
  %v89 = vld [vmem:[%s2 + $0x10] sm:$0xff]
  %v90 = vld [vmem:[%s2 + $0x18] sm:$0xff]
  %v91 = vld [vmem:[%s3] sm:$0xff]
  %v92 = vld [vmem:[%s3 + $0x8] sm:$0xff]
  %v93 = vld [vmem:[%s3 + $0x10] sm:$0xff]
  %v94 = vld [vmem:[%s3 + $0x18] sm:$0xff]
  %v96 = vsel %vm45, %v41, 0
  %98 = vmatprep.subr.mxu0 0.0
  %99 = vmatpush1.msra.mxu0 %v91
  %100 = vmatprep.subr.mxu0 0.0
  %101 = vmatpush1.msra.mxu0 %v92
  %102 = vmatprep.subr.mxu0 0.0
  %103 = vmatpush1.msra.mxu0 %v93
  %104 = vmatprep.subr.mxu0 0.0
  %105 = vmatpush1.msra.mxu0 %v94
  %106 = vmatprep.subr.mxu0 0.0
  %107 = vmatpush1.msra.mxu0 0.0
  %108 = vmatprep.subr.mxu0 0.0
  %109 = vmatpush1.msra.mxu0 0.0
  %110 = vmatprep.subr.mxu0 0.0
  %111 = vmatpush1.msra.mxu0 0.0
  %112 = vmatprep.subr.mxu0 0.0
  %113 = vmatpush1.msra.mxu0 0.0
  %114 = vmatprep.subr.mxu0 0.0
  %115 = vmatpush1.msra.mxu0 0.0
  %116 = vmatprep.subr.mxu0 0.0
  %117 = vmatpush1.msra.mxu0 0.0
  %118 = vmatprep.subr.mxu0 0.0
  %119 = vmatpush1.msra.mxu0 0.0
  %120 = vmatprep.subr.mxu0 0.0
  %121 = vmatpush1.msra.mxu0 0.0
  %122 = vmatprep.subr.mxu0 0.0
  %123 = vmatpush1.msra.mxu0 0.0
  %124 = vmatprep.subr.mxu0 0.0
  %125 = vmatpush1.msra.mxu0 0.0
  %126 = vmatprep.subr.mxu0 0.0
  %127 = vmatpush1.msra.mxu0 0.0
  %128 = vmatprep.subr.mxu0 0.0
  %129 = vmatpush1.msra.mxu0 0.0
  %130 = vmatprep.subr.mxu0 0.0
  %131 = vmatpush1.msra.mxu0 0.0
  %132 = vmatprep.subr.mxu0 0.0
  %133 = vmatpush1.msra.mxu0 0.0
  %134 = vmatprep.subr.mxu0 0.0
  %135 = vmatpush1.msra.mxu0 0.0
  %136 = vmatprep.subr.mxu0 0.0
  %137 = vmatpush1.msra.mxu0 0.0
  %138 = vmatprep.subr.mxu0 0.0
  %139 = vmatpush1.msra.mxu0 0.0
  %140 = vmatprep.subr.mxu0 0.0
  %141 = vmatpush1.msra.mxu0 0.0
  %142 = vmatprep.subr.mxu0 0.0
  %143 = vmatpush1.msra.mxu0 0.0
  %144 = vmatprep.subr.mxu0 0.0
  %145 = vmatpush1.msra.mxu0 0.0
  %146 = vmatprep.subr.mxu0 0.0
  %147 = vmatpush1.msra.mxu0 0.0
  %148 = vmatprep.subr.mxu0 0.0
  %149 = vmatpush1.msra.mxu0 0.0
  %150 = vmatprep.subr.mxu0 0.0
  %151 = vmatpush1.msra.mxu0 0.0
  %152 = vmatprep.subr.mxu0 0.0
  %153 = vmatpush1.msra.mxu0 0.0
  %154 = vmatprep.subr.mxu0 0.0
  %155 = vmatpush1.msra.mxu0 0.0
  %156 = vmatprep.subr.mxu0 0.0
  %157 = vmatpush1.msra.mxu0 0.0
  %158 = vmatprep.subr.mxu0 0.0
  %159 = vmatpush1.msra.mxu0 0.0
  %160 = vmatprep.subr.mxu0 0.0
  %161 = vmatpush1.msra.mxu0 0.0
  %162 = vmatprep.mubr.f32.mxu0 0.0
  %163 = vmatmul.mubr.f32.gmra.mrb[0].mxu0 %v96
  %v164 = vpop.f32.mrb[0].mxu0
  %v165 = vadd.f32 0.0, %v164
  %v166 = vpop.f32.mrb[0].mxu0
  %167 = vdwg.mxu0
  %v169 = vsel %vm45, %v42, 0
  %171 = vmatprep.subr.mxu0 0.0
  %172 = vmatpush1.msra.mxu0 %v87
  %173 = vmatprep.subr.mxu0 0.0
  %174 = vmatpush1.msra.mxu0 %v88
  %175 = vmatprep.subr.mxu0 0.0
  %176 = vmatpush1.msra.mxu0 %v89
  %177 = vmatprep.subr.mxu0 0.0
  %178 = vmatpush1.msra.mxu0 %v90
  %179 = vmatprep.subr.mxu0 0.0
  %180 = vmatpush1.msra.mxu0 0.0
  %181 = vmatprep.subr.mxu0 0.0
  %182 = vmatpush1.msra.mxu0 0.0
  %183 = vmatprep.subr.mxu0 0.0
  %184 = vmatpush1.msra.mxu0 0.0
  %185 = vmatprep.subr.mxu0 0.0
  %186 = vmatpush1.msra.mxu0 0.0
  %187 = vmatprep.subr.mxu0 0.0
  %188 = vmatpush1.msra.mxu0 0.0
  %189 = vmatprep.subr.mxu0 0.0
  %190 = vmatpush1.msra.mxu0 0.0
  %191 = vmatprep.subr.mxu0 0.0
  %192 = vmatpush1.msra.mxu0 0.0
  %193 = vmatprep.subr.mxu0 0.0
  %194 = vmatpush1.msra.mxu0 0.0
  %195 = vmatprep.subr.mxu0 0.0
  %196 = vmatpush1.msra.mxu0 0.0
  %197 = vmatprep.subr.mxu0 0.0
  %198 = vmatpush1.msra.mxu0 0.0
  %199 = vmatprep.subr.mxu0 0.0
  %200 = vmatpush1.msra.mxu0 0.0
  %201 = vmatprep.subr.mxu0 0.0
  %202 = vmatpush1.msra.mxu0 0.0
  %203 = vmatprep.subr.mxu0 0.0
  %204 = vmatpush1.msra.mxu0 0.0
  %205 = vmatprep.subr.mxu0 0.0
  %206 = vmatpush1.msra.mxu0 0.0
  %207 = vmatprep.subr.mxu0 0.0
  %208 = vmatpush1.msra.mxu0 0.0
  %209 = vmatprep.subr.mxu0 0.0
  %210 = vmatpush1.msra.mxu0 0.0
  %211 = vmatprep.subr.mxu0 0.0
  %212 = vmatpush1.msra.mxu0 0.0
  %213 = vmatprep.subr.mxu0 0.0
  %214 = vmatpush1.msra.mxu0 0.0
  %215 = vmatprep.subr.mxu0 0.0
  %216 = vmatpush1.msra.mxu0 0.0
  %217 = vmatprep.subr.mxu0 0.0
  %218 = vmatpush1.msra.mxu0 0.0
  %219 = vmatprep.subr.mxu0 0.0
  %220 = vmatpush1.msra.mxu0 0.0
  %221 = vmatprep.subr.mxu0 0.0
  %222 = vmatpush1.msra.mxu0 0.0
  %223 = vmatprep.subr.mxu0 0.0
  %224 = vmatpush1.msra.mxu0 0.0
  %225 = vmatprep.subr.mxu0 0.0
  %226 = vmatpush1.msra.mxu0 0.0
  %227 = vmatprep.subr.mxu0 0.0
  %228 = vmatpush1.msra.mxu0 0.0
  %229 = vmatprep.subr.mxu0 0.0
  %230 = vmatpush1.msra.mxu0 0.0
  %231 = vmatprep.subr.mxu0 0.0
  %232 = vmatpush1.msra.mxu0 0.0
  %233 = vmatprep.subr.mxu0 0.0
  %234 = vmatpush1.msra.mxu0 0.0
  %235 = vmatprep.mubr.f32.mxu0 0.0
  %236 = vmatmul.mubr.f32.gmra.mrb[0].mxu0 %v169
  %v237 = vpop.f32.mrb[0].mxu0
  %v238 = vadd.f32 %v165, %v237
  %v239 = vpop.f32.mrb[0].mxu0
  %240 = vdwg.mxu0
  %v241 = vld [vmem:[%s4] sm:$0x1]
  %v243 = vlaneseq
  %v244 = vshrl.u32 %v243, 7
  %v245 = vsub.s32 0, %v244
  %v246 = vrot.slane %v241, %v245
  %v248 = vadd.f32 %v238, %v246
  %v249 = vmax.f32 %v248, 0.0
  %v250 = vld [vmem:[%s5] sm:$0xff]
  %v251 = vld [vmem:[%s5 + $0x8] sm:$0xff]
  %v252 = vld [vmem:[%s5 + $0x10] sm:$0xff]
  %v253 = vld [vmem:[%s5 + $0x18] sm:$0xff]
  %v254 = vld [vmem:[%s6] sm:$0x1]
  %v256 = vlaneseq
  %v257 = vshrl.u32 %v256, 7
  %v258 = vsub.s32 0, %v257
  %v259 = vrot.slane %v254, %v258
  %261 = vmatprep.subr.mxu0 0.0
  %262 = vmatpush1.msra.mxu0 %v250
  %263 = vmatprep.subr.mxu0 0.0
  %264 = vmatpush1.msra.mxu0 %v251
  %265 = vmatprep.subr.mxu0 0.0
  %266 = vmatpush1.msra.mxu0 %v252
  %267 = vmatprep.subr.mxu0 0.0
  %268 = vmatpush1.msra.mxu0 %v253
  %269 = vmatprep.subr.mxu0 0.0
  %270 = vmatpush1.msra.mxu0 0.0
  %271 = vmatprep.subr.mxu0 0.0
  %272 = vmatpush1.msra.mxu0 0.0
  %273 = vmatprep.subr.mxu0 0.0
  %274 = vmatpush1.msra.mxu0 0.0
  %275 = vmatprep.subr.mxu0 0.0
  %276 = vmatpush1.msra.mxu0 0.0
  %277 = vmatprep.subr.mxu0 0.0
  %278 = vmatpush1.msra.mxu0 0.0
  %279 = vmatprep.subr.mxu0 0.0
  %280 = vmatpush1.msra.mxu0 0.0
  %281 = vmatprep.subr.mxu0 0.0
  %282 = vmatpush1.msra.mxu0 0.0
  %283 = vmatprep.subr.mxu0 0.0
  %284 = vmatpush1.msra.mxu0 0.0
  %285 = vmatprep.subr.mxu0 0.0
  %286 = vmatpush1.msra.mxu0 0.0
  %287 = vmatprep.subr.mxu0 0.0
  %288 = vmatpush1.msra.mxu0 0.0
  %289 = vmatprep.subr.mxu0 0.0
  %290 = vmatpush1.msra.mxu0 0.0
  %291 = vmatprep.subr.mxu0 0.0
  %292 = vmatpush1.msra.mxu0 0.0
  %293 = vmatprep.subr.mxu0 0.0
  %294 = vmatpush1.msra.mxu0 0.0
  %295 = vmatprep.subr.mxu0 0.0
  %296 = vmatpush1.msra.mxu0 0.0
  %297 = vmatprep.subr.mxu0 0.0
  %298 = vmatpush1.msra.mxu0 0.0
  %299 = vmatprep.subr.mxu0 0.0
  %300 = vmatpush1.msra.mxu0 0.0
  %301 = vmatprep.subr.mxu0 0.0
  %302 = vmatpush1.msra.mxu0 0.0
  %303 = vmatprep.subr.mxu0 0.0
  %304 = vmatpush1.msra.mxu0 0.0
  %305 = vmatprep.subr.mxu0 0.0
  %306 = vmatpush1.msra.mxu0 0.0
  %307 = vmatprep.subr.mxu0 0.0
  %308 = vmatpush1.msra.mxu0 0.0
  %309 = vmatprep.subr.mxu0 0.0
  %310 = vmatpush1.msra.mxu0 0.0
  %311 = vmatprep.subr.mxu0 0.0
  %312 = vmatpush1.msra.mxu0 0.0
  %313 = vmatprep.subr.mxu0 0.0
  %314 = vmatpush1.msra.mxu0 0.0
  %315 = vmatprep.subr.mxu0 0.0
  %316 = vmatpush1.msra.mxu0 0.0
  %317 = vmatprep.subr.mxu0 0.0
  %318 = vmatpush1.msra.mxu0 0.0
  %319 = vmatprep.subr.mxu0 0.0
  %320 = vmatpush1.msra.mxu0 0.0
  %321 = vmatprep.subr.mxu0 0.0
  %322 = vmatpush1.msra.mxu0 0.0
  %323 = vmatprep.subr.mxu0 0.0
  %324 = vmatpush1.msra.mxu0 0.0
  %325 = vmatprep.mubr.f32.mxu0 0.0
  %326 = vmatmul.mubr.f32.gmra.mrb[0].mxu0 %v169
  %v327 = vpop.f32.mrb[0].mxu0
  %v328 = vadd.f32 %v259, %v327
  %v329 = vpop.f32.mrb[0].mxu0
  %330 = vdwg.mxu0
  %v331 = vmul.f32 %v328, %v41
  %v332 = vsel %vm45, %v331, 0.0
  %333 = vadd.xlane.f32.xlu0 %v332
  %v334 = vpop.xlane.xlu0 %333
  %v335 = vld [vmem:[%s7] sm:$0xff]
  %v336 = vld [vmem:[%s7 + $0x8] sm:$0xff]
  %v337 = vld [vmem:[%s7 + $0x10] sm:$0xff]
  %v338 = vld [vmem:[%s7 + $0x18] sm:$0xff]
  %v339 = vld [vmem:[%s8] sm:$0x1]
  %v341 = vlaneseq
  %v342 = vshrl.u32 %v341, 7
  %v343 = vsub.s32 0, %v342
  %v344 = vrot.slane %v339, %v343
  %346 = vmatprep.subr.mxu0 0.0
  %347 = vmatpush1.msra.mxu0 %v335
  %348 = vmatprep.subr.mxu0 0.0
  %349 = vmatpush1.msra.mxu0 %v336
  %350 = vmatprep.subr.mxu0 0.0
  %351 = vmatpush1.msra.mxu0 %v337
  %352 = vmatprep.subr.mxu0 0.0
  %353 = vmatpush1.msra.mxu0 %v338
  %354 = vmatprep.subr.mxu0 0.0
  %355 = vmatpush1.msra.mxu0 0.0
  %356 = vmatprep.subr.mxu0 0.0
  %357 = vmatpush1.msra.mxu0 0.0
  %358 = vmatprep.subr.mxu0 0.0
  %359 = vmatpush1.msra.mxu0 0.0
  %360 = vmatprep.subr.mxu0 0.0
  %361 = vmatpush1.msra.mxu0 0.0
  %362 = vmatprep.subr.mxu0 0.0
  %363 = vmatpush1.msra.mxu0 0.0
  %364 = vmatprep.subr.mxu0 0.0
  %365 = vmatpush1.msra.mxu0 0.0
  %366 = vmatprep.subr.mxu0 0.0
  %367 = vmatpush1.msra.mxu0 0.0
  %368 = vmatprep.subr.mxu0 0.0
  %369 = vmatpush1.msra.mxu0 0.0
  %370 = vmatprep.subr.mxu0 0.0
  %371 = vmatpush1.msra.mxu0 0.0
  %372 = vmatprep.subr.mxu0 0.0
  %373 = vmatpush1.msra.mxu0 0.0
  %374 = vmatprep.subr.mxu0 0.0
  %375 = vmatpush1.msra.mxu0 0.0
  %376 = vmatprep.subr.mxu0 0.0
  %377 = vmatpush1.msra.mxu0 0.0
  %378 = vmatprep.subr.mxu0 0.0
  %379 = vmatpush1.msra.mxu0 0.0
  %380 = vmatprep.subr.mxu0 0.0
  %381 = vmatpush1.msra.mxu0 0.0
  %382 = vmatprep.subr.mxu0 0.0
  %383 = vmatpush1.msra.mxu0 0.0
  %384 = vmatprep.subr.mxu0 0.0
  %385 = vmatpush1.msra.mxu0 0.0
  %386 = vmatprep.subr.mxu0 0.0
  %387 = vmatpush1.msra.mxu0 0.0
  %388 = vmatprep.subr.mxu0 0.0
  %389 = vmatpush1.msra.mxu0 0.0
  %390 = vmatprep.subr.mxu0 0.0
  %391 = vmatpush1.msra.mxu0 0.0
  %392 = vmatprep.subr.mxu0 0.0
  %393 = vmatpush1.msra.mxu0 0.0
  %394 = vmatprep.subr.mxu0 0.0
  %395 = vmatpush1.msra.mxu0 0.0
  %396 = vmatprep.subr.mxu0 0.0
  %397 = vmatpush1.msra.mxu0 0.0
  %398 = vmatprep.subr.mxu0 0.0
  %399 = vmatpush1.msra.mxu0 0.0
  %400 = vmatprep.subr.mxu0 0.0
  %401 = vmatpush1.msra.mxu0 0.0
  %402 = vmatprep.subr.mxu0 0.0
  %403 = vmatpush1.msra.mxu0 0.0
  %404 = vmatprep.subr.mxu0 0.0
  %405 = vmatpush1.msra.mxu0 0.0
  %406 = vmatprep.subr.mxu0 0.0
  %407 = vmatpush1.msra.mxu0 0.0
  %408 = vmatprep.subr.mxu0 0.0
  %409 = vmatpush1.msra.mxu0 0.0
  %410 = vmatprep.mubr.f32.mxu0 0.0
  %411 = vmatmul.mubr.f32.gmra.mrb[0].mxu0 %v169
  %v412 = vpop.f32.mrb[0].mxu0
  %v413 = vadd.f32 %v344, %v412
  %v414 = vpop.f32.mrb[0].mxu0
  %415 = vdwg.mxu0
  %v416 = vmul.f32 %v413, %v41
  %v417 = vsel %vm45, %v416, 0.0
  %418 = vadd.xlane.f32.xlu0 %v417
  %v419 = vpop.xlane.xlu0 %418
  %v420 = vld [vmem:[%s9] sm:$0xff]
  %v421 = vld [vmem:[%s9 + $0x8] sm:$0xff]
  %v422 = vld [vmem:[%s9 + $0x10] sm:$0xff]
  %v423 = vld [vmem:[%s9 + $0x18] sm:$0xff]
  %v424 = vld [vmem:[%s10] sm:$0xff]
  %v425 = vld [vmem:[%s10 + $0x8] sm:$0xff]
  %v426 = vld [vmem:[%s10 + $0x10] sm:$0xff]
  %v427 = vld [vmem:[%s10 + $0x18] sm:$0xff]
  %428 = vmatprep.subr.mxu0 0.0
  %429 = vmatpush1.msra.mxu0 %v424
  %430 = vmatprep.subr.mxu0 0.0
  %431 = vmatpush1.msra.mxu0 %v425
  %432 = vmatprep.subr.mxu0 0.0
  %433 = vmatpush1.msra.mxu0 %v426
  %434 = vmatprep.subr.mxu0 0.0
  %435 = vmatpush1.msra.mxu0 %v427
  %436 = vmatprep.subr.mxu0 0.0
  %437 = vmatpush1.msra.mxu0 0.0
  %438 = vmatprep.subr.mxu0 0.0
  %439 = vmatpush1.msra.mxu0 0.0
  %440 = vmatprep.subr.mxu0 0.0
  %441 = vmatpush1.msra.mxu0 0.0
  %442 = vmatprep.subr.mxu0 0.0
  %443 = vmatpush1.msra.mxu0 0.0
  %444 = vmatprep.subr.mxu0 0.0
  %445 = vmatpush1.msra.mxu0 0.0
  %446 = vmatprep.subr.mxu0 0.0
  %447 = vmatpush1.msra.mxu0 0.0
  %448 = vmatprep.subr.mxu0 0.0
  %449 = vmatpush1.msra.mxu0 0.0
  %450 = vmatprep.subr.mxu0 0.0
  %451 = vmatpush1.msra.mxu0 0.0
  %452 = vmatprep.subr.mxu0 0.0
  %453 = vmatpush1.msra.mxu0 0.0
  %454 = vmatprep.subr.mxu0 0.0
  %455 = vmatpush1.msra.mxu0 0.0
  %456 = vmatprep.subr.mxu0 0.0
  %457 = vmatpush1.msra.mxu0 0.0
  %458 = vmatprep.subr.mxu0 0.0
  %459 = vmatpush1.msra.mxu0 0.0
  %460 = vmatprep.subr.mxu0 0.0
  %461 = vmatpush1.msra.mxu0 0.0
  %462 = vmatprep.subr.mxu0 0.0
  %463 = vmatpush1.msra.mxu0 0.0
  %464 = vmatprep.subr.mxu0 0.0
  %465 = vmatpush1.msra.mxu0 0.0
  %466 = vmatprep.subr.mxu0 0.0
  %467 = vmatpush1.msra.mxu0 0.0
  %468 = vmatprep.subr.mxu0 0.0
  %469 = vmatpush1.msra.mxu0 0.0
  %470 = vmatprep.subr.mxu0 0.0
  %471 = vmatpush1.msra.mxu0 0.0
  %472 = vmatprep.subr.mxu0 0.0
  %473 = vmatpush1.msra.mxu0 0.0
  %474 = vmatprep.subr.mxu0 0.0
  %475 = vmatpush1.msra.mxu0 0.0
  %476 = vmatprep.subr.mxu0 0.0
  %477 = vmatpush1.msra.mxu0 0.0
  %478 = vmatprep.subr.mxu0 0.0
  %479 = vmatpush1.msra.mxu0 0.0
  %480 = vmatprep.subr.mxu0 0.0
  %481 = vmatpush1.msra.mxu0 0.0
  %482 = vmatprep.subr.mxu0 0.0
  %483 = vmatpush1.msra.mxu0 0.0
  %484 = vmatprep.subr.mxu0 0.0
  %485 = vmatpush1.msra.mxu0 0.0
  %486 = vmatprep.subr.mxu0 0.0
  %487 = vmatpush1.msra.mxu0 0.0
  %488 = vmatprep.subr.mxu0 0.0
  %489 = vmatpush1.msra.mxu0 0.0
  %490 = vmatprep.subr.mxu0 0.0
  %491 = vmatpush1.msra.mxu0 0.0
  %492 = vmatprep.mubr.f32.mxu0 0.0
  %493 = vmatmul.mubr.f32.gmra.mrb[0].mxu0 %v96
  %v494 = vpop.f32.mrb[0].mxu0
  %v495 = vadd.f32 0.0, %v494
  %v496 = vpop.f32.mrb[0].mxu0
  %497 = vdwg.mxu0
  %498 = vmatprep.subr.mxu0 0.0
  %499 = vmatpush1.msra.mxu0 %v420
  %500 = vmatprep.subr.mxu0 0.0
  %501 = vmatpush1.msra.mxu0 %v421
  %502 = vmatprep.subr.mxu0 0.0
  %503 = vmatpush1.msra.mxu0 %v422
  %504 = vmatprep.subr.mxu0 0.0
  %505 = vmatpush1.msra.mxu0 %v423
  %506 = vmatprep.subr.mxu0 0.0
  %507 = vmatpush1.msra.mxu0 0.0
  %508 = vmatprep.subr.mxu0 0.0
  %509 = vmatpush1.msra.mxu0 0.0
  %510 = vmatprep.subr.mxu0 0.0
  %511 = vmatpush1.msra.mxu0 0.0
  %512 = vmatprep.subr.mxu0 0.0
  %513 = vmatpush1.msra.mxu0 0.0
  %514 = vmatprep.subr.mxu0 0.0
  %515 = vmatpush1.msra.mxu0 0.0
  %516 = vmatprep.subr.mxu0 0.0
  %517 = vmatpush1.msra.mxu0 0.0
  %518 = vmatprep.subr.mxu0 0.0
  %519 = vmatpush1.msra.mxu0 0.0
  %520 = vmatprep.subr.mxu0 0.0
  %521 = vmatpush1.msra.mxu0 0.0
  %522 = vmatprep.subr.mxu0 0.0
  %523 = vmatpush1.msra.mxu0 0.0
  %524 = vmatprep.subr.mxu0 0.0
  %525 = vmatpush1.msra.mxu0 0.0
  %526 = vmatprep.subr.mxu0 0.0
  %527 = vmatpush1.msra.mxu0 0.0
  %528 = vmatprep.subr.mxu0 0.0
  %529 = vmatpush1.msra.mxu0 0.0
  %530 = vmatprep.subr.mxu0 0.0
  %531 = vmatpush1.msra.mxu0 0.0
  %532 = vmatprep.subr.mxu0 0.0
  %533 = vmatpush1.msra.mxu0 0.0
  %534 = vmatprep.subr.mxu0 0.0
  %535 = vmatpush1.msra.mxu0 0.0
  %536 = vmatprep.subr.mxu0 0.0
  %537 = vmatpush1.msra.mxu0 0.0
  %538 = vmatprep.subr.mxu0 0.0
  %539 = vmatpush1.msra.mxu0 0.0
  %540 = vmatprep.subr.mxu0 0.0
  %541 = vmatpush1.msra.mxu0 0.0
  %542 = vmatprep.subr.mxu0 0.0
  %543 = vmatpush1.msra.mxu0 0.0
  %544 = vmatprep.subr.mxu0 0.0
  %545 = vmatpush1.msra.mxu0 0.0
  %546 = vmatprep.subr.mxu0 0.0
  %547 = vmatpush1.msra.mxu0 0.0
  %548 = vmatprep.subr.mxu0 0.0
  %549 = vmatpush1.msra.mxu0 0.0
  %550 = vmatprep.subr.mxu0 0.0
  %551 = vmatpush1.msra.mxu0 0.0
  %552 = vmatprep.subr.mxu0 0.0
  %553 = vmatpush1.msra.mxu0 0.0
  %554 = vmatprep.subr.mxu0 0.0
  %555 = vmatpush1.msra.mxu0 0.0
  %556 = vmatprep.subr.mxu0 0.0
  %557 = vmatpush1.msra.mxu0 0.0
  %558 = vmatprep.subr.mxu0 0.0
  %559 = vmatpush1.msra.mxu0 0.0
  %560 = vmatprep.subr.mxu0 0.0
  %561 = vmatpush1.msra.mxu0 0.0
  %562 = vmatprep.mubr.f32.mxu0 0.0
  %563 = vmatmul.mubr.f32.gmra.mrb[0].mxu0 %v169
  %v564 = vpop.f32.mrb[0].mxu0
  %v565 = vadd.f32 %v495, %v564
  %v566 = vpop.f32.mrb[0].mxu0
  %567 = vdwg.mxu0
  %v568 = vld [vmem:[%s11] sm:$0x1]
  %v570 = vlaneseq
  %v571 = vshrl.u32 %v570, 7
  %v572 = vsub.s32 0, %v571
  %v573 = vrot.slane %v568, %v572
  %v575 = vadd.f32 %v565, %v573
  %vm576 = vcmask 7168
  %v577 = vsel %vm576, %v334, %v419
  %v578 = vadd.f32 %v577, %v575
  %v579 = vmax.f32 %v578, 0.0
  %581 = vrot.lane.b32.xlu0 %v44, 32
  %v582 = vpop.permute.xlu0 %581
  %585 = vrot.lane.b32.xlu0 %v249, 66
  %v586 = vpop.permute.xlu0 %585
  %589 = vrot.lane.b32.xlu0 %v579, 82
  %v590 = vpop.permute.xlu0 %589
  %v592 = vsel %vm45, %v43, %v582
  %vm593 = vcmask 523264
  %v594 = vsel %vm593, %v592, %v74
  %vm595 = vcmask 531456
  %v596 = vsel %vm595, %v594, %v86
  %vm597 = vcmask 539648
  %v598 = vsel %vm597, %v596, %v586
  %vm599 = vcmask 670720
  %v600 = vsel %vm599, %v598, %v590
  %vm601 = vcmask 687104
  %602 = vst.msk [vmem:[%s12] sm:$0xff] %vm601, %v600
  // Predicated region
  $region50: #{hierachical_rnn_forward.14} parent=0 // pred_check
    _
  $region51: #{hierachical_rnn_forward.14} parent=0 // pred_check_branch
    %604 = sbr.rel (0) target = $region53
  $region52: #{hierachical_rnn_forward.14} parent=0 // pred_region
    _
  $region53: #{hierachical_rnn_forward.14} parent=0 // pred_fallthru
    _
  // Predicated region
  $region54: #{hierachical_rnn_forward.14} parent=0 // pred_check
    _
  $region55: #{hierachical_rnn_forward.14} parent=0 // pred_check_branch
    %606 = sbr.rel (0) target = $region57
  $region56: #{hierachical_rnn_forward.14} parent=0 // pred_region
    _
  $region57: #{hierachical_rnn_forward.14} parent=0 // pred_fallthru
    _

// kernel: hierachical_rnn_forward.9
$region0: #{hierachical_rnn_forward.9}
  #allocation0 [shape = 'u32[]', space=smem, size = 0x4, offset = 0x4, fixed_abs, tag = 'smem constant byte address 0x4 - core index']
  #allocation1 [shape = 'u32[144,128]{1,0:T(1,128)}', space=vmem, size = 0x12000, scoped, tag = 'internal scratch']
  %s0 = inlined_call_operand.vmem [shape: f32[2,8,32], index: 0, kind: input, shape index: {}]
  %s1 = inlined_call_operand.vmem [shape: f32[2,8,16], index: 1, kind: input, shape index: {}]
  %s2 = inlined_call_operand.vmem [shape: bf16[2,32,48], index: 2, kind: input, shape index: {}]
  %s3 = inlined_call_operand.vmem [shape: bf16[2,16,48], index: 3, kind: input, shape index: {}]
  %s4 = inlined_call_operand.vmem [shape: f32[2,1,48], index: 4, kind: input, shape index: {}]
  %s5 = inlined_call_operand.vmem [shape: f32[2,1,48], index: 5, kind: input, shape index: {}]
  %s6 = inlined_call_operand.vmem [shape: bf16[16,32], index: 6, kind: input, shape index: {}]
  %s7 = inlined_call_operand.vmem [shape: bf16[16,32], index: 7, kind: input, shape index: {}]
  %s8 = inlined_call_operand.vmem [shape: f32[1,32], index: 8, kind: input, shape index: {}]
  %s9 = inlined_call_operand.vmem [shape: f32[1,32], index: 9, kind: input, shape index: {}]
  %s10 = inlined_call_operand.vmem [shape: f32[8,32], index: 10, kind: output, shape index: {}]
  %s11 = sld [smem:[#allocation0]]
  $region50: #{hierachical_rnn_forward.9} parent=0
    _
  %s13 = ssub.s32 1, %s11
  %s14 = scalar_select 0, %s13, %s11
  // Predicated region
  $region2: #{hierachical_rnn_forward.9} parent=0 // pred_check
    _
  $region3: #{hierachical_rnn_forward.9} parent=0 // pred_check_branch
    %16 = sbr.rel (0) target = $region5
  $region4: #{hierachical_rnn_forward.9} parent=0 // pred_region
    _
  $region5: #{hierachical_rnn_forward.9} parent=0 // pred_fallthru
    _
  // Predicated region
  $region6: #{hierachical_rnn_forward.9} parent=0 // pred_check
    _
  $region7: #{hierachical_rnn_forward.9} parent=0 // pred_check_branch
    %18 = sbr.rel (0) target = $region9
  $region8: #{hierachical_rnn_forward.9} parent=0 // pred_region
    _
  $region9: #{hierachical_rnn_forward.9} parent=0 // pred_fallthru
    _
  // Predicated region
  $region10: #{hierachical_rnn_forward.9} parent=0 // pred_check
    _
  $region11: #{hierachical_rnn_forward.9} parent=0 // pred_check_branch
    %20 = sbr.rel (0) target = $region13
  $region12: #{hierachical_rnn_forward.9} parent=0 // pred_region
    _
  $region13: #{hierachical_rnn_forward.9} parent=0 // pred_fallthru
    _
  // Predicated region
  $region14: #{hierachical_rnn_forward.9} parent=0 // pred_check
    _
  $region15: #{hierachical_rnn_forward.9} parent=0 // pred_check_branch
    %22 = sbr.rel (0) target = $region17
  $region16: #{hierachical_rnn_forward.9} parent=0 // pred_region
    _
  $region17: #{hierachical_rnn_forward.9} parent=0 // pred_fallthru
    _
  // Predicated region
  $region18: #{hierachical_rnn_forward.9} parent=0 // pred_check
    _
  $region19: #{hierachical_rnn_forward.9} parent=0 // pred_check_branch
    %24 = sbr.rel (0) target = $region21
  $region20: #{hierachical_rnn_forward.9} parent=0 // pred_region
    _
  $region21: #{hierachical_rnn_forward.9} parent=0 // pred_fallthru
    _
  // Predicated region
  $region22: #{hierachical_rnn_forward.9} parent=0 // pred_check
    _
  $region23: #{hierachical_rnn_forward.9} parent=0 // pred_check_branch
    %26 = sbr.rel (0) target = $region25
  $region24: #{hierachical_rnn_forward.9} parent=0 // pred_region
    _
  $region25: #{hierachical_rnn_forward.9} parent=0 // pred_fallthru
    _
  // Predicated region
  $region26: #{hierachical_rnn_forward.9} parent=0 // pred_check
    _
  $region27: #{hierachical_rnn_forward.9} parent=0 // pred_check_branch
    %28 = sbr.rel (0) target = $region29
  $region28: #{hierachical_rnn_forward.9} parent=0 // pred_region
    _
  $region29: #{hierachical_rnn_forward.9} parent=0 // pred_fallthru
    _
  // Predicated region
  $region30: #{hierachical_rnn_forward.9} parent=0 // pred_check
    _
  $region31: #{hierachical_rnn_forward.9} parent=0 // pred_check_branch
    %30 = sbr.rel (0) target = $region33
  $region32: #{hierachical_rnn_forward.9} parent=0 // pred_region
    _
  $region33: #{hierachical_rnn_forward.9} parent=0 // pred_fallthru
    _
  // Predicated region
  $region34: #{hierachical_rnn_forward.9} parent=0 // pred_check
    _
  $region35: #{hierachical_rnn_forward.9} parent=0 // pred_check_branch
    %32 = sbr.rel (0) target = $region37
  $region36: #{hierachical_rnn_forward.9} parent=0 // pred_region
    _
  $region37: #{hierachical_rnn_forward.9} parent=0 // pred_fallthru
    _
  // Predicated region
  $region38: #{hierachical_rnn_forward.9} parent=0 // pred_check
    _
  $region39: #{hierachical_rnn_forward.9} parent=0 // pred_check_branch
    %34 = sbr.rel (0) target = $region41
  $region40: #{hierachical_rnn_forward.9} parent=0 // pred_region
    _
  $region41: #{hierachical_rnn_forward.9} parent=0 // pred_fallthru
    _
  %v36 = vld [vmem:[%s0] sm:$0xff]
  %v37 = vld [vmem:[%s0 + $0x8] sm:$0xff]
  %v38 = vpack.c.bf16 %v37, %v36
  %v39 = vld [vmem:[%s2] sm:$0xf]
  %v40 = vld [vmem:[%s2 + $0x4] sm:$0xf]
  %v41 = vld [vmem:[%s2 + $0x8] sm:$0xf]
  %v42 = vld [vmem:[%s2 + $0xc] sm:$0xf]
  %v43 = vld [vmem:[%s4] sm:$0x1]
  %v45 = vlaneseq
  %v46 = vshrl.u32 %v45, 7
  %v47 = vsub.s32 0, %v46
  %v48 = vrot.slane %v43, %v47
  %v54 = vunpack.c.l.b16 %v39
  %v55 = vunpack.c.l.b16 %v40
  %v56 = vunpack.c.l.b16 %v41
  %v57 = vunpack.c.l.b16 %v42
  %v58 = vpack.c.b16 %v55, %v54
  %v59 = vpack.c.b16 %v57, %v56
  %vm62 = vcmask 261120
  %v64 = vsel %vm62, %v38, 0
  %66 = vmatprep.subr.bf16.mxu0 0
  %67 = vmatpush1.bf16.msra.mxu0 %v58
  %68 = vmatprep.subr.bf16.mxu0 0
  %69 = vmatpush1.bf16.msra.mxu0 %v59
  %70 = vmatprep.subr.bf16.mxu0 0
  %71 = vmatpush1.bf16.msra.mxu0 0
  %72 = vmatprep.subr.bf16.mxu0 0
  %73 = vmatpush1.bf16.msra.mxu0 0
  %74 = vmatprep.subr.bf16.mxu0 0
  %75 = vmatpush1.bf16.msra.mxu0 0
  %76 = vmatprep.subr.bf16.mxu0 0
  %77 = vmatpush1.bf16.msra.mxu0 0
  %78 = vmatprep.subr.bf16.mxu0 0
  %79 = vmatpush1.bf16.msra.mxu0 0
  %80 = vmatprep.subr.bf16.mxu0 0
  %81 = vmatpush1.bf16.msra.mxu0 0
  %82 = vmatprep.subr.bf16.mxu0 0
  %83 = vmatpush1.bf16.msra.mxu0 0
  %84 = vmatprep.subr.bf16.mxu0 0
  %85 = vmatpush1.bf16.msra.mxu0 0
  %86 = vmatprep.subr.bf16.mxu0 0
  %87 = vmatpush1.bf16.msra.mxu0 0
  %88 = vmatprep.subr.bf16.mxu0 0
  %89 = vmatpush1.bf16.msra.mxu0 0
  %90 = vmatprep.subr.bf16.mxu0 0
  %91 = vmatpush1.bf16.msra.mxu0 0
  %92 = vmatprep.subr.bf16.mxu0 0
  %93 = vmatpush1.bf16.msra.mxu0 0
  %94 = vmatprep.subr.bf16.mxu0 0
  %95 = vmatpush1.bf16.msra.mxu0 0
  %96 = vmatprep.subr.bf16.mxu0 0
  %97 = vmatpush1.bf16.msra.mxu0 0
  %98 = vmatprep.mubr.bf16.mxu0 0
  %99 = vmatmul.mubr.bf16.gmra.mrb[0].mxu0 %v64
  %v100 = vpop.f32.mrb[0].mxu0
  %v101 = vadd.f32 %v48, %v100
  %v102 = vpop.f32.mrb[0].mxu0
  %v103 = vpop.f32.mrb[0].mxu0
  %v104 = vadd.f32 %v48, %v103
  %v105 = vpop.f32.mrb[0].mxu0
  %106 = vdwg.mxu0
  %s107 = scalar_lea.vmem %s2, 16
  %v108 = vld [vmem:[%s107] sm:$0xf]
  %v109 = vld [vmem:[%s107 + $0x4] sm:$0xf]
  %v110 = vld [vmem:[%s107 + $0x8] sm:$0xf]
  %v111 = vld [vmem:[%s107 + $0xc] sm:$0xf]
  %s112 = scalar_lea.vmem %s4, 1
  %v113 = vld [vmem:[%s112] sm:$0x1]
  %v115 = vlaneseq
  %v116 = vshrl.u32 %v115, 7
  %v117 = vsub.s32 0, %v116
  %v118 = vrot.slane %v113, %v117
  %v124 = vunpack.c.l.b16 %v108
  %v125 = vunpack.c.l.b16 %v109
  %v126 = vunpack.c.l.b16 %v110
  %v127 = vunpack.c.l.b16 %v111
  %v128 = vpack.c.b16 %v125, %v124
  %v129 = vpack.c.b16 %v127, %v126
  %132 = vmatprep.subr.bf16.mxu0 0
  %133 = vmatpush1.bf16.msra.mxu0 %v128
  %134 = vmatprep.subr.bf16.mxu0 0
  %135 = vmatpush1.bf16.msra.mxu0 %v129
  %136 = vmatprep.subr.bf16.mxu0 0
  %137 = vmatpush1.bf16.msra.mxu0 0
  %138 = vmatprep.subr.bf16.mxu0 0
  %139 = vmatpush1.bf16.msra.mxu0 0
  %140 = vmatprep.subr.bf16.mxu0 0
  %141 = vmatpush1.bf16.msra.mxu0 0
  %142 = vmatprep.subr.bf16.mxu0 0
  %143 = vmatpush1.bf16.msra.mxu0 0
  %144 = vmatprep.subr.bf16.mxu0 0
  %145 = vmatpush1.bf16.msra.mxu0 0
  %146 = vmatprep.subr.bf16.mxu0 0
  %147 = vmatpush1.bf16.msra.mxu0 0
  %148 = vmatprep.subr.bf16.mxu0 0
  %149 = vmatpush1.bf16.msra.mxu0 0
  %150 = vmatprep.subr.bf16.mxu0 0
  %151 = vmatpush1.bf16.msra.mxu0 0
  %152 = vmatprep.subr.bf16.mxu0 0
  %153 = vmatpush1.bf16.msra.mxu0 0
  %154 = vmatprep.subr.bf16.mxu0 0
  %155 = vmatpush1.bf16.msra.mxu0 0
  %156 = vmatprep.subr.bf16.mxu0 0
  %157 = vmatpush1.bf16.msra.mxu0 0
  %158 = vmatprep.subr.bf16.mxu0 0
  %159 = vmatpush1.bf16.msra.mxu0 0
  %160 = vmatprep.subr.bf16.mxu0 0
  %161 = vmatpush1.bf16.msra.mxu0 0
  %162 = vmatprep.subr.bf16.mxu0 0
  %163 = vmatpush1.bf16.msra.mxu0 0
  %164 = vmatprep.mubr.bf16.mxu0 0
  %165 = vmatmul.mubr.bf16.gmra.mrb[0].mxu0 %v64
  %v166 = vpop.f32.mrb[0].mxu0
  %v167 = vadd.f32 %v118, %v166
  %v168 = vpop.f32.mrb[0].mxu0
  %v169 = vpop.f32.mrb[0].mxu0
  %v170 = vadd.f32 %v118, %v169
  %v171 = vpop.f32.mrb[0].mxu0
  %172 = vdwg.mxu0
  %v173 = vld [vmem:[%s3] sm:$0xf]
  %v174 = vld [vmem:[%s3 + $0x4] sm:$0xf]
  %s175 = scalar_lea.vmem %s3, 8
  %v176 = vld [vmem:[%s175] sm:$0xf]
  %v177 = vld [vmem:[%s175 + $0x4] sm:$0xf]
  %v178 = vld [vmem:[%s5] sm:$0x1]
  %s179 = scalar_lea.vmem %s5, 1
  %v180 = vld [vmem:[%s179] sm:$0x1]
  %v181 = vld [vmem:[%s1] sm:$0xff]
  %s182 = scalar_lea.vmem %s1, 8
  %v183 = vld [vmem:[%s182] sm:$0xff]
  %v184 = vpack.c.bf16 %v181, %v181
  %v186 = vlaneseq
  %v187 = vshrl.u32 %v186, 7
  %v188 = vsub.s32 0, %v187
  %v189 = vrot.slane %v178, %v188
  %v193 = vunpack.c.l.b16 %v173
  %v194 = vunpack.c.l.b16 %v174
  %v195 = vpack.c.b16 %v194, %v193
  %vm197 = vcmask 130048
  %v199 = vsel %vm197, %v184, 0
  %201 = vmatprep.subr.bf16.mxu0 0
  %202 = vmatpush1.bf16.msra.mxu0 %v195
  %203 = vmatprep.subr.bf16.mxu0 0
  %204 = vmatpush1.bf16.msra.mxu0 0
  %205 = vmatprep.subr.bf16.mxu0 0
  %206 = vmatpush1.bf16.msra.mxu0 0
  %207 = vmatprep.subr.bf16.mxu0 0
  %208 = vmatpush1.bf16.msra.mxu0 0
  %209 = vmatprep.subr.bf16.mxu0 0
  %210 = vmatpush1.bf16.msra.mxu0 0
  %211 = vmatprep.subr.bf16.mxu0 0
  %212 = vmatpush1.bf16.msra.mxu0 0
  %213 = vmatprep.subr.bf16.mxu0 0
  %214 = vmatpush1.bf16.msra.mxu0 0
  %215 = vmatprep.subr.bf16.mxu0 0
  %216 = vmatpush1.bf16.msra.mxu0 0
  %217 = vmatprep.subr.bf16.mxu0 0
  %218 = vmatpush1.bf16.msra.mxu0 0
  %219 = vmatprep.subr.bf16.mxu0 0
  %220 = vmatpush1.bf16.msra.mxu0 0
  %221 = vmatprep.subr.bf16.mxu0 0
  %222 = vmatpush1.bf16.msra.mxu0 0
  %223 = vmatprep.subr.bf16.mxu0 0
  %224 = vmatpush1.bf16.msra.mxu0 0
  %225 = vmatprep.subr.bf16.mxu0 0
  %226 = vmatpush1.bf16.msra.mxu0 0
  %227 = vmatprep.subr.bf16.mxu0 0
  %228 = vmatpush1.bf16.msra.mxu0 0
  %229 = vmatprep.subr.bf16.mxu0 0
  %230 = vmatpush1.bf16.msra.mxu0 0
  %231 = vmatprep.subr.bf16.mxu0 0
  %232 = vmatpush1.bf16.msra.mxu0 0
  %233 = vmatprep.mubr.bf16.mxu0 0
  %234 = vmatmul.mubr.bf16.gmra.mrb[0].mxu0 %v199
  %v235 = vpop.f32.mrb[0].mxu0
  %v236 = vadd.f32 %v189, %v235
  %v237 = vpop.f32.mrb[0].mxu0
  %v238 = vpop.f32.mrb[0].mxu0
  %v239 = vpop.f32.mrb[0].mxu0
  %240 = vdwg.mxu0
  %v241 = vadd.f32 %v101, %v236
  %v242 = vxor.u32 %v241, 2147483648
  %v243 = vmul.f32 %v242, 1.442695
  %v244 = vpow.pop %v243
  %v245 = vadd.f32 %v244, 1.0
  %v246 = vrcp.pop %v245
  %v247 = vmul.f32 1.0, %v246
  %249 = vrot.lane.b32.xlu0 %v236, 96
  %v250 = vpop.permute.xlu0 %249
  %v252 = vmul.f32 %v247, %v250
  %254 = vrot.lane.b32.xlu0 %v252, 32
  %v255 = vpop.permute.xlu0 %254
  %v257 = vadd.f32 %v101, %v255
  %v258 = vtanh.pop %v257
  %v259 = vsub.f32 1.0, %v247
  %261 = vrot.lane.b32.xlu0 %v258, 112
  %v262 = vpop.permute.xlu0 %261
  %v264 = vmul.f32 %v259, %v262
  %266 = vrot.lane.b32.xlu0 %v181, 16
  %v267 = vpop.permute.xlu0 %266
  %v269 = vmul.f32 %v247, %v267
  %v270 = vadd.f32 %v264, %v269
  %v271 = vpack.c.bf16 %v183, %v183
  %v273 = vlaneseq
  %v274 = vshrl.u32 %v273, 7
  %v275 = vsub.s32 0, %v274
  %v276 = vrot.slane %v180, %v275
  %v280 = vunpack.c.l.b16 %v176
  %v281 = vunpack.c.l.b16 %v177
  %v282 = vpack.c.b16 %v281, %v280
  %v285 = vsel %vm197, %v271, 0
  %287 = vmatprep.subr.bf16.mxu0 0
  %288 = vmatpush1.bf16.msra.mxu0 %v282
  %289 = vmatprep.subr.bf16.mxu0 0
  %290 = vmatpush1.bf16.msra.mxu0 0
  %291 = vmatprep.subr.bf16.mxu0 0
  %292 = vmatpush1.bf16.msra.mxu0 0
  %293 = vmatprep.subr.bf16.mxu0 0
  %294 = vmatpush1.bf16.msra.mxu0 0
  %295 = vmatprep.subr.bf16.mxu0 0
  %296 = vmatpush1.bf16.msra.mxu0 0
  %297 = vmatprep.subr.bf16.mxu0 0
  %298 = vmatpush1.bf16.msra.mxu0 0
  %299 = vmatprep.subr.bf16.mxu0 0
  %300 = vmatpush1.bf16.msra.mxu0 0
  %301 = vmatprep.subr.bf16.mxu0 0
  %302 = vmatpush1.bf16.msra.mxu0 0
  %303 = vmatprep.subr.bf16.mxu0 0
  %304 = vmatpush1.bf16.msra.mxu0 0
  %305 = vmatprep.subr.bf16.mxu0 0
  %306 = vmatpush1.bf16.msra.mxu0 0
  %307 = vmatprep.subr.bf16.mxu0 0
  %308 = vmatpush1.bf16.msra.mxu0 0
  %309 = vmatprep.subr.bf16.mxu0 0
  %310 = vmatpush1.bf16.msra.mxu0 0
  %311 = vmatprep.subr.bf16.mxu0 0
  %312 = vmatpush1.bf16.msra.mxu0 0
  %313 = vmatprep.subr.bf16.mxu0 0
  %314 = vmatpush1.bf16.msra.mxu0 0
  %315 = vmatprep.subr.bf16.mxu0 0
  %316 = vmatpush1.bf16.msra.mxu0 0
  %317 = vmatprep.subr.bf16.mxu0 0
  %318 = vmatpush1.bf16.msra.mxu0 0
  %319 = vmatprep.mubr.bf16.mxu0 0
  %320 = vmatmul.mubr.bf16.gmra.mrb[0].mxu0 %v285
  %v321 = vpop.f32.mrb[0].mxu0
  %v322 = vadd.f32 %v276, %v321
  %v323 = vpop.f32.mrb[0].mxu0
  %v324 = vpop.f32.mrb[0].mxu0
  %v325 = vpop.f32.mrb[0].mxu0
  %326 = vdwg.mxu0
  %v327 = vadd.f32 %v170, %v322
  %v328 = vxor.u32 %v327, 2147483648
  %v329 = vmul.f32 %v328, 1.442695
  %v330 = vpow.pop %v329
  %v331 = vadd.f32 %v330, 1.0
  %v332 = vrcp.pop %v331
  %v333 = vmul.f32 1.0, %v332
  %335 = vrot.lane.b32.xlu0 %v322, 96
  %v336 = vpop.permute.xlu0 %335
  %v338 = vmul.f32 %v333, %v336
  %340 = vrot.lane.b32.xlu0 %v338, 32
  %v341 = vpop.permute.xlu0 %340
  %v343 = vadd.f32 %v170, %v341
  %v344 = vtanh.pop %v343
  %v345 = vsub.f32 1.0, %v333
  %347 = vrot.lane.b32.xlu0 %v344, 112
  %v348 = vpop.permute.xlu0 %347
  %v350 = vmul.f32 %v345, %v348
  %352 = vrot.lane.b32.xlu0 %v183, 16
  %v353 = vpop.permute.xlu0 %352
  %v355 = vmul.f32 %v333, %v353
  %v356 = vadd.f32 %v350, %v355
  %v357 = vpack.c.bf16 %v270, %v270
  %359 = vrot.lane.b32.xlu0 %v357, 112
  %v360 = vpop.permute.xlu0 %359
  %v362 = vsel %vm197, %v360, 0
  %364 = vmatprep.subr.bf16.mxu0 0
  %365 = vmatpush1.bf16.msra.mxu0 %v195
  %366 = vmatprep.subr.bf16.mxu0 0
  %367 = vmatpush1.bf16.msra.mxu0 0
  %368 = vmatprep.subr.bf16.mxu0 0
  %369 = vmatpush1.bf16.msra.mxu0 0
  %370 = vmatprep.subr.bf16.mxu0 0
  %371 = vmatpush1.bf16.msra.mxu0 0
  %372 = vmatprep.subr.bf16.mxu0 0
  %373 = vmatpush1.bf16.msra.mxu0 0
  %374 = vmatprep.subr.bf16.mxu0 0
  %375 = vmatpush1.bf16.msra.mxu0 0
  %376 = vmatprep.subr.bf16.mxu0 0
  %377 = vmatpush1.bf16.msra.mxu0 0
  %378 = vmatprep.subr.bf16.mxu0 0
  %379 = vmatpush1.bf16.msra.mxu0 0
  %380 = vmatprep.subr.bf16.mxu0 0
  %381 = vmatpush1.bf16.msra.mxu0 0
  %382 = vmatprep.subr.bf16.mxu0 0
  %383 = vmatpush1.bf16.msra.mxu0 0
  %384 = vmatprep.subr.bf16.mxu0 0
  %385 = vmatpush1.bf16.msra.mxu0 0
  %386 = vmatprep.subr.bf16.mxu0 0
  %387 = vmatpush1.bf16.msra.mxu0 0
  %388 = vmatprep.subr.bf16.mxu0 0
  %389 = vmatpush1.bf16.msra.mxu0 0
  %390 = vmatprep.subr.bf16.mxu0 0
  %391 = vmatpush1.bf16.msra.mxu0 0
  %392 = vmatprep.subr.bf16.mxu0 0
  %393 = vmatpush1.bf16.msra.mxu0 0
  %394 = vmatprep.subr.bf16.mxu0 0
  %395 = vmatpush1.bf16.msra.mxu0 0
  %396 = vmatprep.mubr.bf16.mxu0 0
  %397 = vmatmul.mubr.bf16.gmra.mrb[0].mxu0 %v362
  %v398 = vpop.f32.mrb[0].mxu0
  %v399 = vadd.f32 %v189, %v398
  %v400 = vpop.f32.mrb[0].mxu0
  %v401 = vpop.f32.mrb[0].mxu0
  %v402 = vpop.f32.mrb[0].mxu0
  %403 = vdwg.mxu0
  %v404 = vadd.f32 %v104, %v399
  %v405 = vxor.u32 %v404, 2147483648
  %v406 = vmul.f32 %v405, 1.442695
  %v407 = vpow.pop %v406
  %v408 = vadd.f32 %v407, 1.0
  %v409 = vrcp.pop %v408
  %v410 = vmul.f32 1.0, %v409
  %412 = vrot.lane.b32.xlu0 %v399, 96
  %v413 = vpop.permute.xlu0 %412
  %v415 = vmul.f32 %v410, %v413
  %417 = vrot.lane.b32.xlu0 %v415, 32
  %v418 = vpop.permute.xlu0 %417
  %v420 = vadd.f32 %v104, %v418
  %v421 = vtanh.pop %v420
  %v422 = vsub.f32 1.0, %v410
  %424 = vrot.lane.b32.xlu0 %v421, 112
  %v425 = vpop.permute.xlu0 %424
  %v427 = vmul.f32 %v422, %v425
  %v428 = vmul.f32 %v410, %v270
  %v429 = vadd.f32 %v427, %v428
  %v430 = vpack.c.bf16 %v356, %v356
  %432 = vrot.lane.b32.xlu0 %v430, 112
  %v433 = vpop.permute.xlu0 %432
  %v435 = vsel %vm197, %v433, 0
  %437 = vmatprep.subr.bf16.mxu0 0
  %438 = vmatpush1.bf16.msra.mxu0 %v282
  %439 = vmatprep.subr.bf16.mxu0 0
  %440 = vmatpush1.bf16.msra.mxu0 0
  %441 = vmatprep.subr.bf16.mxu0 0
  %442 = vmatpush1.bf16.msra.mxu0 0
  %443 = vmatprep.subr.bf16.mxu0 0
  %444 = vmatpush1.bf16.msra.mxu0 0
  %445 = vmatprep.subr.bf16.mxu0 0
  %446 = vmatpush1.bf16.msra.mxu0 0
  %447 = vmatprep.subr.bf16.mxu0 0
  %448 = vmatpush1.bf16.msra.mxu0 0
  %449 = vmatprep.subr.bf16.mxu0 0
  %450 = vmatpush1.bf16.msra.mxu0 0
  %451 = vmatprep.subr.bf16.mxu0 0
  %452 = vmatpush1.bf16.msra.mxu0 0
  %453 = vmatprep.subr.bf16.mxu0 0
  %454 = vmatpush1.bf16.msra.mxu0 0
  %455 = vmatprep.subr.bf16.mxu0 0
  %456 = vmatpush1.bf16.msra.mxu0 0
  %457 = vmatprep.subr.bf16.mxu0 0
  %458 = vmatpush1.bf16.msra.mxu0 0
  %459 = vmatprep.subr.bf16.mxu0 0
  %460 = vmatpush1.bf16.msra.mxu0 0
  %461 = vmatprep.subr.bf16.mxu0 0
  %462 = vmatpush1.bf16.msra.mxu0 0
  %463 = vmatprep.subr.bf16.mxu0 0
  %464 = vmatpush1.bf16.msra.mxu0 0
  %465 = vmatprep.subr.bf16.mxu0 0
  %466 = vmatpush1.bf16.msra.mxu0 0
  %467 = vmatprep.subr.bf16.mxu0 0
  %468 = vmatpush1.bf16.msra.mxu0 0
  %469 = vmatprep.mubr.bf16.mxu0 0
  %470 = vmatmul.mubr.bf16.gmra.mrb[0].mxu0 %v435
  %v471 = vpop.f32.mrb[0].mxu0
  %v472 = vadd.f32 %v276, %v471
  %v473 = vpop.f32.mrb[0].mxu0
  %v474 = vpop.f32.mrb[0].mxu0
  %v475 = vpop.f32.mrb[0].mxu0
  %476 = vdwg.mxu0
  %v477 = vadd.f32 %v167, %v472
  %v478 = vxor.u32 %v477, 2147483648
  %v479 = vmul.f32 %v478, 1.442695
  %v480 = vpow.pop %v479
  %v481 = vadd.f32 %v480, 1.0
  %v482 = vrcp.pop %v481
  %v483 = vmul.f32 1.0, %v482
  %485 = vrot.lane.b32.xlu0 %v472, 96
  %v486 = vpop.permute.xlu0 %485
  %v488 = vmul.f32 %v483, %v486
  %490 = vrot.lane.b32.xlu0 %v488, 32
  %v491 = vpop.permute.xlu0 %490
  %v493 = vadd.f32 %v167, %v491
  %v494 = vtanh.pop %v493
  %v495 = vsub.f32 1.0, %v483
  %497 = vrot.lane.b32.xlu0 %v494, 112
  %v498 = vpop.permute.xlu0 %497
  %v500 = vmul.f32 %v495, %v498
  %v501 = vmul.f32 %v483, %v356
  %v502 = vadd.f32 %v500, %v501
  %v503 = vpack.c.bf16 %v429, %v270
  %v504 = vld [vmem:[%s6] sm:$0xf]
  %v505 = vld [vmem:[%s6 + $0x4] sm:$0xf]
  %v506 = vpack.c.bf16 %v356, %v502
  %v507 = vld [vmem:[%s7] sm:$0xf]
  %v508 = vld [vmem:[%s7 + $0x4] sm:$0xf]
  %510 = vrot.lane.b32.xlu0 %v506, 112
  %v511 = vpop.permute.xlu0 %510
  %v514 = vunpack.c.l.b16 %v507
  %v515 = vunpack.c.l.b16 %v508
  %v516 = vpack.c.b16 %v515, %v514
  %v519 = vsel %vm197, %v511, 0
  %521 = vmatprep.subr.bf16.mxu0 0
  %522 = vmatpush1.bf16.msra.mxu0 %v516
  %523 = vmatprep.subr.bf16.mxu0 0
  %524 = vmatpush1.bf16.msra.mxu0 0
  %525 = vmatprep.subr.bf16.mxu0 0
  %526 = vmatpush1.bf16.msra.mxu0 0
  %527 = vmatprep.subr.bf16.mxu0 0
  %528 = vmatpush1.bf16.msra.mxu0 0
  %529 = vmatprep.subr.bf16.mxu0 0
  %530 = vmatpush1.bf16.msra.mxu0 0
  %531 = vmatprep.subr.bf16.mxu0 0
  %532 = vmatpush1.bf16.msra.mxu0 0
  %533 = vmatprep.subr.bf16.mxu0 0
  %534 = vmatpush1.bf16.msra.mxu0 0
  %535 = vmatprep.subr.bf16.mxu0 0
  %536 = vmatpush1.bf16.msra.mxu0 0
  %537 = vmatprep.subr.bf16.mxu0 0
  %538 = vmatpush1.bf16.msra.mxu0 0
  %539 = vmatprep.subr.bf16.mxu0 0
  %540 = vmatpush1.bf16.msra.mxu0 0
  %541 = vmatprep.subr.bf16.mxu0 0
  %542 = vmatpush1.bf16.msra.mxu0 0
  %543 = vmatprep.subr.bf16.mxu0 0
  %544 = vmatpush1.bf16.msra.mxu0 0
  %545 = vmatprep.subr.bf16.mxu0 0
  %546 = vmatpush1.bf16.msra.mxu0 0
  %547 = vmatprep.subr.bf16.mxu0 0
  %548 = vmatpush1.bf16.msra.mxu0 0
  %549 = vmatprep.subr.bf16.mxu0 0
  %550 = vmatpush1.bf16.msra.mxu0 0
  %551 = vmatprep.subr.bf16.mxu0 0
  %552 = vmatpush1.bf16.msra.mxu0 0
  %553 = vmatprep.mubr.bf16.mxu0 0
  %554 = vmatmul.mubr.bf16.gmra.mrb[0].mxu0 %v519
  %v555 = vpop.f32.mrb[0].mxu0
  %v556 = vadd.f32 0.0, %v555
  %v557 = vpop.f32.mrb[0].mxu0
  %v558 = vpop.f32.mrb[0].mxu0
  %v559 = vadd.f32 0.0, %v558
  %v560 = vpop.f32.mrb[0].mxu0
  %561 = vdwg.mxu0
  %563 = vrot.lane.b32.xlu0 %v503, 112
  %v564 = vpop.permute.xlu0 %563
  %v567 = vunpack.c.l.b16 %v504
  %v568 = vunpack.c.l.b16 %v505
  %v569 = vpack.c.b16 %v568, %v567
  %v572 = vsel %vm197, %v564, 0
  %574 = vmatprep.subr.bf16.mxu0 0
  %575 = vmatpush1.bf16.msra.mxu0 %v569
  %576 = vmatprep.subr.bf16.mxu0 0
  %577 = vmatpush1.bf16.msra.mxu0 0
  %578 = vmatprep.subr.bf16.mxu0 0
  %579 = vmatpush1.bf16.msra.mxu0 0
  %580 = vmatprep.subr.bf16.mxu0 0
  %581 = vmatpush1.bf16.msra.mxu0 0
  %582 = vmatprep.subr.bf16.mxu0 0
  %583 = vmatpush1.bf16.msra.mxu0 0
  %584 = vmatprep.subr.bf16.mxu0 0
  %585 = vmatpush1.bf16.msra.mxu0 0
  %586 = vmatprep.subr.bf16.mxu0 0
  %587 = vmatpush1.bf16.msra.mxu0 0
  %588 = vmatprep.subr.bf16.mxu0 0
  %589 = vmatpush1.bf16.msra.mxu0 0
  %590 = vmatprep.subr.bf16.mxu0 0
  %591 = vmatpush1.bf16.msra.mxu0 0
  %592 = vmatprep.subr.bf16.mxu0 0
  %593 = vmatpush1.bf16.msra.mxu0 0
  %594 = vmatprep.subr.bf16.mxu0 0
  %595 = vmatpush1.bf16.msra.mxu0 0
  %596 = vmatprep.subr.bf16.mxu0 0
  %597 = vmatpush1.bf16.msra.mxu0 0
  %598 = vmatprep.subr.bf16.mxu0 0
  %599 = vmatpush1.bf16.msra.mxu0 0
  %600 = vmatprep.subr.bf16.mxu0 0
  %601 = vmatpush1.bf16.msra.mxu0 0
  %602 = vmatprep.subr.bf16.mxu0 0
  %603 = vmatpush1.bf16.msra.mxu0 0
  %604 = vmatprep.subr.bf16.mxu0 0
  %605 = vmatpush1.bf16.msra.mxu0 0
  %606 = vmatprep.mubr.bf16.mxu0 0
  %607 = vmatmul.mubr.bf16.gmra.mrb[0].mxu0 %v572
  %v608 = vpop.f32.mrb[0].mxu0
  %v609 = vadd.f32 %v556, %v608
  %v610 = vpop.f32.mrb[0].mxu0
  %v611 = vpop.f32.mrb[0].mxu0
  %v612 = vadd.f32 %v559, %v611
  %v613 = vpop.f32.mrb[0].mxu0
  %614 = vdwg.mxu0
  %v615 = vld [vmem:[%s8] sm:$0x1]
  %v617 = vlaneseq
  %v618 = vshrl.u32 %v617, 7
  %v619 = vsub.s32 0, %v618
  %v620 = vrot.slane %v615, %v619
  %v622 = vadd.f32 %v609, %v620
  %v623 = vadd.f32 %v612, %v620
  %v624 = vmax.f32 %v622, 0.0
  %v625 = vmax.f32 %v623, 0.0
  %v626 = vld [vmem:[%s9] sm:$0x1]
  %v628 = vlaneseq
  %v629 = vshrl.u32 %v628, 7
  %v630 = vsub.s32 0, %v629
  %v631 = vrot.slane %v626, %v630
  %v633 = vmul.f32 %v624, %v631
  %v634 = vmul.f32 %v625, %v631
  %v635 = vsel %vm62, %v633, 0.0
  %636 = vadd.xlane.f32.xlu0 %v635
  %v637 = vpop.xlane.xlu0 %636
  %v638 = vsel %vm62, %v634, 0.0
  %639 = vadd.xlane.f32.xlu0 %v638
  %v640 = vpop.xlane.xlu0 %639
  %v641 = vmax.f32 %v637, %v640
  %v642 = vsub.f32 %v637, %v641
  %v643 = vmul.f32 %v642, 1.442695
  %v644 = vpow.pop %v643
  %v645 = vsub.f32 %v640, %v641
  %v646 = vmul.f32 %v645, 1.442695
  %v647 = vpow.pop %v646
  %v648 = vadd.f32 %v644, %v647
  %v649 = vmul.f32 %v644, %v270
  %v650 = vmul.f32 %v644, %v502
  %v651 = vmul.f32 %v647, %v429
  %v652 = vadd.f32 %v649, %v651
  %v653 = vmul.f32 %v647, %v356
  %v654 = vadd.f32 %v650, %v653
  %v655 = vrcp.pop %v648
  %v656 = vmul.f32 1.0, %v655
  %v657 = vmul.f32 %v652, %v656
  %659 = vrot.lane.b32.xlu0 %v657, 112
  %v660 = vpop.permute.xlu0 %659
  %662 = vst.msk [vmem:[%s10] sm:$0xff] %vm197, %v660
  %v663 = vmul.f32 %v654, %v656
  %vm664 = vcmask 261248
  %665 = vst.msk [vmem:[%s10] sm:$0xff] %vm664, %v663
  // Predicated region
  $region42: #{hierachical_rnn_forward.9} parent=0 // pred_check
    _
  $region43: #{hierachical_rnn_forward.9} parent=0 // pred_check_branch
    %667 = sbr.rel (0) target = $region45
  $region44: #{hierachical_rnn_forward.9} parent=0 // pred_region
    _
  $region45: #{hierachical_rnn_forward.9} parent=0 // pred_fallthru
    _
  // Predicated region
  $region46: #{hierachical_rnn_forward.9} parent=0 // pred_check
    _
  $region47: #{hierachical_rnn_forward.9} parent=0 // pred_check_branch
    %669 = sbr.rel (0) target = $region49
  $region48: #{hierachical_rnn_forward.9} parent=0 // pred_region
    _
  $region49: #{hierachical_rnn_forward.9} parent=0 // pred_fallthru
    _

// kernel: hierachical_rnn_forward.8
$region0: #{hierachical_rnn_forward.8}
  #allocation0 [shape = 'u32[]', space=smem, size = 0x4, offset = 0x4, fixed_abs, tag = 'smem constant byte address 0x4 - core index']
  #allocation1 [shape = 'u32[144,128]{1,0:T(1,128)}', space=vmem, size = 0x12000, scoped, tag = 'internal scratch']
  %s0 = inlined_call_operand.vmem [shape: f32[4,16,16], index: 0, kind: input, shape index: {}]
  %s1 = inlined_call_operand.vmem [shape: f32[2,16,16], index: 1, kind: input, shape index: {}]
  %s2 = inlined_call_operand.vmem [shape: bf16[2,16,48], index: 2, kind: input, shape index: {}]
  %s3 = inlined_call_operand.vmem [shape: bf16[2,16,48], index: 3, kind: input, shape index: {}]
  %s4 = inlined_call_operand.vmem [shape: f32[2,1,48], index: 4, kind: input, shape index: {}]
  %s5 = inlined_call_operand.vmem [shape: f32[2,1,48], index: 5, kind: input, shape index: {}]
  %s6 = inlined_call_operand.vmem [shape: bf16[16,32], index: 6, kind: input, shape index: {}]
  %s7 = inlined_call_operand.vmem [shape: bf16[16,32], index: 7, kind: input, shape index: {}]
  %s8 = inlined_call_operand.vmem [shape: f32[1,32], index: 8, kind: input, shape index: {}]
  %s9 = inlined_call_operand.vmem [shape: f32[1,32], index: 9, kind: input, shape index: {}]
  %s10 = inlined_call_operand.vmem [shape: f32[16,32], index: 10, kind: output, shape index: {}]
  %s11 = sld [smem:[#allocation0]]
  $region149: #{hierachical_rnn_forward.8} parent=0
    _
  %s13 = ssub.s32 1, %s11
  %s14 = scalar_select 0, %s13, %s11
  $region1: #{hierachical_rnn_forward.8} parent=0
    #allocation2 [shape = 'u8[32768]{0}', space=vmem, size = 0x8000, scoped, tag = 'input window, operand 0']
    #allocation3 [shape = 'u8[16384]{0}', space=vmem, size = 0x4000, scoped, tag = 'input window, operand 1']
    loop: start=0, step=1, limit=4
    $region2: #{hierachical_rnn_forward.8} parent=1 // loop_pre_header
      _
    $region3: #{hierachical_rnn_forward.8} parent=1 // loop_header
      %s16 = sphi 0, %s20
      %p17 = scmp.ge.s32.totalorder %s16, 4
      %s26 = sphi 0, %s28
      %s29 = sphi 0, %s26
      %s30 = sphi 0, %s29
      %s46 = sphi 0, %s30
      %s52 = sphi 0, %s54
      %s55 = sphi 0, %s52
      %s56 = sphi 0, %s55
      %s72 = sphi 0, %s56
      %s76 = sphi 0, %s76
      %s78 = sphi 0, %s76
      %s79 = sphi 0, %s78
      %s93 = sphi 0, %s79
      %s97 = sphi 0, %s97
      %s99 = sphi 0, %s97
      %s100 = sphi 0, %s99
      %s114 = sphi 0, %s100
      %s118 = sphi 0, %s118
      %s120 = sphi 0, %s118
      %s121 = sphi 0, %s120
      %s135 = sphi 0, %s121
      %s139 = sphi 0, %s139
      %s141 = sphi 0, %s139
      %s142 = sphi 0, %s141
      %s156 = sphi 0, %s142
      %s160 = sphi 0, %s160
      %s162 = sphi 0, %s160
      %s163 = sphi 0, %s162
      %s177 = sphi 0, %s163
      %s181 = sphi 0, %s181
      %s183 = sphi 0, %s181
      %s184 = sphi 0, %s183
      %s198 = sphi 0, %s184
      %s202 = sphi 0, %s202
      %s204 = sphi 0, %s202
      %s205 = sphi 0, %s204
      %s219 = sphi 0, %s205
      %s223 = sphi 0, %s223
      %s225 = sphi 0, %s223
      %s226 = sphi 0, %s225
      %s240 = sphi 0, %s226
      %s246 = sphi 0, %s248
      %s249 = sphi 0, %s246
      %s250 = sphi 0, %s249
      %s266 = sphi 0, %s250
    $region4: #{hierachical_rnn_forward.8} parent=1 // loop_header_branch
      %19 = sbr.rel (%p17) target = $region8
    $region5: #{hierachical_rnn_forward.8} parent=1 // loop_body
      %s21 = ssub.s32 %s16, 1
      %s22 = ssub.s32 %s16, 2
      %s23 = sadd.s32 %s16, 1
      %s24 = ssub.s32 %s16, %s23
      %p25 = scmp.eq.s32.totalorder %s24, 0
      %s27 = sadd.s32 %s26, 1
      %s28 = scalar_select %p25, %s26, %s27
      %p31 = pneg %p25
      %p32 = scmp.eq.s32.totalorder %s16, 1
      %p33 = por %p31, %p32
      %p34 = scmp.ne.s32.totalorder %s26, %s29
      %p35 = scmp.eq.s32.totalorder %s16, 0
      %p36 = por %p34, %p35
      %p37 = scmp.ne.s32.totalorder %s26, %s29
      %p38 = scmp.eq.s32.totalorder %s21, 1
      %p39 = por %p37, %p38
      %p40 = scmp.ne.s32.totalorder %s29, %s30
      %p41 = scmp.eq.s32.totalorder %s21, 0
      %p42 = por %p40, %p41
      %p43 = scmp.ne.s32.totalorder %s29, %s30
      %p44 = scmp.eq.s32.totalorder %s22, 1
      %p45 = por %p43, %p44
      %p47 = scmp.ne.s32.totalorder %s30, %s46
      %p48 = scmp.eq.s32.totalorder %s22, 0
      %p49 = por %p47, %p48
      %s50 = ssub.s32 %s16, %s23
      %p51 = scmp.eq.s32.totalorder %s50, 0
      %s53 = sadd.s32 %s52, 1
      %s54 = scalar_select %p51, %s52, %s53
      %p57 = pneg %p51
      %p58 = scmp.eq.s32.totalorder %s16, 1
      %p59 = por %p57, %p58
      %p60 = scmp.ne.s32.totalorder %s52, %s55
      %p61 = scmp.eq.s32.totalorder %s16, 0
      %p62 = por %p60, %p61
      %p63 = scmp.ne.s32.totalorder %s52, %s55
      %p64 = scmp.eq.s32.totalorder %s21, 1
      %p65 = por %p63, %p64
      %p66 = scmp.ne.s32.totalorder %s55, %s56
      %p67 = scmp.eq.s32.totalorder %s21, 0
      %p68 = por %p66, %p67
      %p69 = scmp.ne.s32.totalorder %s55, %s56
      %p70 = scmp.eq.s32.totalorder %s22, 1
      %p71 = por %p69, %p70
      %p73 = scmp.ne.s32.totalorder %s56, %s72
      %p74 = scmp.eq.s32.totalorder %s22, 0
      %p75 = por %p73, %p74
      %s77 = sadd.s32 %s76, 1
      %p80 = scmp.eq.s32.totalorder %s16, 1
      %p81 = scmp.ne.s32.totalorder %s76, %s78
      %p82 = scmp.eq.s32.totalorder %s16, 0
      %p83 = por %p81, %p82
      %p84 = scmp.ne.s32.totalorder %s76, %s78
      %p85 = scmp.eq.s32.totalorder %s21, 1
      %p86 = por %p84, %p85
      %p87 = scmp.ne.s32.totalorder %s78, %s79
      %p88 = scmp.eq.s32.totalorder %s21, 0
      %p89 = por %p87, %p88
      %p90 = scmp.ne.s32.totalorder %s78, %s79
      %p91 = scmp.eq.s32.totalorder %s22, 1
      %p92 = por %p90, %p91
      %p94 = scmp.ne.s32.totalorder %s79, %s93
      %p95 = scmp.eq.s32.totalorder %s22, 0
      %p96 = por %p94, %p95
      %s98 = sadd.s32 %s97, 1
      %p101 = scmp.eq.s32.totalorder %s16, 1
      %p102 = scmp.ne.s32.totalorder %s97, %s99
      %p103 = scmp.eq.s32.totalorder %s16, 0
      %p104 = por %p102, %p103
      %p105 = scmp.ne.s32.totalorder %s97, %s99
      %p106 = scmp.eq.s32.totalorder %s21, 1
      %p107 = por %p105, %p106
      %p108 = scmp.ne.s32.totalorder %s99, %s100
      %p109 = scmp.eq.s32.totalorder %s21, 0
      %p110 = por %p108, %p109
      %p111 = scmp.ne.s32.totalorder %s99, %s100
      %p112 = scmp.eq.s32.totalorder %s22, 1
      %p113 = por %p111, %p112
      %p115 = scmp.ne.s32.totalorder %s100, %s114
      %p116 = scmp.eq.s32.totalorder %s22, 0
      %p117 = por %p115, %p116
      %s119 = sadd.s32 %s118, 1
      %p122 = scmp.eq.s32.totalorder %s16, 1
      %p123 = scmp.ne.s32.totalorder %s118, %s120
      %p124 = scmp.eq.s32.totalorder %s16, 0
      %p125 = por %p123, %p124
      %p126 = scmp.ne.s32.totalorder %s118, %s120
      %p127 = scmp.eq.s32.totalorder %s21, 1
      %p128 = por %p126, %p127
      %p129 = scmp.ne.s32.totalorder %s120, %s121
      %p130 = scmp.eq.s32.totalorder %s21, 0
      %p131 = por %p129, %p130
      %p132 = scmp.ne.s32.totalorder %s120, %s121
      %p133 = scmp.eq.s32.totalorder %s22, 1
      %p134 = por %p132, %p133
      %p136 = scmp.ne.s32.totalorder %s121, %s135
      %p137 = scmp.eq.s32.totalorder %s22, 0
      %p138 = por %p136, %p137
      %s140 = sadd.s32 %s139, 1
      %p143 = scmp.eq.s32.totalorder %s16, 1
      %p144 = scmp.ne.s32.totalorder %s139, %s141
      %p145 = scmp.eq.s32.totalorder %s16, 0
      %p146 = por %p144, %p145
      %p147 = scmp.ne.s32.totalorder %s139, %s141
      %p148 = scmp.eq.s32.totalorder %s21, 1
      %p149 = por %p147, %p148
      %p150 = scmp.ne.s32.totalorder %s141, %s142
      %p151 = scmp.eq.s32.totalorder %s21, 0
      %p152 = por %p150, %p151
      %p153 = scmp.ne.s32.totalorder %s141, %s142
      %p154 = scmp.eq.s32.totalorder %s22, 1
      %p155 = por %p153, %p154
      %p157 = scmp.ne.s32.totalorder %s142, %s156
      %p158 = scmp.eq.s32.totalorder %s22, 0
      %p159 = por %p157, %p158
      %s161 = sadd.s32 %s160, 1
      %p164 = scmp.eq.s32.totalorder %s16, 1
      %p165 = scmp.ne.s32.totalorder %s160, %s162
      %p166 = scmp.eq.s32.totalorder %s16, 0
      %p167 = por %p165, %p166
      %p168 = scmp.ne.s32.totalorder %s160, %s162
      %p169 = scmp.eq.s32.totalorder %s21, 1
      %p170 = por %p168, %p169
      %p171 = scmp.ne.s32.totalorder %s162, %s163
      %p172 = scmp.eq.s32.totalorder %s21, 0
      %p173 = por %p171, %p172
      %p174 = scmp.ne.s32.totalorder %s162, %s163
      %p175 = scmp.eq.s32.totalorder %s22, 1
      %p176 = por %p174, %p175
      %p178 = scmp.ne.s32.totalorder %s163, %s177
      %p179 = scmp.eq.s32.totalorder %s22, 0
      %p180 = por %p178, %p179
      %s182 = sadd.s32 %s181, 1
      %p185 = scmp.eq.s32.totalorder %s16, 1
      %p186 = scmp.ne.s32.totalorder %s181, %s183
      %p187 = scmp.eq.s32.totalorder %s16, 0
      %p188 = por %p186, %p187
      %p189 = scmp.ne.s32.totalorder %s181, %s183
      %p190 = scmp.eq.s32.totalorder %s21, 1
      %p191 = por %p189, %p190
      %p192 = scmp.ne.s32.totalorder %s183, %s184
      %p193 = scmp.eq.s32.totalorder %s21, 0
      %p194 = por %p192, %p193
      %p195 = scmp.ne.s32.totalorder %s183, %s184
      %p196 = scmp.eq.s32.totalorder %s22, 1
      %p197 = por %p195, %p196
      %p199 = scmp.ne.s32.totalorder %s184, %s198
      %p200 = scmp.eq.s32.totalorder %s22, 0
      %p201 = por %p199, %p200
      %s203 = sadd.s32 %s202, 1
      %p206 = scmp.eq.s32.totalorder %s16, 1
      %p207 = scmp.ne.s32.totalorder %s202, %s204
      %p208 = scmp.eq.s32.totalorder %s16, 0
      %p209 = por %p207, %p208
      %p210 = scmp.ne.s32.totalorder %s202, %s204
      %p211 = scmp.eq.s32.totalorder %s21, 1
      %p212 = por %p210, %p211
      %p213 = scmp.ne.s32.totalorder %s204, %s205
      %p214 = scmp.eq.s32.totalorder %s21, 0
      %p215 = por %p213, %p214
      %p216 = scmp.ne.s32.totalorder %s204, %s205
      %p217 = scmp.eq.s32.totalorder %s22, 1
      %p218 = por %p216, %p217
      %p220 = scmp.ne.s32.totalorder %s205, %s219
      %p221 = scmp.eq.s32.totalorder %s22, 0
      %p222 = por %p220, %p221
      %s224 = sadd.s32 %s223, 1
      %p227 = scmp.eq.s32.totalorder %s16, 1
      %p228 = scmp.ne.s32.totalorder %s223, %s225
      %p229 = scmp.eq.s32.totalorder %s16, 0
      %p230 = por %p228, %p229
      %p231 = scmp.ne.s32.totalorder %s223, %s225
      %p232 = scmp.eq.s32.totalorder %s21, 1
      %p233 = por %p231, %p232
      %p234 = scmp.ne.s32.totalorder %s225, %s226
      %p235 = scmp.eq.s32.totalorder %s21, 0
      %p236 = por %p234, %p235
      %p237 = scmp.ne.s32.totalorder %s225, %s226
      %p238 = scmp.eq.s32.totalorder %s22, 1
      %p239 = por %p237, %p238
      %p241 = scmp.ne.s32.totalorder %s226, %s240
      %p242 = scmp.eq.s32.totalorder %s22, 0
      %p243 = por %p241, %p242
      %s244 = ssub.s32 %s16, %s23
      %p245 = scmp.eq.s32.totalorder %s244, 0
      %s247 = sadd.s32 %s246, 1
      %s248 = scalar_select %p245, %s246, %s247
      %p251 = pneg %p245
      %p252 = scmp.eq.s32.totalorder %s16, 1
      %p253 = por %p251, %p252
      %p254 = scmp.ne.s32.totalorder %s246, %s249
      %p255 = scmp.eq.s32.totalorder %s16, 0
      %p256 = por %p254, %p255
      %p257 = scmp.ne.s32.totalorder %s246, %s249
      %p258 = scmp.eq.s32.totalorder %s21, 1
      %p259 = por %p257, %p258
      %p260 = scmp.ne.s32.totalorder %s249, %s250
      %p261 = scmp.eq.s32.totalorder %s21, 0
      %p262 = por %p260, %p261
      %p263 = scmp.ne.s32.totalorder %s249, %s250
      %p264 = scmp.eq.s32.totalorder %s22, 1
      %p265 = por %p263, %p264
      %p267 = scmp.ne.s32.totalorder %s250, %s266
      %p268 = scmp.eq.s32.totalorder %s22, 0
      %p269 = por %p267, %p268
      %p270 = scmp.le.s32.totalorder 1, %s16
      %p271 = scmp.lt.s32.totalorder %s16, 3
      %p272 = pnand %p270, %p271
      %p273 = pneg %p272
      // Predicated region
      $region9: #{hierachical_rnn_forward.8} parent=5 // pred_check
        _
      $region10: #{hierachical_rnn_forward.8} parent=5 // pred_check_branch
        %275 = sbr.rel (%p272) target = $region12
      $region11: #{hierachical_rnn_forward.8} parent=5 // pred_region
        %s276 = ssub.s32 %s16, 1
        // Predicated region
        $region13: #{hierachical_rnn_forward.8} parent=11 // pred_check
          %p277 = pneg %p89
        $region14: #{hierachical_rnn_forward.8} parent=11 // pred_check_branch
          %279 = sbr.rel (%p277) target = $region16
        $region15: #{hierachical_rnn_forward.8} parent=11 // pred_region
          _
        $region16: #{hierachical_rnn_forward.8} parent=11 // pred_fallthru
          _
        // Predicated region
        $region17: #{hierachical_rnn_forward.8} parent=11 // pred_check
          %p280 = pneg %p110
        $region18: #{hierachical_rnn_forward.8} parent=11 // pred_check_branch
          %282 = sbr.rel (%p280) target = $region20
        $region19: #{hierachical_rnn_forward.8} parent=11 // pred_region
          _
        $region20: #{hierachical_rnn_forward.8} parent=11 // pred_fallthru
          _
        // Predicated region
        $region21: #{hierachical_rnn_forward.8} parent=11 // pred_check
          %p283 = pneg %p131
        $region22: #{hierachical_rnn_forward.8} parent=11 // pred_check_branch
          %285 = sbr.rel (%p283) target = $region24
        $region23: #{hierachical_rnn_forward.8} parent=11 // pred_region
          _
        $region24: #{hierachical_rnn_forward.8} parent=11 // pred_fallthru
          _
        // Predicated region
        $region25: #{hierachical_rnn_forward.8} parent=11 // pred_check
          %p286 = pneg %p152
        $region26: #{hierachical_rnn_forward.8} parent=11 // pred_check_branch
          %288 = sbr.rel (%p286) target = $region28
        $region27: #{hierachical_rnn_forward.8} parent=11 // pred_region
          _
        $region28: #{hierachical_rnn_forward.8} parent=11 // pred_fallthru
          _
        // Predicated region
        $region29: #{hierachical_rnn_forward.8} parent=11 // pred_check
          %p289 = pneg %p173
        $region30: #{hierachical_rnn_forward.8} parent=11 // pred_check_branch
          %291 = sbr.rel (%p289) target = $region32
        $region31: #{hierachical_rnn_forward.8} parent=11 // pred_region
          _
        $region32: #{hierachical_rnn_forward.8} parent=11 // pred_fallthru
          _
        // Predicated region
        $region33: #{hierachical_rnn_forward.8} parent=11 // pred_check
          %p292 = pneg %p194
        $region34: #{hierachical_rnn_forward.8} parent=11 // pred_check_branch
          %294 = sbr.rel (%p292) target = $region36
        $region35: #{hierachical_rnn_forward.8} parent=11 // pred_region
          _
        $region36: #{hierachical_rnn_forward.8} parent=11 // pred_fallthru
          _
        // Predicated region
        $region37: #{hierachical_rnn_forward.8} parent=11 // pred_check
          %p295 = pneg %p215
        $region38: #{hierachical_rnn_forward.8} parent=11 // pred_check_branch
          %297 = sbr.rel (%p295) target = $region40
        $region39: #{hierachical_rnn_forward.8} parent=11 // pred_region
          _
        $region40: #{hierachical_rnn_forward.8} parent=11 // pred_fallthru
          _
        // Predicated region
        $region41: #{hierachical_rnn_forward.8} parent=11 // pred_check
          %p298 = pneg %p236
        $region42: #{hierachical_rnn_forward.8} parent=11 // pred_check_branch
          %300 = sbr.rel (%p298) target = $region44
        $region43: #{hierachical_rnn_forward.8} parent=11 // pred_region
          _
        $region44: #{hierachical_rnn_forward.8} parent=11 // pred_fallthru
          _
      $region12: #{hierachical_rnn_forward.8} parent=5 // pred_fallthru
        _
      %p301 = scmp.lt.s32.totalorder %s16, 2
      // Predicated region
      $region45: #{hierachical_rnn_forward.8} parent=5 // pred_check
        %p302 = pneg %p301
      $region46: #{hierachical_rnn_forward.8} parent=5 // pred_check_branch
        %304 = sbr.rel (%p302) target = $region48
      $region47: #{hierachical_rnn_forward.8} parent=5 // pred_region
        // Predicated region
        $region49: #{hierachical_rnn_forward.8} parent=47 // pred_check
          %p305 = pneg %p36
        $region50: #{hierachical_rnn_forward.8} parent=47 // pred_check_branch
          %307 = sbr.rel (%p305) target = $region52
        $region51: #{hierachical_rnn_forward.8} parent=47 // pred_region
          %s308 = sand.u32 %s26, 1
          %s309 = sand.u32 %s26, 1
          %s310 = smul.addr %s309, 32
          %s311 = scalar_lea.vmem [#allocation2], %s310
          %s312 = smul.addr %s16, 8
          %s313 = scalar_lea.vmem %s0, %s312
          // Predicated region
          $region53: #{hierachical_rnn_forward.8} parent=51 // pred_check
            _
          $region54: #{hierachical_rnn_forward.8} parent=51 // pred_check_branch
            %315 = sbr.rel (0) target = $region56
          $region55: #{hierachical_rnn_forward.8} parent=51 // pred_region
            // Predicated region
            $region57: #{hierachical_rnn_forward.8} parent=55 // pred_check
              _
            $region58: #{hierachical_rnn_forward.8} parent=55 // pred_check_branch
              %317 = sbr.rel (0) target = $region60
            $region59: #{hierachical_rnn_forward.8} parent=55 // pred_region
              // Predicated region
              $region72: #{hierachical_rnn_forward.8} parent=59 // pred_check
                _
              $region73: #{hierachical_rnn_forward.8} parent=59 // pred_check_branch
                %338 = sbr.rel (0) target = $region75
              $region74: #{hierachical_rnn_forward.8} parent=59 // pred_region
                loop: start=0, step=1, limit=1
                $region76: #{hierachical_rnn_forward.8} parent=74 // loop_pre_header
                  _
                $region77: #{hierachical_rnn_forward.8} parent=74 // loop_header
                  %s340 = sphi 0, %s344
                  %p341 = scmp.ge.s32.totalorder %s340, 1
                  %s345 = sphi %s313, %s313
                  %s346 = sphi %s311, %s311
                $region78: #{hierachical_rnn_forward.8} parent=74 // loop_header_branch
                  %343 = sbr.rel (%p341) target = $region82
                $region79: #{hierachical_rnn_forward.8} parent=74 // loop_body
                  %v347 = vld [vmem:[%s345] sm:$0xff]
                  %348 = vst [vmem:[%s346] sm:$0xff] %v347
                  %v349 = vld [vmem:[%s345 + $0x10] sm:$0xff]
                  %350 = vst [vmem:[%s346 + $0x8] sm:$0xff] %v349
                  %v351 = vld [vmem:[%s345 + $0x20] sm:$0xff]
                  %352 = vst [vmem:[%s346 + $0x10] sm:$0xff] %v351
                  %v353 = vld [vmem:[%s345 + $0x30] sm:$0xff]
                  %354 = vst [vmem:[%s346 + $0x18] sm:$0xff] %v353
                $region80: #{hierachical_rnn_forward.8} parent=74 // loop_footer
                  %s344 = sadd.s32 1, %s340
                $region81: #{hierachical_rnn_forward.8} parent=74 // loop_footer_branch
                  %339 = sbr.rel target = $region77
                $region82: #{hierachical_rnn_forward.8} parent=74 // loop_exit
                  _
              $region75: #{hierachical_rnn_forward.8} parent=59 // pred_fallthru
                _
              // Predicated region
              $region83: #{hierachical_rnn_forward.8} parent=59 // pred_check
                _
              $region84: #{hierachical_rnn_forward.8} parent=59 // pred_check_branch
                %356 = sbr.rel target = $region86
              $region85: #{hierachical_rnn_forward.8} parent=59 // pred_region
                _
              $region86: #{hierachical_rnn_forward.8} parent=59 // pred_fallthru
                _
            $region60: #{hierachical_rnn_forward.8} parent=55 // pred_fallthru
              _
            // Predicated region
            $region61: #{hierachical_rnn_forward.8} parent=55 // pred_check
              _
            $region62: #{hierachical_rnn_forward.8} parent=55 // pred_check_branch
              %319 = sbr.rel target = $region64
            $region63: #{hierachical_rnn_forward.8} parent=55 // pred_region
              loop: start=0, step=1, limit=1
              $region65: #{hierachical_rnn_forward.8} parent=63 // loop_pre_header
                _
              $region66: #{hierachical_rnn_forward.8} parent=63 // loop_header
                %s322 = sphi 0, %s326
                %p323 = scmp.ge.s32.totalorder %s322, 1
                %s327 = sphi %s313, %s313
                %s328 = sphi %s311, %s311
              $region67: #{hierachical_rnn_forward.8} parent=63 // loop_header_branch
                %325 = sbr.rel (%p323) target = $region71
              $region68: #{hierachical_rnn_forward.8} parent=63 // loop_body
                %v329 = vld [vmem:[%s327] sm:$0xff]
                %330 = vst [vmem:[%s328] sm:$0xff] %v329
                %v331 = vld [vmem:[%s327 + $0x10] sm:$0xff]
                %332 = vst [vmem:[%s328 + $0x8] sm:$0xff] %v331
                %v333 = vld [vmem:[%s327 + $0x20] sm:$0xff]
                %334 = vst [vmem:[%s328 + $0x10] sm:$0xff] %v333
                %v335 = vld [vmem:[%s327 + $0x30] sm:$0xff]
                %336 = vst [vmem:[%s328 + $0x18] sm:$0xff] %v335
              $region69: #{hierachical_rnn_forward.8} parent=63 // loop_footer
                %s326 = sadd.s32 1, %s322
              $region70: #{hierachical_rnn_forward.8} parent=63 // loop_footer_branch
                %321 = sbr.rel target = $region66
              $region71: #{hierachical_rnn_forward.8} parent=63 // loop_exit
                _
            $region64: #{hierachical_rnn_forward.8} parent=55 // pred_fallthru
              _
          $region56: #{hierachical_rnn_forward.8} parent=51 // pred_fallthru
            _
          %357 = vnop
        $region52: #{hierachical_rnn_forward.8} parent=47 // pred_fallthru
          _
        // Predicated region
        $region87: #{hierachical_rnn_forward.8} parent=47 // pred_check
          %p358 = pneg %p62
        $region88: #{hierachical_rnn_forward.8} parent=47 // pred_check_branch
          %360 = sbr.rel (%p358) target = $region90
        $region89: #{hierachical_rnn_forward.8} parent=47 // pred_region
          %s361 = sand.u32 %s52, 1
          %s362 = sand.u32 %s52, 1
          %s363 = smul.addr %s362, 16
          %s364 = scalar_lea.vmem [#allocation3], %s363
          %s365 = smul.addr %s16, 8
          %s366 = scalar_lea.vmem %s1, %s365
          // Predicated region
          $region91: #{hierachical_rnn_forward.8} parent=89 // pred_check
            _
          $region92: #{hierachical_rnn_forward.8} parent=89 // pred_check_branch
            %368 = sbr.rel (0) target = $region94
          $region93: #{hierachical_rnn_forward.8} parent=89 // pred_region
            // Predicated region
            $region95: #{hierachical_rnn_forward.8} parent=93 // pred_check
              _
            $region96: #{hierachical_rnn_forward.8} parent=93 // pred_check_branch
              %370 = sbr.rel (0) target = $region98
            $region97: #{hierachical_rnn_forward.8} parent=93 // pred_region
              // Predicated region
              $region110: #{hierachical_rnn_forward.8} parent=97 // pred_check
                _
              $region111: #{hierachical_rnn_forward.8} parent=97 // pred_check_branch
                %387 = sbr.rel (0) target = $region113
              $region112: #{hierachical_rnn_forward.8} parent=97 // pred_region
                loop: start=0, step=1, limit=1
                $region114: #{hierachical_rnn_forward.8} parent=112 // loop_pre_header
                  _
                $region115: #{hierachical_rnn_forward.8} parent=112 // loop_header
                  %s389 = sphi 0, %s393
                  %p390 = scmp.ge.s32.totalorder %s389, 1
                  %s394 = sphi %s366, %s366
                  %s395 = sphi %s364, %s364
                $region116: #{hierachical_rnn_forward.8} parent=112 // loop_header_branch
                  %392 = sbr.rel (%p390) target = $region120
                $region117: #{hierachical_rnn_forward.8} parent=112 // loop_body
                  %v396 = vld [vmem:[%s394] sm:$0xff]
                  %397 = vst [vmem:[%s395] sm:$0xff] %v396
                  %v398 = vld [vmem:[%s394 + $0x10] sm:$0xff]
                  %399 = vst [vmem:[%s395 + $0x8] sm:$0xff] %v398
                $region118: #{hierachical_rnn_forward.8} parent=112 // loop_footer
                  %s393 = sadd.s32 1, %s389
                $region119: #{hierachical_rnn_forward.8} parent=112 // loop_footer_branch
                  %388 = sbr.rel target = $region115
                $region120: #{hierachical_rnn_forward.8} parent=112 // loop_exit
                  _
              $region113: #{hierachical_rnn_forward.8} parent=97 // pred_fallthru
                _
              // Predicated region
              $region121: #{hierachical_rnn_forward.8} parent=97 // pred_check
                _
              $region122: #{hierachical_rnn_forward.8} parent=97 // pred_check_branch
                %401 = sbr.rel target = $region124
              $region123: #{hierachical_rnn_forward.8} parent=97 // pred_region
                _
              $region124: #{hierachical_rnn_forward.8} parent=97 // pred_fallthru
                _
            $region98: #{hierachical_rnn_forward.8} parent=93 // pred_fallthru
              _
            // Predicated region
            $region99: #{hierachical_rnn_forward.8} parent=93 // pred_check
              _
            $region100: #{hierachical_rnn_forward.8} parent=93 // pred_check_branch
              %372 = sbr.rel target = $region102
            $region101: #{hierachical_rnn_forward.8} parent=93 // pred_region
              loop: start=0, step=1, limit=1
              $region103: #{hierachical_rnn_forward.8} parent=101 // loop_pre_header
                _
              $region104: #{hierachical_rnn_forward.8} parent=101 // loop_header
                %s375 = sphi 0, %s379
                %p376 = scmp.ge.s32.totalorder %s375, 1
                %s380 = sphi %s366, %s366
                %s381 = sphi %s364, %s364
              $region105: #{hierachical_rnn_forward.8} parent=101 // loop_header_branch
                %378 = sbr.rel (%p376) target = $region109
              $region106: #{hierachical_rnn_forward.8} parent=101 // loop_body
                %v382 = vld [vmem:[%s380] sm:$0xff]
                %383 = vst [vmem:[%s381] sm:$0xff] %v382
                %v384 = vld [vmem:[%s380 + $0x10] sm:$0xff]
                %385 = vst [vmem:[%s381 + $0x8] sm:$0xff] %v384
              $region107: #{hierachical_rnn_forward.8} parent=101 // loop_footer
                %s379 = sadd.s32 1, %s375
              $region108: #{hierachical_rnn_forward.8} parent=101 // loop_footer_branch
                %374 = sbr.rel target = $region104
              $region109: #{hierachical_rnn_forward.8} parent=101 // loop_exit
                _
            $region102: #{hierachical_rnn_forward.8} parent=93 // pred_fallthru
              _
          $region94: #{hierachical_rnn_forward.8} parent=89 // pred_fallthru
            _
          %402 = vnop
        $region90: #{hierachical_rnn_forward.8} parent=47 // pred_fallthru
          _
      $region48: #{hierachical_rnn_forward.8} parent=5 // pred_fallthru
        _
      %p403 = scmp.le.s32.totalorder 1, %s16
      %p404 = scmp.lt.s32.totalorder %s16, 3
      %p405 = pnand %p403, %p404
      %p406 = pneg %p405
      // Predicated region
      $region125: #{hierachical_rnn_forward.8} parent=5 // pred_check
        _
      $region126: #{hierachical_rnn_forward.8} parent=5 // pred_check_branch
        %408 = sbr.rel (%p405) target = $region128
      $region127: #{hierachical_rnn_forward.8} parent=5 // pred_region
        %s409 = ssub.s32 %s16, 1
        %s410 = sand.u32 %s29, 1
        %s411 = sand.u32 %s29, 1
        %s412 = smul.addr %s411, 32
        %s413 = scalar_lea.vmem [#allocation2], %s412
        // Predicated region
        $region129: #{hierachical_rnn_forward.8} parent=127 // pred_check
          %p414 = pneg %p42
        $region130: #{hierachical_rnn_forward.8} parent=127 // pred_check_branch
          %416 = sbr.rel (%p414) target = $region132
        $region131: #{hierachical_rnn_forward.8} parent=127 // pred_region
          _
        $region132: #{hierachical_rnn_forward.8} parent=127 // pred_fallthru
          _
        %s417 = sand.u32 %s55, 1
        %s418 = sand.u32 %s55, 1
        %s419 = smul.addr %s418, 16
        %s420 = scalar_lea.vmem [#allocation3], %s419
        // Predicated region
        $region133: #{hierachical_rnn_forward.8} parent=127 // pred_check
          %p421 = pneg %p68
        $region134: #{hierachical_rnn_forward.8} parent=127 // pred_check_branch
          %423 = sbr.rel (%p421) target = $region136
        $region135: #{hierachical_rnn_forward.8} parent=127 // pred_region
          _
        $region136: #{hierachical_rnn_forward.8} parent=127 // pred_fallthru
          _
        %s424 = sand.u32 %s29, 1
        %s425 = sand.u32 %s29, 1
        %s426 = smul.addr %s425, 32
        %s427 = scalar_lea.vmem [#allocation2], %s426
        %p428 = pneg %p42
        %p429 = pneg %p39
        %s430 = sand.u32 %s55, 1
        %s431 = sand.u32 %s55, 1
        %s432 = smul.addr %s431, 16
        %s433 = scalar_lea.vmem [#allocation3], %s432
        %p434 = pneg %p68
        %p435 = pneg %p65
        %p436 = pneg %p89
        %p437 = pneg %p86
        %p438 = pneg %p110
        %p439 = pneg %p107
        %p440 = pneg %p131
        %p441 = pneg %p128
        %p442 = pneg %p152
        %p443 = pneg %p149
        %p444 = pneg %p173
        %p445 = pneg %p170
        %p446 = pneg %p194
        %p447 = pneg %p191
        %p448 = pneg %p215
        %p449 = pneg %p212
        %p450 = pneg %p236
        %p451 = pneg %p233
        %p452 = pneg %p262
        %p453 = pneg %p259
        %p454 = scmp.lt.s32.totalorder %s21, 1
        %s455 = scalar_select %p454, %s21, 1
        %s456 = smul.addr %s455, 8
        %s457 = scalar_lea.vmem %s10, %s456
        %p458 = scmp.lt.s32.totalorder %s21, 1
        %s459 = scalar_select %p458, %s21, 1
        %s460 = smul.addr %s459, 8
        %s461 = scalar_lea.vmem %s10, %s460
        %v463 = vld [vmem:[%s413] sm:$0xff]
        %v464 = vld [vmem:[%s413 + $0x8] sm:$0xff]
        %v465 = vld [vmem:[%s413 + $0x10] sm:$0xff]
        %v466 = vld [vmem:[%s413 + $0x18] sm:$0xff]
        %v467 = vpack.c.bf16 %v464, %v463
        %v468 = vpack.c.bf16 %v466, %v465
        %v469 = vld [vmem:[%s2] sm:$0xf]
        %v470 = vld [vmem:[%s2 + $0x4] sm:$0xf]
        %v471 = vld [vmem:[%s4] sm:$0x1]
        %v473 = vlaneseq
        %v474 = vshrl.u32 %v473, 7
        %v475 = vsub.s32 0, %v474
        %v476 = vrot.slane %v471, %v475
        %v480 = vunpack.c.l.b16 %v469
        %v481 = vunpack.c.l.b16 %v470
        %v482 = vpack.c.b16 %v481, %v480
        %vm484 = vcmask 130048
        %v486 = vsel %vm484, %v467, 0
        %v489 = vsel %vm484, %v468, 0
        %491 = vmatprep.subr.bf16.mxu0 0
        %492 = vmatpush1.bf16.msra.mxu0 %v482
        %493 = vmatprep.subr.bf16.mxu0 0
        %494 = vmatpush1.bf16.msra.mxu0 0
        %495 = vmatprep.subr.bf16.mxu0 0
        %496 = vmatpush1.bf16.msra.mxu0 0
        %497 = vmatprep.subr.bf16.mxu0 0
        %498 = vmatpush1.bf16.msra.mxu0 0
        %499 = vmatprep.subr.bf16.mxu0 0
        %500 = vmatpush1.bf16.msra.mxu0 0
        %501 = vmatprep.subr.bf16.mxu0 0
        %502 = vmatpush1.bf16.msra.mxu0 0
        %503 = vmatprep.subr.bf16.mxu0 0
        %504 = vmatpush1.bf16.msra.mxu0 0
        %505 = vmatprep.subr.bf16.mxu0 0
        %506 = vmatpush1.bf16.msra.mxu0 0
        %507 = vmatprep.subr.bf16.mxu0 0
        %508 = vmatpush1.bf16.msra.mxu0 0
        %509 = vmatprep.subr.bf16.mxu0 0
        %510 = vmatpush1.bf16.msra.mxu0 0
        %511 = vmatprep.subr.bf16.mxu0 0
        %512 = vmatpush1.bf16.msra.mxu0 0
        %513 = vmatprep.subr.bf16.mxu0 0
        %514 = vmatpush1.bf16.msra.mxu0 0
        %515 = vmatprep.subr.bf16.mxu0 0
        %516 = vmatpush1.bf16.msra.mxu0 0
        %517 = vmatprep.subr.bf16.mxu0 0
        %518 = vmatpush1.bf16.msra.mxu0 0
        %519 = vmatprep.subr.bf16.mxu0 0
        %520 = vmatpush1.bf16.msra.mxu0 0
        %521 = vmatprep.subr.bf16.mxu0 0
        %522 = vmatpush1.bf16.msra.mxu0 0
        %523 = vmatprep.mubr.bf16.mxu0 0
        %524 = vmatmul.mubr.bf16.gmra.mrb[0].mxu0 %v486
        %v525 = vpop.f32.mrb[0].mxu0
        %v526 = vadd.f32 %v476, %v525
        %v527 = vpop.f32.mrb[0].mxu0
        %v528 = vpop.f32.mrb[0].mxu0
        %v529 = vadd.f32 %v476, %v528
        %v530 = vpop.f32.mrb[0].mxu0
        %531 = vmatprep.mubr.bf16.mxu0 0
        %532 = vmatmul.mubr.bf16.gmra.mrb[0].mxu0 %v489
        %v533 = vpop.f32.mrb[0].mxu0
        %v534 = vadd.f32 %v476, %v533
        %v535 = vpop.f32.mrb[0].mxu0
        %v536 = vpop.f32.mrb[0].mxu0
        %v537 = vadd.f32 %v476, %v536
        %v538 = vpop.f32.mrb[0].mxu0
        %539 = vdwg.mxu0
        %s540 = scalar_lea.vmem %s2, 8
        %v541 = vld [vmem:[%s540] sm:$0xf]
        %v542 = vld [vmem:[%s540 + $0x4] sm:$0xf]
        %s543 = scalar_lea.vmem %s4, 1
        %v544 = vld [vmem:[%s543] sm:$0x1]
        %v546 = vlaneseq
        %v547 = vshrl.u32 %v546, 7
        %v548 = vsub.s32 0, %v547
        %v549 = vrot.slane %v544, %v548
        %v553 = vunpack.c.l.b16 %v541
        %v554 = vunpack.c.l.b16 %v542
        %v555 = vpack.c.b16 %v554, %v553
        %557 = vmatprep.subr.bf16.mxu0 0
        %558 = vmatpush1.bf16.msra.mxu0 %v555
        %559 = vmatprep.subr.bf16.mxu0 0
        %560 = vmatpush1.bf16.msra.mxu0 0
        %561 = vmatprep.subr.bf16.mxu0 0
        %562 = vmatpush1.bf16.msra.mxu0 0
        %563 = vmatprep.subr.bf16.mxu0 0
        %564 = vmatpush1.bf16.msra.mxu0 0
        %565 = vmatprep.subr.bf16.mxu0 0
        %566 = vmatpush1.bf16.msra.mxu0 0
        %567 = vmatprep.subr.bf16.mxu0 0
        %568 = vmatpush1.bf16.msra.mxu0 0
        %569 = vmatprep.subr.bf16.mxu0 0
        %570 = vmatpush1.bf16.msra.mxu0 0
        %571 = vmatprep.subr.bf16.mxu0 0
        %572 = vmatpush1.bf16.msra.mxu0 0
        %573 = vmatprep.subr.bf16.mxu0 0
        %574 = vmatpush1.bf16.msra.mxu0 0
        %575 = vmatprep.subr.bf16.mxu0 0
        %576 = vmatpush1.bf16.msra.mxu0 0
        %577 = vmatprep.subr.bf16.mxu0 0
        %578 = vmatpush1.bf16.msra.mxu0 0
        %579 = vmatprep.subr.bf16.mxu0 0
        %580 = vmatpush1.bf16.msra.mxu0 0
        %581 = vmatprep.subr.bf16.mxu0 0
        %582 = vmatpush1.bf16.msra.mxu0 0
        %583 = vmatprep.subr.bf16.mxu0 0
        %584 = vmatpush1.bf16.msra.mxu0 0
        %585 = vmatprep.subr.bf16.mxu0 0
        %586 = vmatpush1.bf16.msra.mxu0 0
        %587 = vmatprep.subr.bf16.mxu0 0
        %588 = vmatpush1.bf16.msra.mxu0 0
        %589 = vmatprep.mubr.bf16.mxu0 0
        %590 = vmatmul.mubr.bf16.gmra.mrb[0].mxu0 %v486
        %v591 = vpop.f32.mrb[0].mxu0
        %v592 = vadd.f32 %v549, %v591
        %v593 = vpop.f32.mrb[0].mxu0
        %v594 = vpop.f32.mrb[0].mxu0
        %v595 = vadd.f32 %v549, %v594
        %v596 = vpop.f32.mrb[0].mxu0
        %597 = vmatprep.mubr.bf16.mxu0 0
        %598 = vmatmul.mubr.bf16.gmra.mrb[0].mxu0 %v489
        %v599 = vpop.f32.mrb[0].mxu0
        %v600 = vadd.f32 %v549, %v599
        %v601 = vpop.f32.mrb[0].mxu0
        %v602 = vpop.f32.mrb[0].mxu0
        %v603 = vadd.f32 %v549, %v602
        %v604 = vpop.f32.mrb[0].mxu0
        %605 = vdwg.mxu0
        %v606 = vld [vmem:[%s3] sm:$0xf]
        %v607 = vld [vmem:[%s3 + $0x4] sm:$0xf]
        %s608 = scalar_lea.vmem %s3, 8
        %v609 = vld [vmem:[%s608] sm:$0xf]
        %v610 = vld [vmem:[%s608 + $0x4] sm:$0xf]
        %v611 = vld [vmem:[%s5] sm:$0x1]
        %s612 = scalar_lea.vmem %s5, 1
        %v613 = vld [vmem:[%s612] sm:$0x1]
        %v614 = vld [vmem:[%s420] sm:$0xff]
        %s615 = scalar_lea.vmem %s420, 8 [#allocation3]
        %v616 = vld [vmem:[%s615] sm:$0xff]
        %v617 = vpack.c.bf16 %v614, %v614
        %v619 = vlaneseq
        %v620 = vshrl.u32 %v619, 7
        %v621 = vsub.s32 0, %v620
        %v622 = vrot.slane %v611, %v621
        %v626 = vunpack.c.l.b16 %v606
        %v627 = vunpack.c.l.b16 %v607
        %v628 = vpack.c.b16 %v627, %v626
        %v631 = vsel %vm484, %v617, 0
        %633 = vmatprep.subr.bf16.mxu0 0
        %634 = vmatpush1.bf16.msra.mxu0 %v628
        %635 = vmatprep.subr.bf16.mxu0 0
        %636 = vmatpush1.bf16.msra.mxu0 0
        %637 = vmatprep.subr.bf16.mxu0 0
        %638 = vmatpush1.bf16.msra.mxu0 0
        %639 = vmatprep.subr.bf16.mxu0 0
        %640 = vmatpush1.bf16.msra.mxu0 0
        %641 = vmatprep.subr.bf16.mxu0 0
        %642 = vmatpush1.bf16.msra.mxu0 0
        %643 = vmatprep.subr.bf16.mxu0 0
        %644 = vmatpush1.bf16.msra.mxu0 0
        %645 = vmatprep.subr.bf16.mxu0 0
        %646 = vmatpush1.bf16.msra.mxu0 0
        %647 = vmatprep.subr.bf16.mxu0 0
        %648 = vmatpush1.bf16.msra.mxu0 0
        %649 = vmatprep.subr.bf16.mxu0 0
        %650 = vmatpush1.bf16.msra.mxu0 0
        %651 = vmatprep.subr.bf16.mxu0 0
        %652 = vmatpush1.bf16.msra.mxu0 0
        %653 = vmatprep.subr.bf16.mxu0 0
        %654 = vmatpush1.bf16.msra.mxu0 0
        %655 = vmatprep.subr.bf16.mxu0 0
        %656 = vmatpush1.bf16.msra.mxu0 0
        %657 = vmatprep.subr.bf16.mxu0 0
        %658 = vmatpush1.bf16.msra.mxu0 0
        %659 = vmatprep.subr.bf16.mxu0 0
        %660 = vmatpush1.bf16.msra.mxu0 0
        %661 = vmatprep.subr.bf16.mxu0 0
        %662 = vmatpush1.bf16.msra.mxu0 0
        %663 = vmatprep.subr.bf16.mxu0 0
        %664 = vmatpush1.bf16.msra.mxu0 0
        %665 = vmatprep.mubr.bf16.mxu0 0
        %666 = vmatmul.mubr.bf16.gmra.mrb[0].mxu0 %v631
        %v667 = vpop.f32.mrb[0].mxu0
        %v668 = vadd.f32 %v622, %v667
        %v669 = vpop.f32.mrb[0].mxu0
        %v670 = vpop.f32.mrb[0].mxu0
        %v671 = vpop.f32.mrb[0].mxu0
        %672 = vdwg.mxu0
        %v673 = vadd.f32 %v526, %v668
        %v674 = vxor.u32 %v673, 2147483648
        %v675 = vmul.f32 %v674, 1.442695
        %v676 = vpow.pop %v675
        %v677 = vadd.f32 %v676, 1.0
        %v678 = vrcp.pop %v677
        %v679 = vmul.f32 1.0, %v678
        %681 = vrot.lane.b32.xlu0 %v668, 96
        %v682 = vpop.permute.xlu0 %681
        %v684 = vmul.f32 %v679, %v682
        %686 = vrot.lane.b32.xlu0 %v684, 32
        %v687 = vpop.permute.xlu0 %686
        %v689 = vadd.f32 %v526, %v687
        %v690 = vtanh.pop %v689
        %v691 = vsub.f32 1.0, %v679
        %693 = vrot.lane.b32.xlu0 %v690, 112
        %v694 = vpop.permute.xlu0 %693
        %v696 = vmul.f32 %v691, %v694
        %698 = vrot.lane.b32.xlu0 %v614, 16
        %v699 = vpop.permute.xlu0 %698
        %v701 = vmul.f32 %v679, %v699
        %v702 = vadd.f32 %v696, %v701
        %v703 = vpack.c.bf16 %v616, %v616
        %v705 = vlaneseq
        %v706 = vshrl.u32 %v705, 7
        %v707 = vsub.s32 0, %v706
        %v708 = vrot.slane %v613, %v707
        %v712 = vunpack.c.l.b16 %v609
        %v713 = vunpack.c.l.b16 %v610
        %v714 = vpack.c.b16 %v713, %v712
        %v717 = vsel %vm484, %v703, 0
        %719 = vmatprep.subr.bf16.mxu0 0
        %720 = vmatpush1.bf16.msra.mxu0 %v714
        %721 = vmatprep.subr.bf16.mxu0 0
        %722 = vmatpush1.bf16.msra.mxu0 0
        %723 = vmatprep.subr.bf16.mxu0 0
        %724 = vmatpush1.bf16.msra.mxu0 0
        %725 = vmatprep.subr.bf16.mxu0 0
        %726 = vmatpush1.bf16.msra.mxu0 0
        %727 = vmatprep.subr.bf16.mxu0 0
        %728 = vmatpush1.bf16.msra.mxu0 0
        %729 = vmatprep.subr.bf16.mxu0 0
        %730 = vmatpush1.bf16.msra.mxu0 0
        %731 = vmatprep.subr.bf16.mxu0 0
        %732 = vmatpush1.bf16.msra.mxu0 0
        %733 = vmatprep.subr.bf16.mxu0 0
        %734 = vmatpush1.bf16.msra.mxu0 0
        %735 = vmatprep.subr.bf16.mxu0 0
        %736 = vmatpush1.bf16.msra.mxu0 0
        %737 = vmatprep.subr.bf16.mxu0 0
        %738 = vmatpush1.bf16.msra.mxu0 0
        %739 = vmatprep.subr.bf16.mxu0 0
        %740 = vmatpush1.bf16.msra.mxu0 0
        %741 = vmatprep.subr.bf16.mxu0 0
        %742 = vmatpush1.bf16.msra.mxu0 0
        %743 = vmatprep.subr.bf16.mxu0 0
        %744 = vmatpush1.bf16.msra.mxu0 0
        %745 = vmatprep.subr.bf16.mxu0 0
        %746 = vmatpush1.bf16.msra.mxu0 0
        %747 = vmatprep.subr.bf16.mxu0 0
        %748 = vmatpush1.bf16.msra.mxu0 0
        %749 = vmatprep.subr.bf16.mxu0 0
        %750 = vmatpush1.bf16.msra.mxu0 0
        %751 = vmatprep.mubr.bf16.mxu0 0
        %752 = vmatmul.mubr.bf16.gmra.mrb[0].mxu0 %v717
        %v753 = vpop.f32.mrb[0].mxu0
        %v754 = vadd.f32 %v708, %v753
        %v755 = vpop.f32.mrb[0].mxu0
        %v756 = vpop.f32.mrb[0].mxu0
        %v757 = vpop.f32.mrb[0].mxu0
        %758 = vdwg.mxu0
        %v759 = vadd.f32 %v603, %v754
        %v760 = vxor.u32 %v759, 2147483648
        %v761 = vmul.f32 %v760, 1.442695
        %v762 = vpow.pop %v761
        %v763 = vadd.f32 %v762, 1.0
        %v764 = vrcp.pop %v763
        %v765 = vmul.f32 1.0, %v764
        %767 = vrot.lane.b32.xlu0 %v754, 96
        %v768 = vpop.permute.xlu0 %767
        %v770 = vmul.f32 %v765, %v768
        %772 = vrot.lane.b32.xlu0 %v770, 32
        %v773 = vpop.permute.xlu0 %772
        %v775 = vadd.f32 %v603, %v773
        %v776 = vtanh.pop %v775
        %v777 = vsub.f32 1.0, %v765
        %779 = vrot.lane.b32.xlu0 %v776, 112
        %v780 = vpop.permute.xlu0 %779
        %v782 = vmul.f32 %v777, %v780
        %784 = vrot.lane.b32.xlu0 %v616, 16
        %v785 = vpop.permute.xlu0 %784
        %v787 = vmul.f32 %v765, %v785
        %v788 = vadd.f32 %v782, %v787
        %v789 = vpack.c.bf16 %v702, %v702
        %791 = vrot.lane.b32.xlu0 %v789, 112
        %v792 = vpop.permute.xlu0 %791
        %v794 = vsel %vm484, %v792, 0
        %796 = vmatprep.subr.bf16.mxu0 0
        %797 = vmatpush1.bf16.msra.mxu0 %v628
        %798 = vmatprep.subr.bf16.mxu0 0
        %799 = vmatpush1.bf16.msra.mxu0 0
        %800 = vmatprep.subr.bf16.mxu0 0
        %801 = vmatpush1.bf16.msra.mxu0 0
        %802 = vmatprep.subr.bf16.mxu0 0
        %803 = vmatpush1.bf16.msra.mxu0 0
        %804 = vmatprep.subr.bf16.mxu0 0
        %805 = vmatpush1.bf16.msra.mxu0 0
        %806 = vmatprep.subr.bf16.mxu0 0
        %807 = vmatpush1.bf16.msra.mxu0 0
        %808 = vmatprep.subr.bf16.mxu0 0
        %809 = vmatpush1.bf16.msra.mxu0 0
        %810 = vmatprep.subr.bf16.mxu0 0
        %811 = vmatpush1.bf16.msra.mxu0 0
        %812 = vmatprep.subr.bf16.mxu0 0
        %813 = vmatpush1.bf16.msra.mxu0 0
        %814 = vmatprep.subr.bf16.mxu0 0
        %815 = vmatpush1.bf16.msra.mxu0 0
        %816 = vmatprep.subr.bf16.mxu0 0
        %817 = vmatpush1.bf16.msra.mxu0 0
        %818 = vmatprep.subr.bf16.mxu0 0
        %819 = vmatpush1.bf16.msra.mxu0 0
        %820 = vmatprep.subr.bf16.mxu0 0
        %821 = vmatpush1.bf16.msra.mxu0 0
        %822 = vmatprep.subr.bf16.mxu0 0
        %823 = vmatpush1.bf16.msra.mxu0 0
        %824 = vmatprep.subr.bf16.mxu0 0
        %825 = vmatpush1.bf16.msra.mxu0 0
        %826 = vmatprep.subr.bf16.mxu0 0
        %827 = vmatpush1.bf16.msra.mxu0 0
        %828 = vmatprep.mubr.bf16.mxu0 0
        %829 = vmatmul.mubr.bf16.gmra.mrb[0].mxu0 %v794
        %v830 = vpop.f32.mrb[0].mxu0
        %v831 = vadd.f32 %v622, %v830
        %v832 = vpop.f32.mrb[0].mxu0
        %v833 = vpop.f32.mrb[0].mxu0
        %v834 = vpop.f32.mrb[0].mxu0
        %835 = vdwg.mxu0
        %v836 = vadd.f32 %v529, %v831
        %v837 = vxor.u32 %v836, 2147483648
        %v838 = vmul.f32 %v837, 1.442695
        %v839 = vpow.pop %v838
        %v840 = vadd.f32 %v839, 1.0
        %v841 = vrcp.pop %v840
        %v842 = vmul.f32 1.0, %v841
        %844 = vrot.lane.b32.xlu0 %v831, 96
        %v845 = vpop.permute.xlu0 %844
        %v847 = vmul.f32 %v842, %v845
        %849 = vrot.lane.b32.xlu0 %v847, 32
        %v850 = vpop.permute.xlu0 %849
        %v852 = vadd.f32 %v529, %v850
        %v853 = vtanh.pop %v852
        %v854 = vsub.f32 1.0, %v842
        %856 = vrot.lane.b32.xlu0 %v853, 112
        %v857 = vpop.permute.xlu0 %856
        %v859 = vmul.f32 %v854, %v857
        %v860 = vmul.f32 %v842, %v702
        %v861 = vadd.f32 %v859, %v860
        %v862 = vpack.c.bf16 %v788, %v788
        %864 = vrot.lane.b32.xlu0 %v862, 112
        %v865 = vpop.permute.xlu0 %864
        %v867 = vsel %vm484, %v865, 0
        %869 = vmatprep.subr.bf16.mxu0 0
        %870 = vmatpush1.bf16.msra.mxu0 %v714
        %871 = vmatprep.subr.bf16.mxu0 0
        %872 = vmatpush1.bf16.msra.mxu0 0
        %873 = vmatprep.subr.bf16.mxu0 0
        %874 = vmatpush1.bf16.msra.mxu0 0
        %875 = vmatprep.subr.bf16.mxu0 0
        %876 = vmatpush1.bf16.msra.mxu0 0
        %877 = vmatprep.subr.bf16.mxu0 0
        %878 = vmatpush1.bf16.msra.mxu0 0
        %879 = vmatprep.subr.bf16.mxu0 0
        %880 = vmatpush1.bf16.msra.mxu0 0
        %881 = vmatprep.subr.bf16.mxu0 0
        %882 = vmatpush1.bf16.msra.mxu0 0
        %883 = vmatprep.subr.bf16.mxu0 0
        %884 = vmatpush1.bf16.msra.mxu0 0
        %885 = vmatprep.subr.bf16.mxu0 0
        %886 = vmatpush1.bf16.msra.mxu0 0
        %887 = vmatprep.subr.bf16.mxu0 0
        %888 = vmatpush1.bf16.msra.mxu0 0
        %889 = vmatprep.subr.bf16.mxu0 0
        %890 = vmatpush1.bf16.msra.mxu0 0
        %891 = vmatprep.subr.bf16.mxu0 0
        %892 = vmatpush1.bf16.msra.mxu0 0
        %893 = vmatprep.subr.bf16.mxu0 0
        %894 = vmatpush1.bf16.msra.mxu0 0
        %895 = vmatprep.subr.bf16.mxu0 0
        %896 = vmatpush1.bf16.msra.mxu0 0
        %897 = vmatprep.subr.bf16.mxu0 0
        %898 = vmatpush1.bf16.msra.mxu0 0
        %899 = vmatprep.subr.bf16.mxu0 0
        %900 = vmatpush1.bf16.msra.mxu0 0
        %901 = vmatprep.mubr.bf16.mxu0 0
        %902 = vmatmul.mubr.bf16.gmra.mrb[0].mxu0 %v867
        %v903 = vpop.f32.mrb[0].mxu0
        %v904 = vadd.f32 %v708, %v903
        %v905 = vpop.f32.mrb[0].mxu0
        %v906 = vpop.f32.mrb[0].mxu0
        %v907 = vpop.f32.mrb[0].mxu0
        %908 = vdwg.mxu0
        %v909 = vadd.f32 %v600, %v904
        %v910 = vxor.u32 %v909, 2147483648
        %v911 = vmul.f32 %v910, 1.442695
        %v912 = vpow.pop %v911
        %v913 = vadd.f32 %v912, 1.0
        %v914 = vrcp.pop %v913
        %v915 = vmul.f32 1.0, %v914
        %917 = vrot.lane.b32.xlu0 %v904, 96
        %v918 = vpop.permute.xlu0 %917
        %v920 = vmul.f32 %v915, %v918
        %922 = vrot.lane.b32.xlu0 %v920, 32
        %v923 = vpop.permute.xlu0 %922
        %v925 = vadd.f32 %v600, %v923
        %v926 = vtanh.pop %v925
        %v927 = vsub.f32 1.0, %v915
        %929 = vrot.lane.b32.xlu0 %v926, 112
        %v930 = vpop.permute.xlu0 %929
        %v932 = vmul.f32 %v927, %v930
        %v933 = vmul.f32 %v915, %v788
        %v934 = vadd.f32 %v932, %v933
        %v935 = vpack.c.bf16 %v861, %v861
        %937 = vrot.lane.b32.xlu0 %v935, 112
        %v938 = vpop.permute.xlu0 %937
        %v940 = vsel %vm484, %v938, 0
        %942 = vmatprep.subr.bf16.mxu0 0
        %943 = vmatpush1.bf16.msra.mxu0 %v628
        %944 = vmatprep.subr.bf16.mxu0 0
        %945 = vmatpush1.bf16.msra.mxu0 0
        %946 = vmatprep.subr.bf16.mxu0 0
        %947 = vmatpush1.bf16.msra.mxu0 0
        %948 = vmatprep.subr.bf16.mxu0 0
        %949 = vmatpush1.bf16.msra.mxu0 0
        %950 = vmatprep.subr.bf16.mxu0 0
        %951 = vmatpush1.bf16.msra.mxu0 0
        %952 = vmatprep.subr.bf16.mxu0 0
        %953 = vmatpush1.bf16.msra.mxu0 0
        %954 = vmatprep.subr.bf16.mxu0 0
        %955 = vmatpush1.bf16.msra.mxu0 0
        %956 = vmatprep.subr.bf16.mxu0 0
        %957 = vmatpush1.bf16.msra.mxu0 0
        %958 = vmatprep.subr.bf16.mxu0 0
        %959 = vmatpush1.bf16.msra.mxu0 0
        %960 = vmatprep.subr.bf16.mxu0 0
        %961 = vmatpush1.bf16.msra.mxu0 0
        %962 = vmatprep.subr.bf16.mxu0 0
        %963 = vmatpush1.bf16.msra.mxu0 0
        %964 = vmatprep.subr.bf16.mxu0 0
        %965 = vmatpush1.bf16.msra.mxu0 0
        %966 = vmatprep.subr.bf16.mxu0 0
        %967 = vmatpush1.bf16.msra.mxu0 0
        %968 = vmatprep.subr.bf16.mxu0 0
        %969 = vmatpush1.bf16.msra.mxu0 0
        %970 = vmatprep.subr.bf16.mxu0 0
        %971 = vmatpush1.bf16.msra.mxu0 0
        %972 = vmatprep.subr.bf16.mxu0 0
        %973 = vmatpush1.bf16.msra.mxu0 0
        %974 = vmatprep.mubr.bf16.mxu0 0
        %975 = vmatmul.mubr.bf16.gmra.mrb[0].mxu0 %v940
        %v976 = vpop.f32.mrb[0].mxu0
        %v977 = vadd.f32 %v622, %v976
        %v978 = vpop.f32.mrb[0].mxu0
        %v979 = vpop.f32.mrb[0].mxu0
        %v980 = vpop.f32.mrb[0].mxu0
        %981 = vdwg.mxu0
        %v982 = vadd.f32 %v534, %v977
        %v983 = vxor.u32 %v982, 2147483648
        %v984 = vmul.f32 %v983, 1.442695
        %v985 = vpow.pop %v984
        %v986 = vadd.f32 %v985, 1.0
        %v987 = vrcp.pop %v986
        %v988 = vmul.f32 1.0, %v987
        %990 = vrot.lane.b32.xlu0 %v977, 96
        %v991 = vpop.permute.xlu0 %990
        %v993 = vmul.f32 %v988, %v991
        %995 = vrot.lane.b32.xlu0 %v993, 32
        %v996 = vpop.permute.xlu0 %995
        %v998 = vadd.f32 %v534, %v996
        %v999 = vtanh.pop %v998
        %v1000 = vsub.f32 1.0, %v988
        %1002 = vrot.lane.b32.xlu0 %v999, 112
        %v1003 = vpop.permute.xlu0 %1002
        %v1005 = vmul.f32 %v1000, %v1003
        %v1006 = vmul.f32 %v988, %v861
        %v1007 = vadd.f32 %v1005, %v1006
        %v1008 = vpack.c.bf16 %v934, %v934
        %1010 = vrot.lane.b32.xlu0 %v1008, 112
        %v1011 = vpop.permute.xlu0 %1010
        %v1013 = vsel %vm484, %v1011, 0
        %1015 = vmatprep.subr.bf16.mxu0 0
        %1016 = vmatpush1.bf16.msra.mxu0 %v714
        %1017 = vmatprep.subr.bf16.mxu0 0
        %1018 = vmatpush1.bf16.msra.mxu0 0
        %1019 = vmatprep.subr.bf16.mxu0 0
        %1020 = vmatpush1.bf16.msra.mxu0 0
        %1021 = vmatprep.subr.bf16.mxu0 0
        %1022 = vmatpush1.bf16.msra.mxu0 0
        %1023 = vmatprep.subr.bf16.mxu0 0
        %1024 = vmatpush1.bf16.msra.mxu0 0
        %1025 = vmatprep.subr.bf16.mxu0 0
        %1026 = vmatpush1.bf16.msra.mxu0 0
        %1027 = vmatprep.subr.bf16.mxu0 0
        %1028 = vmatpush1.bf16.msra.mxu0 0
        %1029 = vmatprep.subr.bf16.mxu0 0
        %1030 = vmatpush1.bf16.msra.mxu0 0
        %1031 = vmatprep.subr.bf16.mxu0 0
        %1032 = vmatpush1.bf16.msra.mxu0 0
        %1033 = vmatprep.subr.bf16.mxu0 0
        %1034 = vmatpush1.bf16.msra.mxu0 0
        %1035 = vmatprep.subr.bf16.mxu0 0
        %1036 = vmatpush1.bf16.msra.mxu0 0
        %1037 = vmatprep.subr.bf16.mxu0 0
        %1038 = vmatpush1.bf16.msra.mxu0 0
        %1039 = vmatprep.subr.bf16.mxu0 0
        %1040 = vmatpush1.bf16.msra.mxu0 0
        %1041 = vmatprep.subr.bf16.mxu0 0
        %1042 = vmatpush1.bf16.msra.mxu0 0
        %1043 = vmatprep.subr.bf16.mxu0 0
        %1044 = vmatpush1.bf16.msra.mxu0 0
        %1045 = vmatprep.subr.bf16.mxu0 0
        %1046 = vmatpush1.bf16.msra.mxu0 0
        %1047 = vmatprep.mubr.bf16.mxu0 0
        %1048 = vmatmul.mubr.bf16.gmra.mrb[0].mxu0 %v1013
        %v1049 = vpop.f32.mrb[0].mxu0
        %v1050 = vadd.f32 %v708, %v1049
        %v1051 = vpop.f32.mrb[0].mxu0
        %v1052 = vpop.f32.mrb[0].mxu0
        %v1053 = vpop.f32.mrb[0].mxu0
        %1054 = vdwg.mxu0
        %v1055 = vadd.f32 %v595, %v1050
        %v1056 = vxor.u32 %v1055, 2147483648
        %v1057 = vmul.f32 %v1056, 1.442695
        %v1058 = vpow.pop %v1057
        %v1059 = vadd.f32 %v1058, 1.0
        %v1060 = vrcp.pop %v1059
        %v1061 = vmul.f32 1.0, %v1060
        %1063 = vrot.lane.b32.xlu0 %v1050, 96
        %v1064 = vpop.permute.xlu0 %1063
        %v1066 = vmul.f32 %v1061, %v1064
        %1068 = vrot.lane.b32.xlu0 %v1066, 32
        %v1069 = vpop.permute.xlu0 %1068
        %v1071 = vadd.f32 %v595, %v1069
        %v1072 = vtanh.pop %v1071
        %v1073 = vsub.f32 1.0, %v1061
        %1075 = vrot.lane.b32.xlu0 %v1072, 112
        %v1076 = vpop.permute.xlu0 %1075
        %v1078 = vmul.f32 %v1073, %v1076
        %v1079 = vmul.f32 %v1061, %v934
        %v1080 = vadd.f32 %v1078, %v1079
        %v1081 = vpack.c.bf16 %v1007, %v1007
        %1083 = vrot.lane.b32.xlu0 %v1081, 112
        %v1084 = vpop.permute.xlu0 %1083
        %v1086 = vsel %vm484, %v1084, 0
        %1088 = vmatprep.subr.bf16.mxu0 0
        %1089 = vmatpush1.bf16.msra.mxu0 %v628
        %1090 = vmatprep.subr.bf16.mxu0 0
        %1091 = vmatpush1.bf16.msra.mxu0 0
        %1092 = vmatprep.subr.bf16.mxu0 0
        %1093 = vmatpush1.bf16.msra.mxu0 0
        %1094 = vmatprep.subr.bf16.mxu0 0
        %1095 = vmatpush1.bf16.msra.mxu0 0
        %1096 = vmatprep.subr.bf16.mxu0 0
        %1097 = vmatpush1.bf16.msra.mxu0 0
        %1098 = vmatprep.subr.bf16.mxu0 0
        %1099 = vmatpush1.bf16.msra.mxu0 0
        %1100 = vmatprep.subr.bf16.mxu0 0
        %1101 = vmatpush1.bf16.msra.mxu0 0
        %1102 = vmatprep.subr.bf16.mxu0 0
        %1103 = vmatpush1.bf16.msra.mxu0 0
        %1104 = vmatprep.subr.bf16.mxu0 0
        %1105 = vmatpush1.bf16.msra.mxu0 0
        %1106 = vmatprep.subr.bf16.mxu0 0
        %1107 = vmatpush1.bf16.msra.mxu0 0
        %1108 = vmatprep.subr.bf16.mxu0 0
        %1109 = vmatpush1.bf16.msra.mxu0 0
        %1110 = vmatprep.subr.bf16.mxu0 0
        %1111 = vmatpush1.bf16.msra.mxu0 0
        %1112 = vmatprep.subr.bf16.mxu0 0
        %1113 = vmatpush1.bf16.msra.mxu0 0
        %1114 = vmatprep.subr.bf16.mxu0 0
        %1115 = vmatpush1.bf16.msra.mxu0 0
        %1116 = vmatprep.subr.bf16.mxu0 0
        %1117 = vmatpush1.bf16.msra.mxu0 0
        %1118 = vmatprep.subr.bf16.mxu0 0
        %1119 = vmatpush1.bf16.msra.mxu0 0
        %1120 = vmatprep.mubr.bf16.mxu0 0
        %1121 = vmatmul.mubr.bf16.gmra.mrb[0].mxu0 %v1086
        %v1122 = vpop.f32.mrb[0].mxu0
        %v1123 = vadd.f32 %v622, %v1122
        %v1124 = vpop.f32.mrb[0].mxu0
        %v1125 = vpop.f32.mrb[0].mxu0
        %v1126 = vpop.f32.mrb[0].mxu0
        %1127 = vdwg.mxu0
        %v1128 = vadd.f32 %v537, %v1123
        %v1129 = vxor.u32 %v1128, 2147483648
        %v1130 = vmul.f32 %v1129, 1.442695
        %v1131 = vpow.pop %v1130
        %v1132 = vadd.f32 %v1131, 1.0
        %v1133 = vrcp.pop %v1132
        %v1134 = vmul.f32 1.0, %v1133
        %1136 = vrot.lane.b32.xlu0 %v1123, 96
        %v1137 = vpop.permute.xlu0 %1136
        %v1139 = vmul.f32 %v1134, %v1137
        %1141 = vrot.lane.b32.xlu0 %v1139, 32
        %v1142 = vpop.permute.xlu0 %1141
        %v1144 = vadd.f32 %v537, %v1142
        %v1145 = vtanh.pop %v1144
        %v1146 = vsub.f32 1.0, %v1134
        %1148 = vrot.lane.b32.xlu0 %v1145, 112
        %v1149 = vpop.permute.xlu0 %1148
        %v1151 = vmul.f32 %v1146, %v1149
        %v1152 = vmul.f32 %v1134, %v1007
        %v1153 = vadd.f32 %v1151, %v1152
        %v1154 = vpack.c.bf16 %v1080, %v1080
        %1156 = vrot.lane.b32.xlu0 %v1154, 112
        %v1157 = vpop.permute.xlu0 %1156
        %v1159 = vsel %vm484, %v1157, 0
        %1161 = vmatprep.subr.bf16.mxu0 0
        %1162 = vmatpush1.bf16.msra.mxu0 %v714
        %1163 = vmatprep.subr.bf16.mxu0 0
        %1164 = vmatpush1.bf16.msra.mxu0 0
        %1165 = vmatprep.subr.bf16.mxu0 0
        %1166 = vmatpush1.bf16.msra.mxu0 0
        %1167 = vmatprep.subr.bf16.mxu0 0
        %1168 = vmatpush1.bf16.msra.mxu0 0
        %1169 = vmatprep.subr.bf16.mxu0 0
        %1170 = vmatpush1.bf16.msra.mxu0 0
        %1171 = vmatprep.subr.bf16.mxu0 0
        %1172 = vmatpush1.bf16.msra.mxu0 0
        %1173 = vmatprep.subr.bf16.mxu0 0
        %1174 = vmatpush1.bf16.msra.mxu0 0
        %1175 = vmatprep.subr.bf16.mxu0 0
        %1176 = vmatpush1.bf16.msra.mxu0 0
        %1177 = vmatprep.subr.bf16.mxu0 0
        %1178 = vmatpush1.bf16.msra.mxu0 0
        %1179 = vmatprep.subr.bf16.mxu0 0
        %1180 = vmatpush1.bf16.msra.mxu0 0
        %1181 = vmatprep.subr.bf16.mxu0 0
        %1182 = vmatpush1.bf16.msra.mxu0 0
        %1183 = vmatprep.subr.bf16.mxu0 0
        %1184 = vmatpush1.bf16.msra.mxu0 0
        %1185 = vmatprep.subr.bf16.mxu0 0
        %1186 = vmatpush1.bf16.msra.mxu0 0
        %1187 = vmatprep.subr.bf16.mxu0 0
        %1188 = vmatpush1.bf16.msra.mxu0 0
        %1189 = vmatprep.subr.bf16.mxu0 0
        %1190 = vmatpush1.bf16.msra.mxu0 0
        %1191 = vmatprep.subr.bf16.mxu0 0
        %1192 = vmatpush1.bf16.msra.mxu0 0
        %1193 = vmatprep.mubr.bf16.mxu0 0
        %1194 = vmatmul.mubr.bf16.gmra.mrb[0].mxu0 %v1159
        %v1195 = vpop.f32.mrb[0].mxu0
        %v1196 = vadd.f32 %v708, %v1195
        %v1197 = vpop.f32.mrb[0].mxu0
        %v1198 = vpop.f32.mrb[0].mxu0
        %v1199 = vpop.f32.mrb[0].mxu0
        %1200 = vdwg.mxu0
        %v1201 = vadd.f32 %v592, %v1196
        %v1202 = vxor.u32 %v1201, 2147483648
        %v1203 = vmul.f32 %v1202, 1.442695
        %v1204 = vpow.pop %v1203
        %v1205 = vadd.f32 %v1204, 1.0
        %v1206 = vrcp.pop %v1205
        %v1207 = vmul.f32 1.0, %v1206
        %1209 = vrot.lane.b32.xlu0 %v1196, 96
        %v1210 = vpop.permute.xlu0 %1209
        %v1212 = vmul.f32 %v1207, %v1210
        %1214 = vrot.lane.b32.xlu0 %v1212, 32
        %v1215 = vpop.permute.xlu0 %1214
        %v1217 = vadd.f32 %v592, %v1215
        %v1218 = vtanh.pop %v1217
        %v1219 = vsub.f32 1.0, %v1207
        %1221 = vrot.lane.b32.xlu0 %v1218, 112
        %v1222 = vpop.permute.xlu0 %1221
        %v1224 = vmul.f32 %v1219, %v1222
        %v1225 = vmul.f32 %v1207, %v1080
        %v1226 = vadd.f32 %v1224, %v1225
        %v1227 = vpack.c.bf16 %v861, %v702
        %v1228 = vpack.c.bf16 %v1153, %v1007
        %v1229 = vld [vmem:[%s6] sm:$0xf]
        %v1230 = vld [vmem:[%s6 + $0x4] sm:$0xf]
        %v1231 = vpack.c.bf16 %v1080, %v1226
        %v1232 = vpack.c.bf16 %v788, %v934
        %v1233 = vld [vmem:[%s7] sm:$0xf]
        %v1234 = vld [vmem:[%s7 + $0x4] sm:$0xf]
        %1237 = vrot.lane.b32.xlu0 %v1231, 112
        %v1238 = vpop.permute.xlu0 %1237
        %1239 = vrot.lane.b32.xlu0 %v1232, 112
        %v1240 = vpop.permute.xlu0 %1239
        %v1243 = vunpack.c.l.b16 %v1233
        %v1244 = vunpack.c.l.b16 %v1234
        %v1245 = vpack.c.b16 %v1244, %v1243
        %v1248 = vsel %vm484, %v1238, 0
        %v1251 = vsel %vm484, %v1240, 0
        %1253 = vmatprep.subr.bf16.mxu0 0
        %1254 = vmatpush1.bf16.msra.mxu0 %v1245
        %1255 = vmatprep.subr.bf16.mxu0 0
        %1256 = vmatpush1.bf16.msra.mxu0 0
        %1257 = vmatprep.subr.bf16.mxu0 0
        %1258 = vmatpush1.bf16.msra.mxu0 0
        %1259 = vmatprep.subr.bf16.mxu0 0
        %1260 = vmatpush1.bf16.msra.mxu0 0
        %1261 = vmatprep.subr.bf16.mxu0 0
        %1262 = vmatpush1.bf16.msra.mxu0 0
        %1263 = vmatprep.subr.bf16.mxu0 0
        %1264 = vmatpush1.bf16.msra.mxu0 0
        %1265 = vmatprep.subr.bf16.mxu0 0
        %1266 = vmatpush1.bf16.msra.mxu0 0
        %1267 = vmatprep.subr.bf16.mxu0 0
        %1268 = vmatpush1.bf16.msra.mxu0 0
        %1269 = vmatprep.subr.bf16.mxu0 0
        %1270 = vmatpush1.bf16.msra.mxu0 0
        %1271 = vmatprep.subr.bf16.mxu0 0
        %1272 = vmatpush1.bf16.msra.mxu0 0
        %1273 = vmatprep.subr.bf16.mxu0 0
        %1274 = vmatpush1.bf16.msra.mxu0 0
        %1275 = vmatprep.subr.bf16.mxu0 0
        %1276 = vmatpush1.bf16.msra.mxu0 0
        %1277 = vmatprep.subr.bf16.mxu0 0
        %1278 = vmatpush1.bf16.msra.mxu0 0
        %1279 = vmatprep.subr.bf16.mxu0 0
        %1280 = vmatpush1.bf16.msra.mxu0 0
        %1281 = vmatprep.subr.bf16.mxu0 0
        %1282 = vmatpush1.bf16.msra.mxu0 0
        %1283 = vmatprep.subr.bf16.mxu0 0
        %1284 = vmatpush1.bf16.msra.mxu0 0
        %1285 = vmatprep.mubr.bf16.mxu0 0
        %1286 = vmatmul.mubr.bf16.gmra.mrb[0].mxu0 %v1248
        %v1287 = vpop.f32.mrb[0].mxu0
        %v1288 = vadd.f32 0.0, %v1287
        %v1289 = vpop.f32.mrb[0].mxu0
        %v1290 = vpop.f32.mrb[0].mxu0
        %v1291 = vadd.f32 0.0, %v1290
        %v1292 = vpop.f32.mrb[0].mxu0
        %1293 = vmatprep.mubr.bf16.mxu0 0
        %1294 = vmatmul.mubr.bf16.gmra.mrb[0].mxu0 %v1251
        %v1295 = vpop.f32.mrb[0].mxu0
        %v1296 = vadd.f32 0.0, %v1295
        %v1297 = vpop.f32.mrb[0].mxu0
        %v1298 = vpop.f32.mrb[0].mxu0
        %v1299 = vadd.f32 0.0, %v1298
        %v1300 = vpop.f32.mrb[0].mxu0
        %1301 = vdwg.mxu0
        %1304 = vrot.lane.b32.xlu0 %v1227, 112
        %v1305 = vpop.permute.xlu0 %1304
        %1306 = vrot.lane.b32.xlu0 %v1228, 112
        %v1307 = vpop.permute.xlu0 %1306
        %v1310 = vunpack.c.l.b16 %v1229
        %v1311 = vunpack.c.l.b16 %v1230
        %v1312 = vpack.c.b16 %v1311, %v1310
        %v1315 = vsel %vm484, %v1305, 0
        %v1318 = vsel %vm484, %v1307, 0
        %1320 = vmatprep.subr.bf16.mxu0 0
        %1321 = vmatpush1.bf16.msra.mxu0 %v1312
        %1322 = vmatprep.subr.bf16.mxu0 0
        %1323 = vmatpush1.bf16.msra.mxu0 0
        %1324 = vmatprep.subr.bf16.mxu0 0
        %1325 = vmatpush1.bf16.msra.mxu0 0
        %1326 = vmatprep.subr.bf16.mxu0 0
        %1327 = vmatpush1.bf16.msra.mxu0 0
        %1328 = vmatprep.subr.bf16.mxu0 0
        %1329 = vmatpush1.bf16.msra.mxu0 0
        %1330 = vmatprep.subr.bf16.mxu0 0
        %1331 = vmatpush1.bf16.msra.mxu0 0
        %1332 = vmatprep.subr.bf16.mxu0 0
        %1333 = vmatpush1.bf16.msra.mxu0 0
        %1334 = vmatprep.subr.bf16.mxu0 0
        %1335 = vmatpush1.bf16.msra.mxu0 0
        %1336 = vmatprep.subr.bf16.mxu0 0
        %1337 = vmatpush1.bf16.msra.mxu0 0
        %1338 = vmatprep.subr.bf16.mxu0 0
        %1339 = vmatpush1.bf16.msra.mxu0 0
        %1340 = vmatprep.subr.bf16.mxu0 0
        %1341 = vmatpush1.bf16.msra.mxu0 0
        %1342 = vmatprep.subr.bf16.mxu0 0
        %1343 = vmatpush1.bf16.msra.mxu0 0
        %1344 = vmatprep.subr.bf16.mxu0 0
        %1345 = vmatpush1.bf16.msra.mxu0 0
        %1346 = vmatprep.subr.bf16.mxu0 0
        %1347 = vmatpush1.bf16.msra.mxu0 0
        %1348 = vmatprep.subr.bf16.mxu0 0
        %1349 = vmatpush1.bf16.msra.mxu0 0
        %1350 = vmatprep.subr.bf16.mxu0 0
        %1351 = vmatpush1.bf16.msra.mxu0 0
        %1352 = vmatprep.mubr.bf16.mxu0 0
        %1353 = vmatmul.mubr.bf16.gmra.mrb[0].mxu0 %v1315
        %v1354 = vpop.f32.mrb[0].mxu0
        %v1355 = vadd.f32 %v1288, %v1354
        %v1356 = vpop.f32.mrb[0].mxu0
        %v1357 = vpop.f32.mrb[0].mxu0
        %v1358 = vadd.f32 %v1291, %v1357
        %v1359 = vpop.f32.mrb[0].mxu0
        %1360 = vmatprep.mubr.bf16.mxu0 0
        %1361 = vmatmul.mubr.bf16.gmra.mrb[0].mxu0 %v1318
        %v1362 = vpop.f32.mrb[0].mxu0
        %v1363 = vadd.f32 %v1296, %v1362
        %v1364 = vpop.f32.mrb[0].mxu0
        %v1365 = vpop.f32.mrb[0].mxu0
        %v1366 = vadd.f32 %v1299, %v1365
        %v1367 = vpop.f32.mrb[0].mxu0
        %1368 = vdwg.mxu0
        %v1369 = vld [vmem:[%s8] sm:$0x1]
        %v1371 = vlaneseq
        %v1372 = vshrl.u32 %v1371, 7
        %v1373 = vsub.s32 0, %v1372
        %v1374 = vrot.slane %v1369, %v1373
        %v1376 = vadd.f32 %v1355, %v1374
        %v1377 = vadd.f32 %v1358, %v1374
        %v1378 = vadd.f32 %v1363, %v1374
        %v1379 = vadd.f32 %v1366, %v1374
        %v1380 = vmax.f32 %v1376, 0.0
        %v1381 = vmax.f32 %v1377, 0.0
        %v1382 = vmax.f32 %v1378, 0.0
        %v1383 = vmax.f32 %v1379, 0.0
        %v1384 = vld [vmem:[%s9] sm:$0x1]
        %v1386 = vlaneseq
        %v1387 = vshrl.u32 %v1386, 7
        %v1388 = vsub.s32 0, %v1387
        %v1389 = vrot.slane %v1384, %v1388
        %v1391 = vmul.f32 %v1380, %v1389
        %v1392 = vmul.f32 %v1381, %v1389
        %v1393 = vmul.f32 %v1382, %v1389
        %v1394 = vmul.f32 %v1383, %v1389
        %vm1395 = vcmask 261120
        %v1396 = vsel %vm1395, %v1391, 0.0
        %1397 = vadd.xlane.f32.xlu0 %v1396
        %v1398 = vpop.xlane.xlu0 %1397
        %v1399 = vsel %vm1395, %v1392, 0.0
        %1400 = vadd.xlane.f32.xlu0 %v1399
        %v1401 = vpop.xlane.xlu0 %1400
        %v1402 = vsel %vm1395, %v1393, 0.0
        %1403 = vadd.xlane.f32.xlu0 %v1402
        %v1404 = vpop.xlane.xlu0 %1403
        %v1405 = vsel %vm1395, %v1394, 0.0
        %1406 = vadd.xlane.f32.xlu0 %v1405
        %v1407 = vpop.xlane.xlu0 %1406
        %v1408 = vmax.f32 %v1398, %v1401
        %v1409 = vmax.f32 %v1408, %v1404
        %v1410 = vmax.f32 %v1409, %v1407
        %v1411 = vsub.f32 %v1398, %v1410
        %v1412 = vmul.f32 %v1411, 1.442695
        %v1413 = vpow.pop %v1412
        %v1414 = vsub.f32 %v1401, %v1410
        %v1415 = vmul.f32 %v1414, 1.442695
        %v1416 = vpow.pop %v1415
        %v1417 = vsub.f32 %v1404, %v1410
        %v1418 = vmul.f32 %v1417, 1.442695
        %v1419 = vpow.pop %v1418
        %v1420 = vsub.f32 %v1407, %v1410
        %v1421 = vmul.f32 %v1420, 1.442695
        %v1422 = vpow.pop %v1421
        %v1423 = vadd.f32 %v1413, %v1416
        %v1424 = vadd.f32 %v1423, %v1419
        %v1425 = vadd.f32 %v1424, %v1422
        %v1426 = vmul.f32 %v1413, %v702
        %v1427 = vmul.f32 %v1413, %v1226
        %v1428 = vmul.f32 %v1416, %v861
        %v1429 = vadd.f32 %v1426, %v1428
        %v1430 = vmul.f32 %v1416, %v1080
        %v1431 = vadd.f32 %v1427, %v1430
        %v1432 = vmul.f32 %v1419, %v1007
        %v1433 = vadd.f32 %v1429, %v1432
        %v1434 = vmul.f32 %v1419, %v934
        %v1435 = vadd.f32 %v1431, %v1434
        %v1436 = vmul.f32 %v1422, %v1153
        %v1437 = vadd.f32 %v1433, %v1436
        %v1438 = vmul.f32 %v1422, %v788
        %v1439 = vadd.f32 %v1435, %v1438
        %v1440 = vrcp.pop %v1425
        %v1441 = vmul.f32 1.0, %v1440
        %v1442 = vmul.f32 %v1437, %v1441
        %1444 = vrot.lane.b32.xlu0 %v1442, 112
        %v1445 = vpop.permute.xlu0 %1444
        %1447 = vst.msk [vmem:[%s461] sm:$0xff] %vm484, %v1445
        %v1448 = vmul.f32 %v1439, %v1441
        %vm1449 = vcmask 261248
        %1450 = vst.msk [vmem:[%s461] sm:$0xff] %vm1449, %v1448
        %p1451 = scmp.lt.s32.totalorder %s21, 1
        %s1452 = scalar_select %p1451, %s21, 1
        %s1453 = smul.addr %s1452, 8
        %s1454 = scalar_lea.vmem %s10, %s1453
        // Predicated region
        $region137: #{hierachical_rnn_forward.8} parent=127 // pred_check
          %p1455 = pneg %p259
        $region138: #{hierachical_rnn_forward.8} parent=127 // pred_check_branch
          %1457 = sbr.rel (%p1455) target = $region140
        $region139: #{hierachical_rnn_forward.8} parent=127 // pred_region
          _
        $region140: #{hierachical_rnn_forward.8} parent=127 // pred_fallthru
          _
      $region128: #{hierachical_rnn_forward.8} parent=5 // pred_fallthru
        _
      %p1458 = scmp.le.s32.totalorder 2, %s16
      // Predicated region
      $region141: #{hierachical_rnn_forward.8} parent=5 // pred_check
        %p1459 = pneg %p1458
      $region142: #{hierachical_rnn_forward.8} parent=5 // pred_check_branch
        %1461 = sbr.rel (%p1459) target = $region144
      $region143: #{hierachical_rnn_forward.8} parent=5 // pred_region
        %s1462 = ssub.s32 %s16, 2
        // Predicated region
        $region145: #{hierachical_rnn_forward.8} parent=143 // pred_check
          %p1463 = pneg %p265
        $region146: #{hierachical_rnn_forward.8} parent=143 // pred_check_branch
          %1465 = sbr.rel (%p1463) target = $region148
        $region147: #{hierachical_rnn_forward.8} parent=143 // pred_region
          %p1466 = scmp.lt.s32.totalorder %s22, 1
          %s1467 = scalar_select %p1466, %s22, 1
          %s1468 = smul.addr %s1467, 8
          %s1469 = scalar_lea.vmem %s10, %s1468
        $region148: #{hierachical_rnn_forward.8} parent=143 // pred_fallthru
          _
      $region144: #{hierachical_rnn_forward.8} parent=5 // pred_fallthru
        _
    $region6: #{hierachical_rnn_forward.8} parent=1 // loop_footer
      %s20 = sadd.s32 1, %s16
    $region7: #{hierachical_rnn_forward.8} parent=1 // loop_footer_branch
      %15 = sbr.rel target = $region3
    $region8: #{hierachical_rnn_forward.8} parent=1 // loop_exit
      _

</llo_original>
